<compile_context>
chip_gen: v7x
topology: tpu7x:2x2x1
jax: 0.10.0
libtpu: 0.0.40
codegen_flags: <defaults>
</compile_context>

<pallas_src>
import numpy as np
import jax
import jax.numpy as jnp
from jax.experimental import pallas as pl
from jax.experimental.pallas import tpu as pltpu


def _round_up(x, m):
    return ((x + m - 1) // m) * m


def gru_l2norm_chunk_kernel(gi_ref, len_ref, whh_ref, bhh_ref, out_ref, h_ref):
    """One grid step == one (batch_chunk, time_chunk) tile of the GRU recurrence.

    gi_ref  : (BB, Tc, 3*HP)  precomputed x_t @ W_ih^T + b_ih, gate slabs [r|z|n] each HP wide
    len_ref : (BB, 1)         int32 sequence lengths (0 for padded batch rows)
    whh_ref : (HP, 3*HP)      hidden->hidden weights (transposed, gate slabs zero-padded)
    bhh_ref : (1, 3*HP)       hidden bias (padded lanes zero)
    out_ref : (BB, Tc, HP)    masked + l2-normalized GRU output
    h_ref   : (BB, HP)        VMEM scratch carrying hidden state across time chunks
    """
    tc = pl.program_id(1)
    Tc = out_ref.shape[1]
    HP = h_ref.shape[1]

    @pl.when(tc == 0)
    def _init():
        h_ref[...] = jnp.zeros_like(h_ref)

    # Hoist loads of per-chunk-invariant data out of the unrolled time loop.
    lens = len_ref[...]           # (BB, 1) int32
    whh = whh_ref[...]            # (HP, 3*HP)
    bhh = bhh_ref[...]            # (1, 3*HP)
    h = h_ref[...]                # (BB, HP)
    t0 = tc * Tc

    for i in range(Tc):           # fully unrolled inner time loop (Tc is static)
        gi_t = gi_ref[:, i, :]    # (BB, 3*HP)
        gh = jnp.dot(h, whh, preferred_element_type=jnp.float32) + bhh

        r = jax.nn.sigmoid(gi_t[:, 0 * HP:1 * HP] + gh[:, 0 * HP:1 * HP])
        z = jax.nn.sigmoid(gi_t[:, 1 * HP:2 * HP] + gh[:, 1 * HP:2 * HP])
        n = jnp.tanh(gi_t[:, 2 * HP:3 * HP] + r * gh[:, 2 * HP:3 * HP])
        h = (1.0 - z) * n + z * h

        # pack/pad emulation: zero outputs for padded positions (t >= lengths[b])
        mask = (lens > (t0 + i)).astype(h.dtype)          # (BB, 1)
        y = h * mask

        # l2norm over hidden dim, eps = 1e-8 (padded lanes are exactly zero -> no effect)
        norm = jnp.sqrt(jnp.sum(y * y, axis=-1, keepdims=True)) + 1e-8
        inv = pl.reciprocal(norm, approx=True)            # EUP (free slot)
        inv = inv * (2.0 - norm * inv)                    # one Newton step -> ~f32 accuracy
        out_ref[:, i, :] = (y * inv).astype(out_ref.dtype)

    h_ref[...] = h


def init_params(key, vocab_size, word_dim, embed_size):
    k_emb, k_wih, k_whh, k_bih, k_bhh = jax.random.split(key, 5)
    stdv = 1.0 / np.sqrt(embed_size)
    return {
        # nn.Embedding weight, init uniform(-0.1, 0.1) as in init_weights()
        "embed": jax.random.uniform(k_emb, (vocab_size, word_dim), jnp.float32, -0.1, 0.1),
        # GRU params (PyTorch default uniform(-1/sqrt(H), 1/sqrt(H))), stored pre-transposed,
        # gate order [r, z, n]
        "wih_t": jax.random.uniform(k_wih, (word_dim, 3 * embed_size), jnp.float32, -stdv, stdv),
        "whh_t": jax.random.uniform(k_whh, (embed_size, 3 * embed_size), jnp.float32, -stdv, stdv),
        "bih": jax.random.uniform(k_bih, (1, 3 * embed_size), jnp.float32, -stdv, stdv),
        "bhh": jax.random.uniform(k_bhh, (1, 3 * embed_size), jnp.float32, -stdv, stdv),
    }


def _pad_gate_cols(w, H, HP):
    """(rows, 3H) -> (rows, 3*HP) with each gate slab placed at a 128-aligned offset."""
    rows = w.shape[0]
    out = jnp.zeros((rows, 3 * HP), w.dtype)
    for g in range(3):
        out = out.at[:, g * HP:g * HP + H].set(w[:, g * H:(g + 1) * H])
    return out


def encoder_text_forward(x_ids, lengths, params, *, time_chunk=8, batch_chunk=8):
    """x_ids: (B, T) int32 token ids; lengths: (B,) int32 (sorted descending, as in pack_padded)."""
    emb = params["embed"][x_ids]                      # (B, T, D) embedding gather (glue)
    B, T, D = emb.shape
    H = params["whh_t"].shape[0]
    HP = max(_round_up(H, 128), 128)                  # lane-dense hidden width

    lengths_np = np.asarray(lengths).astype(np.int32)
    max_len = int(lengths_np.max())                   # pad_packed pads to max(lengths)

    n_tc = -(-max_len // time_chunk)                  # run recurrence only over max_len
    T_use = n_tc * time_chunk
    BP = _round_up(B, batch_chunk)                    # fill sublanes / MXU rows

    emb_u = emb[:, :T_use, :] if T_use <= T else jnp.pad(emb, ((0, 0), (0, T_use - T), (0, 0)))
    if BP > B:
        emb_u = jnp.pad(emb_u, ((0, BP - B), (0, 0), (0, 0)))

    # Gate-slab padded (lane-aligned) parameters; padded rows/cols are zero so padded
    # hidden lanes stay exactly zero through the recurrence.
    wih_p = _pad_gate_cols(params["wih_t"], H, HP)                              # (D, 3*HP)
    whh_p = jnp.zeros((HP, 3 * HP), jnp.float32).at[:H, :].set(
        _pad_gate_cols(params["whh_t"], H, HP))                                 # (HP, 3*HP)
    bih_p = _pad_gate_cols(params["bih"], H, HP)                                # (1, 3*HP)
    bhh_p = _pad_gate_cols(params["bhh"], H, HP)                                # (1, 3*HP)

    # Hoisted, time-independent input projection: one large batched matmul.
    gi = jnp.dot(emb_u, wih_p) + bih_p                                          # (BP, T_use, 3*HP)

    len_p = np.zeros((BP, 1), np.int32)
    len_p[:B, 0] = lengths_np
    len_p = jnp.asarray(len_p)

    out_p = pl.pallas_call(
        gru_l2norm_chunk_kernel,
        out_shape=jax.ShapeDtypeStruct((BP, T_use, HP), jnp.float32),
        grid=(BP // batch_chunk, n_tc),
        in_specs=[
            pl.BlockSpec((batch_chunk, time_chunk, 3 * HP), lambda bc, tc: (bc, tc, 0)),
            pl.BlockSpec((batch_chunk, 1), lambda bc, tc: (bc, 0)),
            pl.BlockSpec((HP, 3 * HP), lambda bc, tc: (0, 0)),   # constant index: fetched once
            pl.BlockSpec((1, 3 * HP), lambda bc, tc: (0, 0)),
        ],
        out_specs=pl.BlockSpec((batch_chunk, time_chunk, HP), lambda bc, tc: (bc, tc, 0)),
        scratch_shapes=[pltpu.VMEM((batch_chunk, HP), jnp.float32)],
        compiler_params=pltpu.CompilerParams(
            dimension_semantics=("parallel", "arbitrary"),   # batch chunks split across TCs on v7x
            vmem_limit_bytes=32 * 1024 * 1024,
        ),
    )(gi, len_p, whh_p, bhh_p)

    cap_emb = out_p[:B, :max_len, :H]                 # drop batch / time / lane padding
    cap_len = jnp.asarray(lengths_np)
    return cap_emb, cap_len


def _reference_forward(x_ids, lengths, params):
    """Pure-JAX reference (same math, unpadded) for a correctness check."""
    emb = params["embed"][np.asarray(x_ids)]
    B, T, D = emb.shape
    H = params["whh_t"].shape[0]
    wih, whh = params["wih_t"], params["whh_t"]
    bih, bhh = params["bih"], params["bhh"]

    def step(h, x_t):
        gi = x_t @ wih + bih
        gh = h @ whh + bhh
        r = jax.nn.sigmoid(gi[:, :H] + gh[:, :H])
        z = jax.nn.sigmoid(gi[:, H:2 * H] + gh[:, H:2 * H])
        n = jnp.tanh(gi[:, 2 * H:] + r * gh[:, 2 * H:])
        h_new = (1.0 - z) * n + z * h
        return h_new, h_new

    _, hs = jax.lax.scan(step, jnp.zeros((B, H), jnp.float32), jnp.transpose(emb, (1, 0, 2)))
    out = jnp.transpose(hs, (1, 0, 2))                # (B, T, H)
    mask = (jnp.arange(T)[None, :, None] < jnp.asarray(lengths)[:, None, None])
    out = out * mask.astype(out.dtype)
    norm = jnp.sqrt(jnp.sum(out * out, axis=-1, keepdims=True)) + 1e-8
    out = out / norm
    max_len = int(np.max(np.asarray(lengths)))
    return out[:, :max_len, :]


if __name__ == "__main__":
    vocab_size, word_dim, embed_size = 50, 32, 32
    B, T = 2, 8

    key = jax.random.PRNGKey(0)
    k_params, k_ids = jax.random.split(key)
    params = init_params(k_params, vocab_size, word_dim, embed_size)

    x_ids = jax.random.randint(k_ids, (B, T), 0, vocab_size, dtype=jnp.int32)
    lengths = np.array([8, 5], dtype=np.int32)        # sorted descending (pack_padded requirement)

    cap_emb, cap_len = encoder_text_forward(x_ids, lengths, params)
    cap_emb = jax.block_until_ready(cap_emb)

    ref = _reference_forward(x_ids, lengths, params)
    assert cap_emb.shape == (B, int(lengths.max()), embed_size)
    assert np.allclose(np.asarray(cap_emb), np.asarray(ref), atol=1e-4, rtol=1e-4)

    print("KERNEL_OK")
</pallas_src>

<mosaic_0001>
module attributes {stable_mosaic.version = 11 : i64} {
  func.func @gru_l2norm_chunk_kernel(%arg0: i32, %arg1: i32, %arg2: memref<8x8x384xf32, #tpu.memory_space<vmem>>, %arg3: memref<8x1xi32, #tpu.memory_space<vmem>>, %arg4: memref<128x384xf32, #tpu.memory_space<vmem>>, %arg5: memref<1x384xf32, #tpu.memory_space<vmem>>, %arg6: memref<8x8x128xf32, #tpu.memory_space<vmem>>, %arg7: memref<8x128xf32, #tpu.memory_space<vmem>>) attributes {dimension_semantics = [#tpu.dimension_semantics<parallel>, #tpu.dimension_semantics<arbitrary>], iteration_bounds = array<i64: 1, 1>, scalar_prefetch = 0 : i64, scratch_operands = 1 : i64, tpu.core_type = #tpu.core_type<tc>, window_params = [{transform_indices = @transform_0, window_bounds = array<i64: 8, 8, 384>}, {transform_indices = @transform_1, window_bounds = array<i64: 8, 1>}, {pipeline_mode = #tpu.pipeline_mode<synchronous>, transform_indices = @transform_2, window_bounds = array<i64: 128, 384>}, {pipeline_mode = #tpu.pipeline_mode<synchronous>, transform_indices = @transform_3, window_bounds = array<i64: 1, 384>}, {transform_indices = @transform_4, window_bounds = array<i64: 8, 8, 128>}]} {
    %c0_i32 = arith.constant 0 : i32
    %0 = arith.cmpi eq, %arg1, %c0_i32 : i32
    %1 = arith.extui %0 : i1 to i32
    %c0_i32_0 = arith.constant 0 : i32
    %2 = arith.cmpi ne, %1, %c0_i32_0 : i32
    scf.if %2 {
      %cst_107 = arith.constant 0.000000e+00 : f32
      %441 = vector.broadcast %cst_107 : f32 to vector<8x128xf32>
      %c0_108 = arith.constant 0 : index
      %c0_109 = arith.constant 0 : index
      %442 = vector.load %arg7[%c0_108, %c0_109] : memref<8x128xf32, #tpu.memory_space<vmem>>, vector<8x128xf32>
      tpu.vector_store %arg7[%c0_108, %c0_109], %441 {strides = array<i32>} : memref<8x128xf32, #tpu.memory_space<vmem>>, vector<8x128xf32>,
    } else {
    }
    %c0 = arith.constant 0 : index
    %c0_1 = arith.constant 0 : index
    %3 = vector.load %arg3[%c0, %c0_1] : memref<8x1xi32, #tpu.memory_space<vmem>>, vector<8x1xi32>
    %c0_2 = arith.constant 0 : index
    %c0_3 = arith.constant 0 : index
    %4 = vector.load %arg4[%c0_2, %c0_3] : memref<128x384xf32, #tpu.memory_space<vmem>>, vector<128x384xf32>
    %c0_4 = arith.constant 0 : index
    %c0_5 = arith.constant 0 : index
    %5 = vector.load %arg5[%c0_4, %c0_5] : memref<1x384xf32, #tpu.memory_space<vmem>>, vector<1x384xf32>
    %c0_6 = arith.constant 0 : index
    %c0_7 = arith.constant 0 : index
    %6 = vector.load %arg7[%c0_6, %c0_7] : memref<8x128xf32, #tpu.memory_space<vmem>>, vector<8x128xf32>
    %c8_i32 = arith.constant 8 : i32
    %7 = arith.muli %arg1, %c8_i32 : i32
    %c0_8 = arith.constant 0 : index
    %c0_9 = arith.constant 0 : index
    %c0_10 = arith.constant 0 : index
    %8 = vector.load %arg2[%c0_8, %c0_9, %c0_10] : memref<8x8x384xf32, #tpu.memory_space<vmem>>, vector<8x1x384xf32>
    %9 = vector.shape_cast %8 : vector<8x1x384xf32> to vector<8x384xf32>
    %cst = arith.constant dense<0.000000e+00> : vector<8x384xf32>
    %10 = tpu.matmul %6, %4, %cst {dimension_numbers = #tpu.dot_dimension_numbers<[1], [0], [0], [1], [0, 0, 1, 1], [], []>} : vector<8x128xf32>, vector<128x384xf32>, vector<8x384xf32> -> vector<8x384xf32>
    %11 = vector.broadcast %5 : vector<1x384xf32> to vector<8x384xf32>
    %12 = arith.addf %10, %11 : vector<8x384xf32>
    %13 = vector.extract_strided_slice %9 {offsets = [0, 0], sizes = [8, 128], strides = [1, 1]} : vector<8x384xf32> to vector<8x128xf32>
    %14 = vector.extract_strided_slice %12 {offsets = [0, 0], sizes = [8, 128], strides = [1, 1]} : vector<8x384xf32> to vector<8x128xf32>
    %15 = arith.addf %13, %14 : vector<8x128xf32>
    %16 = arith.negf %15 : vector<8x128xf32>
    %17 = math.exp %16 : vector<8x128xf32>
    %cst_11 = arith.constant 1.000000e+00 : f32
    %18 = vector.broadcast %cst_11 : f32 to vector<8x128xf32>
    %19 = arith.addf %18, %17 : vector<8x128xf32>
    %20 = arith.divf %18, %19 : vector<8x128xf32>
    %21 = vector.extract_strided_slice %9 {offsets = [0, 128], sizes = [8, 128], strides = [1, 1]} : vector<8x384xf32> to vector<8x128xf32>
    %22 = vector.extract_strided_slice %12 {offsets = [0, 128], sizes = [8, 128], strides = [1, 1]} : vector<8x384xf32> to vector<8x128xf32>
    %23 = arith.addf %21, %22 : vector<8x128xf32>
    %24 = arith.negf %23 : vector<8x128xf32>
    %25 = math.exp %24 : vector<8x128xf32>
    %cst_12 = arith.constant 1.000000e+00 : f32
    %26 = vector.broadcast %cst_12 : f32 to vector<8x128xf32>
    %27 = arith.addf %26, %25 : vector<8x128xf32>
    %28 = arith.divf %26, %27 : vector<8x128xf32>
    %29 = vector.extract_strided_slice %9 {offsets = [0, 256], sizes = [8, 128], strides = [1, 1]} : vector<8x384xf32> to vector<8x128xf32>
    %30 = vector.extract_strided_slice %12 {offsets = [0, 256], sizes = [8, 128], strides = [1, 1]} : vector<8x384xf32> to vector<8x128xf32>
    %31 = arith.mulf %20, %30 : vector<8x128xf32>
    %32 = arith.addf %29, %31 : vector<8x128xf32>
    %33 = math.tanh %32 : vector<8x128xf32>
    %cst_13 = arith.constant 1.000000e+00 : f32
    %34 = vector.broadcast %cst_13 : f32 to vector<8x128xf32>
    %35 = arith.subf %34, %28 : vector<8x128xf32>
    %36 = arith.mulf %35, %33 : vector<8x128xf32>
    %37 = arith.mulf %28, %6 : vector<8x128xf32>
    %38 = arith.addf %36, %37 : vector<8x128xf32>
    %c0_i32_14 = arith.constant 0 : i32
    %39 = arith.addi %7, %c0_i32_14 : i32
    %40 = vector.broadcast %39 : i32 to vector<8x1xi32>
    %41 = arith.cmpi sgt, %3, %40 : vector<8x1xi32>
    %42 = arith.extui %41 : vector<8x1xi1> to vector<8x1xi32>
    %43 = arith.sitofp %42 : vector<8x1xi32> to vector<8x1xf32>
    %44 = vector.broadcast %43 : vector<8x1xf32> to vector<8x128xf32>
    %45 = arith.mulf %38, %44 : vector<8x128xf32>
    %46 = arith.mulf %45, %45 : vector<8x128xf32>
    %cst_15 = arith.constant dense<0.000000e+00> : vector<8xf32>
    %47 = vector.multi_reduction <add>, %46, %cst_15 [1] : vector<8x128xf32> to vector<8xf32>
    %48 = vector.shape_cast %47 : vector<8xf32> to vector<8x1xf32>
    %49 = math.sqrt %48 : vector<8x1xf32>
    %cst_16 = arith.constant 9.99999993E-9 : f32
    %50 = vector.broadcast %cst_16 : f32 to vector<8x1xf32>
    %51 = arith.addf %49, %50 : vector<8x1xf32>
    %52 = tpu.reciprocal %51 {approx = true} : vector<8x1xf32> -> vector<8x1xf32>
    %53 = arith.mulf %51, %52 : vector<8x1xf32>
    %cst_17 = arith.constant 2.000000e+00 : f32
    %54 = vector.broadcast %cst_17 : f32 to vector<8x1xf32>
    %55 = arith.subf %54, %53 : vector<8x1xf32>
    %56 = arith.mulf %52, %55 : vector<8x1xf32>
    %57 = vector.broadcast %56 : vector<8x1xf32> to vector<8x128xf32>
    %58 = arith.mulf %45, %57 : vector<8x128xf32>
    %c0_18 = arith.constant 0 : index
    %c0_19 = arith.constant 0 : index
    %c0_20 = arith.constant 0 : index
    %59 = vector.load %arg6[%c0_18, %c0_19, %c0_20] : memref<8x8x128xf32, #tpu.memory_space<vmem>>, vector<8x1x128xf32>
    %60 = vector.shape_cast %59 : vector<8x1x128xf32> to vector<8x128xf32>
    %61 = vector.shape_cast %58 : vector<8x128xf32> to vector<8x1x128xf32>
    tpu.vector_store %arg6[%c0_18, %c0_19, %c0_20], %61 {strides = array<i32>} : memref<8x8x128xf32, #tpu.memory_space<vmem>>, vector<8x1x128xf32>,
    %c0_21 = arith.constant 0 : index
    %c1 = arith.constant 1 : index
    %c0_22 = arith.constant 0 : index
    %62 = vector.load %arg2[%c0_21, %c1, %c0_22] : memref<8x8x384xf32, #tpu.memory_space<vmem>>, vector<8x1x384xf32>
    %63 = vector.shape_cast %62 : vector<8x1x384xf32> to vector<8x384xf32>
    %cst_23 = arith.constant dense<0.000000e+00> : vector<8x384xf32>
    %64 = tpu.matmul %38, %4, %cst_23 {dimension_numbers = #tpu.dot_dimension_numbers<[1], [0], [0], [1], [0, 0, 1, 1], [], []>} : vector<8x128xf32>, vector<128x384xf32>, vector<8x384xf32> -> vector<8x384xf32>
    %65 = vector.broadcast %5 : vector<1x384xf32> to vector<8x384xf32>
    %66 = arith.addf %64, %65 : vector<8x384xf32>
    %67 = vector.extract_strided_slice %63 {offsets = [0, 0], sizes = [8, 128], strides = [1, 1]} : vector<8x384xf32> to vector<8x128xf32>
    %68 = vector.extract_strided_slice %66 {offsets = [0, 0], sizes = [8, 128], strides = [1, 1]} : vector<8x384xf32> to vector<8x128xf32>
    %69 = arith.addf %67, %68 : vector<8x128xf32>
    %70 = arith.negf %69 : vector<8x128xf32>
    %71 = math.exp %70 : vector<8x128xf32>
    %cst_24 = arith.constant 1.000000e+00 : f32
    %72 = vector.broadcast %cst_24 : f32 to vector<8x128xf32>
    %73 = arith.addf %72, %71 : vector<8x128xf32>
    %74 = arith.divf %72, %73 : vector<8x128xf32>
    %75 = vector.extract_strided_slice %63 {offsets = [0, 128], sizes = [8, 128], strides = [1, 1]} : vector<8x384xf32> to vector<8x128xf32>
    %76 = vector.extract_strided_slice %66 {offsets = [0, 128], sizes = [8, 128], strides = [1, 1]} : vector<8x384xf32> to vector<8x128xf32>
    %77 = arith.addf %75, %76 : vector<8x128xf32>
    %78 = arith.negf %77 : vector<8x128xf32>
    %79 = math.exp %78 : vector<8x128xf32>
    %cst_25 = arith.constant 1.000000e+00 : f32
    %80 = vector.broadcast %cst_25 : f32 to vector<8x128xf32>
    %81 = arith.addf %80, %79 : vector<8x128xf32>
    %82 = arith.divf %80, %81 : vector<8x128xf32>
    %83 = vector.extract_strided_slice %63 {offsets = [0, 256], sizes = [8, 128], strides = [1, 1]} : vector<8x384xf32> to vector<8x128xf32>
    %84 = vector.extract_strided_slice %66 {offsets = [0, 256], sizes = [8, 128], strides = [1, 1]} : vector<8x384xf32> to vector<8x128xf32>
    %85 = arith.mulf %74, %84 : vector<8x128xf32>
    %86 = arith.addf %83, %85 : vector<8x128xf32>
    %87 = math.tanh %86 : vector<8x128xf32>
    %cst_26 = arith.constant 1.000000e+00 : f32
    %88 = vector.broadcast %cst_26 : f32 to vector<8x128xf32>
    %89 = arith.subf %88, %82 : vector<8x128xf32>
    %90 = arith.mulf %89, %87 : vector<8x128xf32>
    %91 = arith.mulf %82, %38 : vector<8x128xf32>
    %92 = arith.addf %90, %91 : vector<8x128xf32>
    %c1_i32 = arith.constant 1 : i32
    %93 = arith.addi %7, %c1_i32 : i32
    %94 = vector.broadcast %93 : i32 to vector<8x1xi32>
    %95 = arith.cmpi sgt, %3, %94 : vector<8x1xi32>
    %96 = arith.extui %95 : vector<8x1xi1> to vector<8x1xi32>
    %97 = arith.sitofp %96 : vector<8x1xi32> to vector<8x1xf32>
    %98 = vector.broadcast %97 : vector<8x1xf32> to vector<8x128xf32>
    %99 = arith.mulf %92, %98 : vector<8x128xf32>
    %100 = arith.mulf %99, %99 : vector<8x128xf32>
    %cst_27 = arith.constant dense<0.000000e+00> : vector<8xf32>
    %101 = vector.multi_reduction <add>, %100, %cst_27 [1] : vector<8x128xf32> to vector<8xf32>
    %102 = vector.shape_cast %101 : vector<8xf32> to vector<8x1xf32>
    %103 = math.sqrt %102 : vector<8x1xf32>
    %cst_28 = arith.constant 9.99999993E-9 : f32
    %104 = vector.broadcast %cst_28 : f32 to vector<8x1xf32>
    %105 = arith.addf %103, %104 : vector<8x1xf32>
    %106 = tpu.reciprocal %105 {approx = true} : vector<8x1xf32> -> vector<8x1xf32>
    %107 = arith.mulf %105, %106 : vector<8x1xf32>
    %cst_29 = arith.constant 2.000000e+00 : f32
    %108 = vector.broadcast %cst_29 : f32 to vector<8x1xf32>
    %109 = arith.subf %108, %107 : vector<8x1xf32>
    %110 = arith.mulf %106, %109 : vector<8x1xf32>
    %111 = vector.broadcast %110 : vector<8x1xf32> to vector<8x128xf32>
    %112 = arith.mulf %99, %111 : vector<8x128xf32>
    %c0_30 = arith.constant 0 : index
    %c1_31 = arith.constant 1 : index
    %c0_32 = arith.constant 0 : index
    %113 = vector.load %arg6[%c0_30, %c1_31, %c0_32] : memref<8x8x128xf32, #tpu.memory_space<vmem>>, vector<8x1x128xf32>
    %114 = vector.shape_cast %113 : vector<8x1x128xf32> to vector<8x128xf32>
    %115 = vector.shape_cast %112 : vector<8x128xf32> to vector<8x1x128xf32>
    tpu.vector_store %arg6[%c0_30, %c1_31, %c0_32], %115 {strides = array<i32>} : memref<8x8x128xf32, #tpu.memory_space<vmem>>, vector<8x1x128xf32>,
    %c0_33 = arith.constant 0 : index
    %c2 = arith.constant 2 : index
    %c0_34 = arith.constant 0 : index
    %116 = vector.load %arg2[%c0_33, %c2, %c0_34] : memref<8x8x384xf32, #tpu.memory_space<vmem>>, vector<8x1x384xf32>
    %117 = vector.shape_cast %116 : vector<8x1x384xf32> to vector<8x384xf32>
    %cst_35 = arith.constant dense<0.000000e+00> : vector<8x384xf32>
    %118 = tpu.matmul %92, %4, %cst_35 {dimension_numbers = #tpu.dot_dimension_numbers<[1], [0], [0], [1], [0, 0, 1, 1], [], []>} : vector<8x128xf32>, vector<128x384xf32>, vector<8x384xf32> -> vector<8x384xf32>
    %119 = vector.broadcast %5 : vector<1x384xf32> to vector<8x384xf32>
    %120 = arith.addf %118, %119 : vector<8x384xf32>
    %121 = vector.extract_strided_slice %117 {offsets = [0, 0], sizes = [8, 128], strides = [1, 1]} : vector<8x384xf32> to vector<8x128xf32>
    %122 = vector.extract_strided_slice %120 {offsets = [0, 0], sizes = [8, 128], strides = [1, 1]} : vector<8x384xf32> to vector<8x128xf32>
    %123 = arith.addf %121, %122 : vector<8x128xf32>
    %124 = arith.negf %123 : vector<8x128xf32>
    %125 = math.exp %124 : vector<8x128xf32>
    %cst_36 = arith.constant 1.000000e+00 : f32
    %126 = vector.broadcast %cst_36 : f32 to vector<8x128xf32>
    %127 = arith.addf %126, %125 : vector<8x128xf32>
    %128 = arith.divf %126, %127 : vector<8x128xf32>
    %129 = vector.extract_strided_slice %117 {offsets = [0, 128], sizes = [8, 128], strides = [1, 1]} : vector<8x384xf32> to vector<8x128xf32>
    %130 = vector.extract_strided_slice %120 {offsets = [0, 128], sizes = [8, 128], strides = [1, 1]} : vector<8x384xf32> to vector<8x128xf32>
    %131 = arith.addf %129, %130 : vector<8x128xf32>
    %132 = arith.negf %131 : vector<8x128xf32>
    %133 = math.exp %132 : vector<8x128xf32>
    %cst_37 = arith.constant 1.000000e+00 : f32
    %134 = vector.broadcast %cst_37 : f32 to vector<8x128xf32>
    %135 = arith.addf %134, %133 : vector<8x128xf32>
    %136 = arith.divf %134, %135 : vector<8x128xf32>
    %137 = vector.extract_strided_slice %117 {offsets = [0, 256], sizes = [8, 128], strides = [1, 1]} : vector<8x384xf32> to vector<8x128xf32>
    %138 = vector.extract_strided_slice %120 {offsets = [0, 256], sizes = [8, 128], strides = [1, 1]} : vector<8x384xf32> to vector<8x128xf32>
    %139 = arith.mulf %128, %138 : vector<8x128xf32>
    %140 = arith.addf %137, %139 : vector<8x128xf32>
    %141 = math.tanh %140 : vector<8x128xf32>
    %cst_38 = arith.constant 1.000000e+00 : f32
    %142 = vector.broadcast %cst_38 : f32 to vector<8x128xf32>
    %143 = arith.subf %142, %136 : vector<8x128xf32>
    %144 = arith.mulf %143, %141 : vector<8x128xf32>
    %145 = arith.mulf %136, %92 : vector<8x128xf32>
    %146 = arith.addf %144, %145 : vector<8x128xf32>
    %c2_i32 = arith.constant 2 : i32
    %147 = arith.addi %7, %c2_i32 : i32
    %148 = vector.broadcast %147 : i32 to vector<8x1xi32>
    %149 = arith.cmpi sgt, %3, %148 : vector<8x1xi32>
    %150 = arith.extui %149 : vector<8x1xi1> to vector<8x1xi32>
    %151 = arith.sitofp %150 : vector<8x1xi32> to vector<8x1xf32>
    %152 = vector.broadcast %151 : vector<8x1xf32> to vector<8x128xf32>
    %153 = arith.mulf %146, %152 : vector<8x128xf32>
    %154 = arith.mulf %153, %153 : vector<8x128xf32>
    %cst_39 = arith.constant dense<0.000000e+00> : vector<8xf32>
    %155 = vector.multi_reduction <add>, %154, %cst_39 [1] : vector<8x128xf32> to vector<8xf32>
    %156 = vector.shape_cast %155 : vector<8xf32> to vector<8x1xf32>
    %157 = math.sqrt %156 : vector<8x1xf32>
    %cst_40 = arith.constant 9.99999993E-9 : f32
    %158 = vector.broadcast %cst_40 : f32 to vector<8x1xf32>
    %159 = arith.addf %157, %158 : vector<8x1xf32>
    %160 = tpu.reciprocal %159 {approx = true} : vector<8x1xf32> -> vector<8x1xf32>
    %161 = arith.mulf %159, %160 : vector<8x1xf32>
    %cst_41 = arith.constant 2.000000e+00 : f32
    %162 = vector.broadcast %cst_41 : f32 to vector<8x1xf32>
    %163 = arith.subf %162, %161 : vector<8x1xf32>
    %164 = arith.mulf %160, %163 : vector<8x1xf32>
    %165 = vector.broadcast %164 : vector<8x1xf32> to vector<8x128xf32>
    %166 = arith.mulf %153, %165 : vector<8x128xf32>
    %c0_42 = arith.constant 0 : index
    %c2_43 = arith.constant 2 : index
    %c0_44 = arith.constant 0 : index
    %167 = vector.load %arg6[%c0_42, %c2_43, %c0_44] : memref<8x8x128xf32, #tpu.memory_space<vmem>>, vector<8x1x128xf32>
    %168 = vector.shape_cast %167 : vector<8x1x128xf32> to vector<8x128xf32>
    %169 = vector.shape_cast %166 : vector<8x128xf32> to vector<8x1x128xf32>
    tpu.vector_store %arg6[%c0_42, %c2_43, %c0_44], %169 {strides = array<i32>} : memref<8x8x128xf32, #tpu.memory_space<vmem>>, vector<8x1x128xf32>,
    %c0_45 = arith.constant 0 : index
    %c3 = arith.constant 3 : index
    %c0_46 = arith.constant 0 : index
    %170 = vector.load %arg2[%c0_45, %c3, %c0_46] : memref<8x8x384xf32, #tpu.memory_space<vmem>>, vector<8x1x384xf32>
    %171 = vector.shape_cast %170 : vector<8x1x384xf32> to vector<8x384xf32>
    %cst_47 = arith.constant dense<0.000000e+00> : vector<8x384xf32>
    %172 = tpu.matmul %146, %4, %cst_47 {dimension_numbers = #tpu.dot_dimension_numbers<[1], [0], [0], [1], [0, 0, 1, 1], [], []>} : vector<8x128xf32>, vector<128x384xf32>, vector<8x384xf32> -> vector<8x384xf32>
    %173 = vector.broadcast %5 : vector<1x384xf32> to vector<8x384xf32>
    %174 = arith.addf %172, %173 : vector<8x384xf32>
    %175 = vector.extract_strided_slice %171 {offsets = [0, 0], sizes = [8, 128], strides = [1, 1]} : vector<8x384xf32> to vector<8x128xf32>
    %176 = vector.extract_strided_slice %174 {offsets = [0, 0], sizes = [8, 128], strides = [1, 1]} : vector<8x384xf32> to vector<8x128xf32>
    %177 = arith.addf %175, %176 : vector<8x128xf32>
    %178 = arith.negf %177 : vector<8x128xf32>
    %179 = math.exp %178 : vector<8x128xf32>
    %cst_48 = arith.constant 1.000000e+00 : f32
    %180 = vector.broadcast %cst_48 : f32 to vector<8x128xf32>
    %181 = arith.addf %180, %179 : vector<8x128xf32>
    %182 = arith.divf %180, %181 : vector<8x128xf32>
    %183 = vector.extract_strided_slice %171 {offsets = [0, 128], sizes = [8, 128], strides = [1, 1]} : vector<8x384xf32> to vector<8x128xf32>
    %184 = vector.extract_strided_slice %174 {offsets = [0, 128], sizes = [8, 128], strides = [1, 1]} : vector<8x384xf32> to vector<8x128xf32>
    %185 = arith.addf %183, %184 : vector<8x128xf32>
    %186 = arith.negf %185 : vector<8x128xf32>
    %187 = math.exp %186 : vector<8x128xf32>
    %cst_49 = arith.constant 1.000000e+00 : f32
    %188 = vector.broadcast %cst_49 : f32 to vector<8x128xf32>
    %189 = arith.addf %188, %187 : vector<8x128xf32>
    %190 = arith.divf %188, %189 : vector<8x128xf32>
    %191 = vector.extract_strided_slice %171 {offsets = [0, 256], sizes = [8, 128], strides = [1, 1]} : vector<8x384xf32> to vector<8x128xf32>
    %192 = vector.extract_strided_slice %174 {offsets = [0, 256], sizes = [8, 128], strides = [1, 1]} : vector<8x384xf32> to vector<8x128xf32>
    %193 = arith.mulf %182, %192 : vector<8x128xf32>
    %194 = arith.addf %191, %193 : vector<8x128xf32>
    %195 = math.tanh %194 : vector<8x128xf32>
    %cst_50 = arith.constant 1.000000e+00 : f32
    %196 = vector.broadcast %cst_50 : f32 to vector<8x128xf32>
    %197 = arith.subf %196, %190 : vector<8x128xf32>
    %198 = arith.mulf %197, %195 : vector<8x128xf32>
    %199 = arith.mulf %190, %146 : vector<8x128xf32>
    %200 = arith.addf %198, %199 : vector<8x128xf32>
    %c3_i32 = arith.constant 3 : i32
    %201 = arith.addi %7, %c3_i32 : i32
    %202 = vector.broadcast %201 : i32 to vector<8x1xi32>
    %203 = arith.cmpi sgt, %3, %202 : vector<8x1xi32>
    %204 = arith.extui %203 : vector<8x1xi1> to vector<8x1xi32>
    %205 = arith.sitofp %204 : vector<8x1xi32> to vector<8x1xf32>
    %206 = vector.broadcast %205 : vector<8x1xf32> to vector<8x128xf32>
    %207 = arith.mulf %200, %206 : vector<8x128xf32>
    %208 = arith.mulf %207, %207 : vector<8x128xf32>
    %cst_51 = arith.constant dense<0.000000e+00> : vector<8xf32>
    %209 = vector.multi_reduction <add>, %208, %cst_51 [1] : vector<8x128xf32> to vector<8xf32>
    %210 = vector.shape_cast %209 : vector<8xf32> to vector<8x1xf32>
    %211 = math.sqrt %210 : vector<8x1xf32>
    %cst_52 = arith.constant 9.99999993E-9 : f32
    %212 = vector.broadcast %cst_52 : f32 to vector<8x1xf32>
    %213 = arith.addf %211, %212 : vector<8x1xf32>
    %214 = tpu.reciprocal %213 {approx = true} : vector<8x1xf32> -> vector<8x1xf32>
    %215 = arith.mulf %213, %214 : vector<8x1xf32>
    %cst_53 = arith.constant 2.000000e+00 : f32
    %216 = vector.broadcast %cst_53 : f32 to vector<8x1xf32>
    %217 = arith.subf %216, %215 : vector<8x1xf32>
    %218 = arith.mulf %214, %217 : vector<8x1xf32>
    %219 = vector.broadcast %218 : vector<8x1xf32> to vector<8x128xf32>
    %220 = arith.mulf %207, %219 : vector<8x128xf32>
    %c0_54 = arith.constant 0 : index
    %c3_55 = arith.constant 3 : index
    %c0_56 = arith.constant 0 : index
    %221 = vector.load %arg6[%c0_54, %c3_55, %c0_56] : memref<8x8x128xf32, #tpu.memory_space<vmem>>, vector<8x1x128xf32>
    %222 = vector.shape_cast %221 : vector<8x1x128xf32> to vector<8x128xf32>
    %223 = vector.shape_cast %220 : vector<8x128xf32> to vector<8x1x128xf32>
    tpu.vector_store %arg6[%c0_54, %c3_55, %c0_56], %223 {strides = array<i32>} : memref<8x8x128xf32, #tpu.memory_space<vmem>>, vector<8x1x128xf32>,
    %c0_57 = arith.constant 0 : index
    %c4 = arith.constant 4 : index
    %c0_58 = arith.constant 0 : index
    %224 = vector.load %arg2[%c0_57, %c4, %c0_58] : memref<8x8x384xf32, #tpu.memory_space<vmem>>, vector<8x1x384xf32>
    %225 = vector.shape_cast %224 : vector<8x1x384xf32> to vector<8x384xf32>
    %cst_59 = arith.constant dense<0.000000e+00> : vector<8x384xf32>
    %226 = tpu.matmul %200, %4, %cst_59 {dimension_numbers = #tpu.dot_dimension_numbers<[1], [0], [0], [1], [0, 0, 1, 1], [], []>} : vector<8x128xf32>, vector<128x384xf32>, vector<8x384xf32> -> vector<8x384xf32>
    %227 = vector.broadcast %5 : vector<1x384xf32> to vector<8x384xf32>
    %228 = arith.addf %226, %227 : vector<8x384xf32>
    %229 = vector.extract_strided_slice %225 {offsets = [0, 0], sizes = [8, 128], strides = [1, 1]} : vector<8x384xf32> to vector<8x128xf32>
    %230 = vector.extract_strided_slice %228 {offsets = [0, 0], sizes = [8, 128], strides = [1, 1]} : vector<8x384xf32> to vector<8x128xf32>
    %231 = arith.addf %229, %230 : vector<8x128xf32>
    %232 = arith.negf %231 : vector<8x128xf32>
    %233 = math.exp %232 : vector<8x128xf32>
    %cst_60 = arith.constant 1.000000e+00 : f32
    %234 = vector.broadcast %cst_60 : f32 to vector<8x128xf32>
    %235 = arith.addf %234, %233 : vector<8x128xf32>
    %236 = arith.divf %234, %235 : vector<8x128xf32>
    %237 = vector.extract_strided_slice %225 {offsets = [0, 128], sizes = [8, 128], strides = [1, 1]} : vector<8x384xf32> to vector<8x128xf32>
    %238 = vector.extract_strided_slice %228 {offsets = [0, 128], sizes = [8, 128], strides = [1, 1]} : vector<8x384xf32> to vector<8x128xf32>
    %239 = arith.addf %237, %238 : vector<8x128xf32>
    %240 = arith.negf %239 : vector<8x128xf32>
    %241 = math.exp %240 : vector<8x128xf32>
    %cst_61 = arith.constant 1.000000e+00 : f32
    %242 = vector.broadcast %cst_61 : f32 to vector<8x128xf32>
    %243 = arith.addf %242, %241 : vector<8x128xf32>
    %244 = arith.divf %242, %243 : vector<8x128xf32>
    %245 = vector.extract_strided_slice %225 {offsets = [0, 256], sizes = [8, 128], strides = [1, 1]} : vector<8x384xf32> to vector<8x128xf32>
    %246 = vector.extract_strided_slice %228 {offsets = [0, 256], sizes = [8, 128], strides = [1, 1]} : vector<8x384xf32> to vector<8x128xf32>
    %247 = arith.mulf %236, %246 : vector<8x128xf32>
    %248 = arith.addf %245, %247 : vector<8x128xf32>
    %249 = math.tanh %248 : vector<8x128xf32>
    %cst_62 = arith.constant 1.000000e+00 : f32
    %250 = vector.broadcast %cst_62 : f32 to vector<8x128xf32>
    %251 = arith.subf %250, %244 : vector<8x128xf32>
    %252 = arith.mulf %251, %249 : vector<8x128xf32>
    %253 = arith.mulf %244, %200 : vector<8x128xf32>
    %254 = arith.addf %252, %253 : vector<8x128xf32>
    %c4_i32 = arith.constant 4 : i32
    %255 = arith.addi %7, %c4_i32 : i32
    %256 = vector.broadcast %255 : i32 to vector<8x1xi32>
    %257 = arith.cmpi sgt, %3, %256 : vector<8x1xi32>
    %258 = arith.extui %257 : vector<8x1xi1> to vector<8x1xi32>
    %259 = arith.sitofp %258 : vector<8x1xi32> to vector<8x1xf32>
    %260 = vector.broadcast %259 : vector<8x1xf32> to vector<8x128xf32>
    %261 = arith.mulf %254, %260 : vector<8x128xf32>
    %262 = arith.mulf %261, %261 : vector<8x128xf32>
    %cst_63 = arith.constant dense<0.000000e+00> : vector<8xf32>
    %263 = vector.multi_reduction <add>, %262, %cst_63 [1] : vector<8x128xf32> to vector<8xf32>
    %264 = vector.shape_cast %263 : vector<8xf32> to vector<8x1xf32>
    %265 = math.sqrt %264 : vector<8x1xf32>
    %cst_64 = arith.constant 9.99999993E-9 : f32
    %266 = vector.broadcast %cst_64 : f32 to vector<8x1xf32>
    %267 = arith.addf %265, %266 : vector<8x1xf32>
    %268 = tpu.reciprocal %267 {approx = true} : vector<8x1xf32> -> vector<8x1xf32>
    %269 = arith.mulf %267, %268 : vector<8x1xf32>
    %cst_65 = arith.constant 2.000000e+00 : f32
    %270 = vector.broadcast %cst_65 : f32 to vector<8x1xf32>
    %271 = arith.subf %270, %269 : vector<8x1xf32>
    %272 = arith.mulf %268, %271 : vector<8x1xf32>
    %273 = vector.broadcast %272 : vector<8x1xf32> to vector<8x128xf32>
    %274 = arith.mulf %261, %273 : vector<8x128xf32>
    %c0_66 = arith.constant 0 : index
    %c4_67 = arith.constant 4 : index
    %c0_68 = arith.constant 0 : index
    %275 = vector.load %arg6[%c0_66, %c4_67, %c0_68] : memref<8x8x128xf32, #tpu.memory_space<vmem>>, vector<8x1x128xf32>
    %276 = vector.shape_cast %275 : vector<8x1x128xf32> to vector<8x128xf32>
    %277 = vector.shape_cast %274 : vector<8x128xf32> to vector<8x1x128xf32>
    tpu.vector_store %arg6[%c0_66, %c4_67, %c0_68], %277 {strides = array<i32>} : memref<8x8x128xf32, #tpu.memory_space<vmem>>, vector<8x1x128xf32>,
    %c0_69 = arith.constant 0 : index
    %c5 = arith.constant 5 : index
    %c0_70 = arith.constant 0 : index
    %278 = vector.load %arg2[%c0_69, %c5, %c0_70] : memref<8x8x384xf32, #tpu.memory_space<vmem>>, vector<8x1x384xf32>
    %279 = vector.shape_cast %278 : vector<8x1x384xf32> to vector<8x384xf32>
    %cst_71 = arith.constant dense<0.000000e+00> : vector<8x384xf32>
    %280 = tpu.matmul %254, %4, %cst_71 {dimension_numbers = #tpu.dot_dimension_numbers<[1], [0], [0], [1], [0, 0, 1, 1], [], []>} : vector<8x128xf32>, vector<128x384xf32>, vector<8x384xf32> -> vector<8x384xf32>
    %281 = vector.broadcast %5 : vector<1x384xf32> to vector<8x384xf32>
    %282 = arith.addf %280, %281 : vector<8x384xf32>
    %283 = vector.extract_strided_slice %279 {offsets = [0, 0], sizes = [8, 128], strides = [1, 1]} : vector<8x384xf32> to vector<8x128xf32>
    %284 = vector.extract_strided_slice %282 {offsets = [0, 0], sizes = [8, 128], strides = [1, 1]} : vector<8x384xf32> to vector<8x128xf32>
    %285 = arith.addf %283, %284 : vector<8x128xf32>
    %286 = arith.negf %285 : vector<8x128xf32>
    %287 = math.exp %286 : vector<8x128xf32>
    %cst_72 = arith.constant 1.000000e+00 : f32
    %288 = vector.broadcast %cst_72 : f32 to vector<8x128xf32>
    %289 = arith.addf %288, %287 : vector<8x128xf32>
    %290 = arith.divf %288, %289 : vector<8x128xf32>
    %291 = vector.extract_strided_slice %279 {offsets = [0, 128], sizes = [8, 128], strides = [1, 1]} : vector<8x384xf32> to vector<8x128xf32>
    %292 = vector.extract_strided_slice %282 {offsets = [0, 128], sizes = [8, 128], strides = [1, 1]} : vector<8x384xf32> to vector<8x128xf32>
    %293 = arith.addf %291, %292 : vector<8x128xf32>
    %294 = arith.negf %293 : vector<8x128xf32>
    %295 = math.exp %294 : vector<8x128xf32>
    %cst_73 = arith.constant 1.000000e+00 : f32
    %296 = vector.broadcast %cst_73 : f32 to vector<8x128xf32>
    %297 = arith.addf %296, %295 : vector<8x128xf32>
    %298 = arith.divf %296, %297 : vector<8x128xf32>
    %299 = vector.extract_strided_slice %279 {offsets = [0, 256], sizes = [8, 128], strides = [1, 1]} : vector<8x384xf32> to vector<8x128xf32>
    %300 = vector.extract_strided_slice %282 {offsets = [0, 256], sizes = [8, 128], strides = [1, 1]} : vector<8x384xf32> to vector<8x128xf32>
    %301 = arith.mulf %290, %300 : vector<8x128xf32>
    %302 = arith.addf %299, %301 : vector<8x128xf32>
    %303 = math.tanh %302 : vector<8x128xf32>
    %cst_74 = arith.constant 1.000000e+00 : f32
    %304 = vector.broadcast %cst_74 : f32 to vector<8x128xf32>
    %305 = arith.subf %304, %298 : vector<8x128xf32>
    %306 = arith.mulf %305, %303 : vector<8x128xf32>
    %307 = arith.mulf %298, %254 : vector<8x128xf32>
    %308 = arith.addf %306, %307 : vector<8x128xf32>
    %c5_i32 = arith.constant 5 : i32
    %309 = arith.addi %7, %c5_i32 : i32
    %310 = vector.broadcast %309 : i32 to vector<8x1xi32>
    %311 = arith.cmpi sgt, %3, %310 : vector<8x1xi32>
    %312 = arith.extui %311 : vector<8x1xi1> to vector<8x1xi32>
    %313 = arith.sitofp %312 : vector<8x1xi32> to vector<8x1xf32>
    %314 = vector.broadcast %313 : vector<8x1xf32> to vector<8x128xf32>
    %315 = arith.mulf %308, %314 : vector<8x128xf32>
    %316 = arith.mulf %315, %315 : vector<8x128xf32>
    %cst_75 = arith.constant dense<0.000000e+00> : vector<8xf32>
    %317 = vector.multi_reduction <add>, %316, %cst_75 [1] : vector<8x128xf32> to vector<8xf32>
    %318 = vector.shape_cast %317 : vector<8xf32> to vector<8x1xf32>
    %319 = math.sqrt %318 : vector<8x1xf32>
    %cst_76 = arith.constant 9.99999993E-9 : f32
    %320 = vector.broadcast %cst_76 : f32 to vector<8x1xf32>
    %321 = arith.addf %319, %320 : vector<8x1xf32>
    %322 = tpu.reciprocal %321 {approx = true} : vector<8x1xf32> -> vector<8x1xf32>
    %323 = arith.mulf %321, %322 : vector<8x1xf32>
    %cst_77 = arith.constant 2.000000e+00 : f32
    %324 = vector.broadcast %cst_77 : f32 to vector<8x1xf32>
    %325 = arith.subf %324, %323 : vector<8x1xf32>
    %326 = arith.mulf %322, %325 : vector<8x1xf32>
    %327 = vector.broadcast %326 : vector<8x1xf32> to vector<8x128xf32>
    %328 = arith.mulf %315, %327 : vector<8x128xf32>
    %c0_78 = arith.constant 0 : index
    %c5_79 = arith.constant 5 : index
    %c0_80 = arith.constant 0 : index
    %329 = vector.load %arg6[%c0_78, %c5_79, %c0_80] : memref<8x8x128xf32, #tpu.memory_space<vmem>>, vector<8x1x128xf32>
    %330 = vector.shape_cast %329 : vector<8x1x128xf32> to vector<8x128xf32>
    %331 = vector.shape_cast %328 : vector<8x128xf32> to vector<8x1x128xf32>
    tpu.vector_store %arg6[%c0_78, %c5_79, %c0_80], %331 {strides = array<i32>} : memref<8x8x128xf32, #tpu.memory_space<vmem>>, vector<8x1x128xf32>,
    %c0_81 = arith.constant 0 : index
    %c6 = arith.constant 6 : index
    %c0_82 = arith.constant 0 : index
    %332 = vector.load %arg2[%c0_81, %c6, %c0_82] : memref<8x8x384xf32, #tpu.memory_space<vmem>>, vector<8x1x384xf32>
    %333 = vector.shape_cast %332 : vector<8x1x384xf32> to vector<8x384xf32>
    %cst_83 = arith.constant dense<0.000000e+00> : vector<8x384xf32>
    %334 = tpu.matmul %308, %4, %cst_83 {dimension_numbers = #tpu.dot_dimension_numbers<[1], [0], [0], [1], [0, 0, 1, 1], [], []>} : vector<8x128xf32>, vector<128x384xf32>, vector<8x384xf32> -> vector<8x384xf32>
    %335 = vector.broadcast %5 : vector<1x384xf32> to vector<8x384xf32>
    %336 = arith.addf %334, %335 : vector<8x384xf32>
    %337 = vector.extract_strided_slice %333 {offsets = [0, 0], sizes = [8, 128], strides = [1, 1]} : vector<8x384xf32> to vector<8x128xf32>
    %338 = vector.extract_strided_slice %336 {offsets = [0, 0], sizes = [8, 128], strides = [1, 1]} : vector<8x384xf32> to vector<8x128xf32>
    %339 = arith.addf %337, %338 : vector<8x128xf32>
    %340 = arith.negf %339 : vector<8x128xf32>
    %341 = math.exp %340 : vector<8x128xf32>
    %cst_84 = arith.constant 1.000000e+00 : f32
    %342 = vector.broadcast %cst_84 : f32 to vector<8x128xf32>
    %343 = arith.addf %342, %341 : vector<8x128xf32>
    %344 = arith.divf %342, %343 : vector<8x128xf32>
    %345 = vector.extract_strided_slice %333 {offsets = [0, 128], sizes = [8, 128], strides = [1, 1]} : vector<8x384xf32> to vector<8x128xf32>
    %346 = vector.extract_strided_slice %336 {offsets = [0, 128], sizes = [8, 128], strides = [1, 1]} : vector<8x384xf32> to vector<8x128xf32>
    %347 = arith.addf %345, %346 : vector<8x128xf32>
    %348 = arith.negf %347 : vector<8x128xf32>
    %349 = math.exp %348 : vector<8x128xf32>
    %cst_85 = arith.constant 1.000000e+00 : f32
    %350 = vector.broadcast %cst_85 : f32 to vector<8x128xf32>
    %351 = arith.addf %350, %349 : vector<8x128xf32>
    %352 = arith.divf %350, %351 : vector<8x128xf32>
    %353 = vector.extract_strided_slice %333 {offsets = [0, 256], sizes = [8, 128], strides = [1, 1]} : vector<8x384xf32> to vector<8x128xf32>
    %354 = vector.extract_strided_slice %336 {offsets = [0, 256], sizes = [8, 128], strides = [1, 1]} : vector<8x384xf32> to vector<8x128xf32>
    %355 = arith.mulf %344, %354 : vector<8x128xf32>
    %356 = arith.addf %353, %355 : vector<8x128xf32>
    %357 = math.tanh %356 : vector<8x128xf32>
    %cst_86 = arith.constant 1.000000e+00 : f32
    %358 = vector.broadcast %cst_86 : f32 to vector<8x128xf32>
    %359 = arith.subf %358, %352 : vector<8x128xf32>
    %360 = arith.mulf %359, %357 : vector<8x128xf32>
    %361 = arith.mulf %352, %308 : vector<8x128xf32>
    %362 = arith.addf %360, %361 : vector<8x128xf32>
    %c6_i32 = arith.constant 6 : i32
    %363 = arith.addi %7, %c6_i32 : i32
    %364 = vector.broadcast %363 : i32 to vector<8x1xi32>
    %365 = arith.cmpi sgt, %3, %364 : vector<8x1xi32>
    %366 = arith.extui %365 : vector<8x1xi1> to vector<8x1xi32>
    %367 = arith.sitofp %366 : vector<8x1xi32> to vector<8x1xf32>
    %368 = vector.broadcast %367 : vector<8x1xf32> to vector<8x128xf32>
    %369 = arith.mulf %362, %368 : vector<8x128xf32>
    %370 = arith.mulf %369, %369 : vector<8x128xf32>
    %cst_87 = arith.constant dense<0.000000e+00> : vector<8xf32>
    %371 = vector.multi_reduction <add>, %370, %cst_87 [1] : vector<8x128xf32> to vector<8xf32>
    %372 = vector.shape_cast %371 : vector<8xf32> to vector<8x1xf32>
    %373 = math.sqrt %372 : vector<8x1xf32>
    %cst_88 = arith.constant 9.99999993E-9 : f32
    %374 = vector.broadcast %cst_88 : f32 to vector<8x1xf32>
    %375 = arith.addf %373, %374 : vector<8x1xf32>
    %376 = tpu.reciprocal %375 {approx = true} : vector<8x1xf32> -> vector<8x1xf32>
    %377 = arith.mulf %375, %376 : vector<8x1xf32>
    %cst_89 = arith.constant 2.000000e+00 : f32
    %378 = vector.broadcast %cst_89 : f32 to vector<8x1xf32>
    %379 = arith.subf %378, %377 : vector<8x1xf32>
    %380 = arith.mulf %376, %379 : vector<8x1xf32>
    %381 = vector.broadcast %380 : vector<8x1xf32> to vector<8x128xf32>
    %382 = arith.mulf %369, %381 : vector<8x128xf32>
    %c0_90 = arith.constant 0 : index
    %c6_91 = arith.constant 6 : index
    %c0_92 = arith.constant 0 : index
    %383 = vector.load %arg6[%c0_90, %c6_91, %c0_92] : memref<8x8x128xf32, #tpu.memory_space<vmem>>, vector<8x1x128xf32>
    %384 = vector.shape_cast %383 : vector<8x1x128xf32> to vector<8x128xf32>
    %385 = vector.shape_cast %382 : vector<8x128xf32> to vector<8x1x128xf32>
    tpu.vector_store %arg6[%c0_90, %c6_91, %c0_92], %385 {strides = array<i32>} : memref<8x8x128xf32, #tpu.memory_space<vmem>>, vector<8x1x128xf32>,
    %c0_93 = arith.constant 0 : index
    %c7 = arith.constant 7 : index
    %c0_94 = arith.constant 0 : index
    %386 = vector.load %arg2[%c0_93, %c7, %c0_94] : memref<8x8x384xf32, #tpu.memory_space<vmem>>, vector<8x1x384xf32>
    %387 = vector.shape_cast %386 : vector<8x1x384xf32> to vector<8x384xf32>
    %cst_95 = arith.constant dense<0.000000e+00> : vector<8x384xf32>
    %388 = tpu.matmul %362, %4, %cst_95 {dimension_numbers = #tpu.dot_dimension_numbers<[1], [0], [0], [1], [0, 0, 1, 1], [], []>} : vector<8x128xf32>, vector<128x384xf32>, vector<8x384xf32> -> vector<8x384xf32>
    %389 = vector.broadcast %5 : vector<1x384xf32> to vector<8x384xf32>
    %390 = arith.addf %388, %389 : vector<8x384xf32>
    %391 = vector.extract_strided_slice %387 {offsets = [0, 0], sizes = [8, 128], strides = [1, 1]} : vector<8x384xf32> to vector<8x128xf32>
    %392 = vector.extract_strided_slice %390 {offsets = [0, 0], sizes = [8, 128], strides = [1, 1]} : vector<8x384xf32> to vector<8x128xf32>
    %393 = arith.addf %391, %392 : vector<8x128xf32>
    %394 = arith.negf %393 : vector<8x128xf32>
    %395 = math.exp %394 : vector<8x128xf32>
    %cst_96 = arith.constant 1.000000e+00 : f32
    %396 = vector.broadcast %cst_96 : f32 to vector<8x128xf32>
    %397 = arith.addf %396, %395 : vector<8x128xf32>
    %398 = arith.divf %396, %397 : vector<8x128xf32>
    %399 = vector.extract_strided_slice %387 {offsets = [0, 128], sizes = [8, 128], strides = [1, 1]} : vector<8x384xf32> to vector<8x128xf32>
    %400 = vector.extract_strided_slice %390 {offsets = [0, 128], sizes = [8, 128], strides = [1, 1]} : vector<8x384xf32> to vector<8x128xf32>
    %401 = arith.addf %399, %400 : vector<8x128xf32>
    %402 = arith.negf %401 : vector<8x128xf32>
    %403 = math.exp %402 : vector<8x128xf32>
    %cst_97 = arith.constant 1.000000e+00 : f32
    %404 = vector.broadcast %cst_97 : f32 to vector<8x128xf32>
    %405 = arith.addf %404, %403 : vector<8x128xf32>
    %406 = arith.divf %404, %405 : vector<8x128xf32>
    %407 = vector.extract_strided_slice %387 {offsets = [0, 256], sizes = [8, 128], strides = [1, 1]} : vector<8x384xf32> to vector<8x128xf32>
    %408 = vector.extract_strided_slice %390 {offsets = [0, 256], sizes = [8, 128], strides = [1, 1]} : vector<8x384xf32> to vector<8x128xf32>
    %409 = arith.mulf %398, %408 : vector<8x128xf32>
    %410 = arith.addf %407, %409 : vector<8x128xf32>
    %411 = math.tanh %410 : vector<8x128xf32>
    %cst_98 = arith.constant 1.000000e+00 : f32
    %412 = vector.broadcast %cst_98 : f32 to vector<8x128xf32>
    %413 = arith.subf %412, %406 : vector<8x128xf32>
    %414 = arith.mulf %413, %411 : vector<8x128xf32>
    %415 = arith.mulf %406, %362 : vector<8x128xf32>
    %416 = arith.addf %414, %415 : vector<8x128xf32>
    %c7_i32 = arith.constant 7 : i32
    %417 = arith.addi %7, %c7_i32 : i32
    %418 = vector.broadcast %417 : i32 to vector<8x1xi32>
    %419 = arith.cmpi sgt, %3, %418 : vector<8x1xi32>
    %420 = arith.extui %419 : vector<8x1xi1> to vector<8x1xi32>
    %421 = arith.sitofp %420 : vector<8x1xi32> to vector<8x1xf32>
    %422 = vector.broadcast %421 : vector<8x1xf32> to vector<8x128xf32>
    %423 = arith.mulf %416, %422 : vector<8x128xf32>
    %424 = arith.mulf %423, %423 : vector<8x128xf32>
    %cst_99 = arith.constant dense<0.000000e+00> : vector<8xf32>
    %425 = vector.multi_reduction <add>, %424, %cst_99 [1] : vector<8x128xf32> to vector<8xf32>
    %426 = vector.shape_cast %425 : vector<8xf32> to vector<8x1xf32>
    %427 = math.sqrt %426 : vector<8x1xf32>
    %cst_100 = arith.constant 9.99999993E-9 : f32
    %428 = vector.broadcast %cst_100 : f32 to vector<8x1xf32>
    %429 = arith.addf %427, %428 : vector<8x1xf32>
    %430 = tpu.reciprocal %429 {approx = true} : vector<8x1xf32> -> vector<8x1xf32>
    %431 = arith.mulf %429, %430 : vector<8x1xf32>
    %cst_101 = arith.constant 2.000000e+00 : f32
    %432 = vector.broadcast %cst_101 : f32 to vector<8x1xf32>
    %433 = arith.subf %432, %431 : vector<8x1xf32>
    %434 = arith.mulf %430, %433 : vector<8x1xf32>
    %435 = vector.broadcast %434 : vector<8x1xf32> to vector<8x128xf32>
    %436 = arith.mulf %423, %435 : vector<8x128xf32>
    %c0_102 = arith.constant 0 : index
    %c7_103 = arith.constant 7 : index
    %c0_104 = arith.constant 0 : index
    %437 = vector.load %arg6[%c0_102, %c7_103, %c0_104] : memref<8x8x128xf32, #tpu.memory_space<vmem>>, vector<8x1x128xf32>
    %438 = vector.shape_cast %437 : vector<8x1x128xf32> to vector<8x128xf32>
    %439 = vector.shape_cast %436 : vector<8x128xf32> to vector<8x1x128xf32>
    tpu.vector_store %arg6[%c0_102, %c7_103, %c0_104], %439 {strides = array<i32>} : memref<8x8x128xf32, #tpu.memory_space<vmem>>, vector<8x1x128xf32>,
    %c0_105 = arith.constant 0 : index
    %c0_106 = arith.constant 0 : index
    %440 = vector.load %arg7[%c0_105, %c0_106] : memref<8x128xf32, #tpu.memory_space<vmem>>, vector<8x128xf32>
    tpu.vector_store %arg7[%c0_105, %c0_106], %416 {strides = array<i32>} : memref<8x128xf32, #tpu.memory_space<vmem>>, vector<8x128xf32>,
    return
  }
  func.func @transform_0(%arg0: i32, %arg1: i32) -> (i32, i32, i32) {
    %c0_i32 = arith.constant 0 : i32
    %c0_i32_0 = arith.constant 0 : i32
    return %arg0, %arg1, %c0_i32 : i32, i32, i32
  }
  func.func @transform_1(%arg0: i32, %arg1: i32) -> (i32, i32) {
    %c0_i32 = arith.constant 0 : i32
    %c0_i32_0 = arith.constant 0 : i32
    return %arg0, %c0_i32 : i32, i32
  }
  func.func @transform_2(%arg0: i32, %arg1: i32) -> (i32, i32) {
    %c0_i32 = arith.constant 0 : i32
    %c0_i32_0 = arith.constant 0 : i32
    %c0_i32_1 = arith.constant 0 : i32
    return %c0_i32, %c0_i32_0 : i32, i32
  }
  func.func @transform_3(%arg0: i32, %arg1: i32) -> (i32, i32) {
    %c0_i32 = arith.constant 0 : i32
    %c0_i32_0 = arith.constant 0 : i32
    %c0_i32_1 = arith.constant 0 : i32
    return %c0_i32, %c0_i32_0 : i32, i32
  }
  func.func @transform_4(%arg0: i32, %arg1: i32) -> (i32, i32, i32) {
    %c0_i32 = arith.constant 0 : i32
    %c0_i32_0 = arith.constant 0 : i32
    return %arg0, %arg1, %c0_i32 : i32, i32, i32
  }
}

</mosaic_0001>

<llo_original>
// kernel: tpu_custom_call.1
$region0: #{tpu_custom_call.1}
  #allocation0 [shape = 'u32[]', space=smem, size = 0x4, offset = 0x4, fixed_abs, tag = 'smem constant byte address 0x4 - core index']
  #allocation1 [shape = 'u32[144,128]{1,0:T(1,128)}', space=vmem, size = 0x12000, scoped, tag = 'internal scratch']
  #allocation2 [shape = 'f32[8,128]{1,0:T(8,128)}', space=vmem, size = 0x1000, scoped, tag = 'scratch operand']
  %s0 = inlined_call_operand.hbm [shape: f32[8,8,384], index: 0, kind: input, shape index: {}]
  %s1 = inlined_call_operand.vmem [shape: s32[8,1], index: 1, kind: input, shape index: {}]
  %s2 = inlined_call_operand.hbm [shape: f32[128,384], index: 2, kind: input, shape index: {}]
  %s3 = inlined_call_operand.vmem [shape: f32[1,384], index: 3, kind: input, shape index: {}]
  %s4 = inlined_call_operand.hbm [shape: f32[8,8,128], index: 4, kind: output, shape index: {}]
  %s5 = sld [smem:[#allocation0]]
  $region38: #{tpu_custom_call.1} parent=0
    _
  %s7 = ssub.s32 1, %s5
  %s8 = scalar_select 0, %s7, %s5
  $region1: #{tpu_custom_call.1} parent=0
    #allocation3 [shape = 'u8[98304]{0}', space=vmem, size = 0x18000, scoped, tag = 'input window, operand 0, single buffered']
    #allocation4 [shape = 's32[1]{0}', space=sflag, size = 0x4, scoped, tag = 'scoped memory for tpu_custom_call.1']
    #allocation5 [shape = 's32[1]{0}', space=sflag, size = 0x4, scoped, tag = 'scoped memory for tpu_custom_call.1']
    #allocation6 [shape = 'u8[196608]{0}', space=vmem, size = 0x30000, scoped, tag = 'input window, operand 2, single buffered']
    #allocation7 [shape = 's32[1]{0}', space=sflag, size = 0x4, scoped, tag = 'scoped memory for tpu_custom_call.1']
    #allocation8 [shape = 'u8[32768]{0}', space=vmem, size = 0x8000, scoped, tag = 'output window, operand 0, single buffered']
    %9 = vsyncpa [#allocation4], 0
    %10 = vsyncpa [#allocation7], 0
    %11 = vsyncpa [#allocation5], 0
    // Predicated region
    $region2: #{tpu_custom_call.1} parent=1 // pred_check
      _
    $region3: #{tpu_custom_call.1} parent=1 // pred_check_branch
      %13 = sbr.rel (0) target = $region5
    $region4: #{tpu_custom_call.1} parent=1 // pred_region
      %s15 = ssub.s32 3072, 3072
      %16 = vsyncadd [#allocation4], %s15
      %s17 = sshll.u32 [#allocation3], 4
      %s18 = int_to_ptr.vmem [resolvable:$true] %s17
      %23 = dma.hbm_to_vmem [thread:$0]  %s0, 3072, %s18, [#allocation4], 384, 384, 24
    $region5: #{tpu_custom_call.1} parent=1 // pred_fallthru
      _
    // Predicated region
    $region6: #{tpu_custom_call.1} parent=1 // pred_check
      _
    $region7: #{tpu_custom_call.1} parent=1 // pred_check_branch
      %25 = sbr.rel (0) target = $region9
    $region8: #{tpu_custom_call.1} parent=1 // pred_region
      _
    $region9: #{tpu_custom_call.1} parent=1 // pred_fallthru
      _
    // Predicated region
    $region10: #{tpu_custom_call.1} parent=1 // pred_check
      _
    $region11: #{tpu_custom_call.1} parent=1 // pred_check_branch
      %27 = sbr.rel (0) target = $region13
    $region12: #{tpu_custom_call.1} parent=1 // pred_region
      %s29 = ssub.s32 6144, 6144
      %30 = vsyncadd [#allocation7], %s29
      %s31 = sshll.u32 [#allocation6], 4
      %s32 = int_to_ptr.vmem [resolvable:$true] %s31
      %37 = dma.hbm_to_vmem [thread:$0]  %s2, 6144, %s32, [#allocation7], 384, 384, 24
    $region13: #{tpu_custom_call.1} parent=1 // pred_fallthru
      _
    // Predicated region
    $region14: #{tpu_custom_call.1} parent=1 // pred_check
      _
    $region15: #{tpu_custom_call.1} parent=1 // pred_check_branch
      %39 = sbr.rel (0) target = $region17
    $region16: #{tpu_custom_call.1} parent=1 // pred_region
      _
    $region17: #{tpu_custom_call.1} parent=1 // pred_fallthru
      _
    // Predicated region
    $region18: #{tpu_custom_call.1} parent=1 // pred_check
      _
    $region19: #{tpu_custom_call.1} parent=1 // pred_check_branch
      %41 = sbr.rel (0) target = $region21
    $region20: #{tpu_custom_call.1} parent=1 // pred_region
      %42 = dma.done [#allocation4], 3072
    $region21: #{tpu_custom_call.1} parent=1 // pred_fallthru
      _
    // Predicated region
    $region22: #{tpu_custom_call.1} parent=1 // pred_check
      _
    $region23: #{tpu_custom_call.1} parent=1 // pred_check_branch
      %44 = sbr.rel (0) target = $region25
    $region24: #{tpu_custom_call.1} parent=1 // pred_region
      %45 = dma.done [#allocation7], 6144
    $region25: #{tpu_custom_call.1} parent=1 // pred_fallthru
      _
    %p46 = scmp.eq.s32.totalorder 0, 0
    // Predicated region
    $region26: #{tpu_custom_call.1} parent=1 // pred_check
      %p47 = pneg %p46
    $region27: #{tpu_custom_call.1} parent=1 // pred_check_branch
      %49 = sbr.rel (%p47) target = $region29
    $region28: #{tpu_custom_call.1} parent=1 // pred_region
      %50 = vst [vmem:[#allocation2] sm:$0xff] 0.0
    $region29: #{tpu_custom_call.1} parent=1 // pred_fallthru
      _
    %v51 = vld [vmem:[%s1] sm:$0xff]
    %v52 = vld [vmem:[#allocation6] sm:$0xff]
    %v53 = vld [vmem:[#allocation6 + $0x8] sm:$0xff]
    %v54 = vld [vmem:[#allocation6 + $0x10] sm:$0xff]
    %v55 = vld [vmem:[#allocation6 + $0x18] sm:$0xff]
    %v56 = vld [vmem:[#allocation6 + $0x20] sm:$0xff]
    %v57 = vld [vmem:[#allocation6 + $0x28] sm:$0xff]
    %v58 = vld [vmem:[#allocation6 + $0x30] sm:$0xff]
    %v59 = vld [vmem:[#allocation6 + $0x38] sm:$0xff]
    %v60 = vld [vmem:[#allocation6 + $0x40] sm:$0xff]
    %v61 = vld [vmem:[#allocation6 + $0x48] sm:$0xff]
    %v62 = vld [vmem:[#allocation6 + $0x50] sm:$0xff]
    %v63 = vld [vmem:[#allocation6 + $0x58] sm:$0xff]
    %v64 = vld [vmem:[#allocation6 + $0x60] sm:$0xff]
    %v65 = vld [vmem:[#allocation6 + $0x68] sm:$0xff]
    %v66 = vld [vmem:[#allocation6 + $0x70] sm:$0xff]
    %v67 = vld [vmem:[#allocation6 + $0x78] sm:$0xff]
    %v68 = vld [vmem:[#allocation6 + $0x80] sm:$0xff]
    %v69 = vld [vmem:[#allocation6 + $0x88] sm:$0xff]
    %v70 = vld [vmem:[#allocation6 + $0x90] sm:$0xff]
    %v71 = vld [vmem:[#allocation6 + $0x98] sm:$0xff]
    %v72 = vld [vmem:[#allocation6 + $0xa0] sm:$0xff]
    %v73 = vld [vmem:[#allocation6 + $0xa8] sm:$0xff]
    %v74 = vld [vmem:[#allocation6 + $0xb0] sm:$0xff]
    %v75 = vld [vmem:[#allocation6 + $0xb8] sm:$0xff]
    %v76 = vld [vmem:[#allocation6 + $0xc0] sm:$0xff]
    %v77 = vld [vmem:[#allocation6 + $0xc8] sm:$0xff]
    %v78 = vld [vmem:[#allocation6 + $0xd0] sm:$0xff]
    %v79 = vld [vmem:[#allocation6 + $0xd8] sm:$0xff]
    %v80 = vld [vmem:[#allocation6 + $0xe0] sm:$0xff]
    %v81 = vld [vmem:[#allocation6 + $0xe8] sm:$0xff]
    %v82 = vld [vmem:[#allocation6 + $0xf0] sm:$0xff]
    %v83 = vld [vmem:[#allocation6 + $0xf8] sm:$0xff]
    %v84 = vld [vmem:[#allocation6 + $0x100] sm:$0xff]
    %v85 = vld [vmem:[#allocation6 + $0x108] sm:$0xff]
    %v86 = vld [vmem:[#allocation6 + $0x110] sm:$0xff]
    %v87 = vld [vmem:[#allocation6 + $0x118] sm:$0xff]
    %v88 = vld [vmem:[#allocation6 + $0x120] sm:$0xff]
    %v89 = vld [vmem:[#allocation6 + $0x128] sm:$0xff]
    %v90 = vld [vmem:[#allocation6 + $0x130] sm:$0xff]
    %v91 = vld [vmem:[#allocation6 + $0x138] sm:$0xff]
    %v92 = vld [vmem:[#allocation6 + $0x140] sm:$0xff]
    %v93 = vld [vmem:[#allocation6 + $0x148] sm:$0xff]
    %v94 = vld [vmem:[#allocation6 + $0x150] sm:$0xff]
    %v95 = vld [vmem:[#allocation6 + $0x158] sm:$0xff]
    %v96 = vld [vmem:[#allocation6 + $0x160] sm:$0xff]
    %v97 = vld [vmem:[#allocation6 + $0x168] sm:$0xff]
    %v98 = vld [vmem:[#allocation6 + $0x170] sm:$0xff]
    %v99 = vld [vmem:[#allocation6 + $0x178] sm:$0xff]
    %v100 = vld [vmem:[%s3] sm:$0x7]
    %v101 = vld [vmem:[#allocation2] sm:$0xff]
    %s102 = smul.u32 0, 8
    %v103 = vld [vmem:[#allocation3] ss:$8 sm:$0x7]
    %s104 = scalar_lea.vmem [#allocation3], 24
    %v105 = vld [vmem:[%s104] ss:$8 sm:$0x7]
    %s106 = scalar_lea.vmem [#allocation3], 48
    %v107 = vld [vmem:[%s106] ss:$8 sm:$0x7]
    %s108 = scalar_lea.vmem [#allocation3], 72
    %v109 = vld [vmem:[%s108] ss:$8 sm:$0x7]
    %s110 = scalar_lea.vmem [#allocation3], 96
    %v111 = vld [vmem:[%s110] ss:$8 sm:$0x7]
    %s112 = scalar_lea.vmem [#allocation3], 120
    %v113 = vld [vmem:[%s112] ss:$8 sm:$0x7]
    %s114 = scalar_lea.vmem [#allocation3], 144
    %v115 = vld [vmem:[%s114] ss:$8 sm:$0x7]
    %s116 = scalar_lea.vmem [#allocation3], 168
    %v117 = vld [vmem:[%s116] ss:$8 sm:$0x7]
    %v119 = vlaneseq
    %v120 = vshrl.u32 %v119, 7
    %v121 = vsub.s32 0, %v120
    %v122 = vrot.slane %v100, %v121
    %v123 = vlaneseq
    %v124 = vshrl.u32 %v123, 7
    %v125 = vsub.s32 1, %v124
    %v126 = vrot.slane %v100, %v125
    %v127 = vlaneseq
    %v128 = vshrl.u32 %v127, 7
    %v129 = vsub.s32 2, %v128
    %v130 = vrot.slane %v100, %v129
    %134 = vmatprep.subr.mxu0 %v53
    %135 = vmatpush1.msra.mxu0 %v52
    %136 = vmatprep.subr.mxu0 %v56
    %137 = vmatpush1.msra.mxu0 %v55
    %138 = vmatprep.subr.mxu0 %v59
    %139 = vmatpush1.msra.mxu0 %v58
    %140 = vmatprep.subr.mxu0 %v62
    %141 = vmatpush1.msra.mxu0 %v61
    %142 = vmatprep.subr.mxu0 %v65
    %143 = vmatpush1.msra.mxu0 %v64
    %144 = vmatprep.subr.mxu0 %v68
    %145 = vmatpush1.msra.mxu0 %v67
    %146 = vmatprep.subr.mxu0 %v71
    %147 = vmatpush1.msra.mxu0 %v70
    %148 = vmatprep.subr.mxu0 %v74
    %149 = vmatpush1.msra.mxu0 %v73
    %150 = vmatprep.subr.mxu0 %v77
    %151 = vmatpush1.msra.mxu0 %v76
    %152 = vmatprep.subr.mxu0 %v80
    %153 = vmatpush1.msra.mxu0 %v79
    %154 = vmatprep.subr.mxu0 %v83
    %155 = vmatpush1.msra.mxu0 %v82
    %156 = vmatprep.subr.mxu0 %v86
    %157 = vmatpush1.msra.mxu0 %v85
    %158 = vmatprep.subr.mxu0 %v89
    %159 = vmatpush1.msra.mxu0 %v88
    %160 = vmatprep.subr.mxu0 %v92
    %161 = vmatpush1.msra.mxu0 %v91
    %162 = vmatprep.subr.mxu0 %v95
    %163 = vmatpush1.msra.mxu0 %v94
    %164 = vmatprep.subr.mxu0 %v98
    %165 = vmatpush1.msra.mxu0 %v97
    %166 = vmatprep.subr.mxu0 0.0
    %167 = vmatpush1.msra.mxu0 0.0
    %168 = vmatprep.subr.mxu0 0.0
    %169 = vmatpush1.msra.mxu0 0.0
    %170 = vmatprep.subr.mxu0 0.0
    %171 = vmatpush1.msra.mxu0 0.0
    %172 = vmatprep.subr.mxu0 0.0
    %173 = vmatpush1.msra.mxu0 0.0
    %174 = vmatprep.subr.mxu0 0.0
    %175 = vmatpush1.msra.mxu0 0.0
    %176 = vmatprep.subr.mxu0 0.0
    %177 = vmatpush1.msra.mxu0 0.0
    %178 = vmatprep.subr.mxu0 0.0
    %179 = vmatpush1.msra.mxu0 0.0
    %180 = vmatprep.subr.mxu0 0.0
    %181 = vmatpush1.msra.mxu0 0.0
    %182 = vmatprep.subr.mxu0 0.0
    %183 = vmatpush1.msra.mxu0 0.0
    %184 = vmatprep.subr.mxu0 0.0
    %185 = vmatpush1.msra.mxu0 0.0
    %186 = vmatprep.subr.mxu0 0.0
    %187 = vmatpush1.msra.mxu0 0.0
    %188 = vmatprep.subr.mxu0 0.0
    %189 = vmatpush1.msra.mxu0 0.0
    %190 = vmatprep.subr.mxu0 0.0
    %191 = vmatpush1.msra.mxu0 0.0
    %192 = vmatprep.subr.mxu0 0.0
    %193 = vmatpush1.msra.mxu0 0.0
    %194 = vmatprep.subr.mxu0 0.0
    %195 = vmatpush1.msra.mxu0 0.0
    %196 = vmatprep.subr.mxu0 0.0
    %197 = vmatpush1.msra.mxu0 0.0
    %198 = vmatprep.mubr.f32.mxu0 0.0
    %199 = vmatmul.mubr.f32.gmra.mrb[0].mxu0 %v101
    %v200 = vpop.f32.mrb[0].mxu0
    %v201 = vadd.f32 %v122, %v200
    %v202 = vpop.f32.mrb[0].mxu0
    %v203 = vadd.f32 %v126, %v202
    %204 = vdwg.mxu0
    %205 = vmatprep.subr.mxu0 0.0
    %206 = vmatpush1.msra.mxu0 %v54
    %207 = vmatprep.subr.mxu0 0.0
    %208 = vmatpush1.msra.mxu0 %v57
    %209 = vmatprep.subr.mxu0 0.0
    %210 = vmatpush1.msra.mxu0 %v60
    %211 = vmatprep.subr.mxu0 0.0
    %212 = vmatpush1.msra.mxu0 %v63
    %213 = vmatprep.subr.mxu0 0.0
    %214 = vmatpush1.msra.mxu0 %v66
    %215 = vmatprep.subr.mxu0 0.0
    %216 = vmatpush1.msra.mxu0 %v69
    %217 = vmatprep.subr.mxu0 0.0
    %218 = vmatpush1.msra.mxu0 %v72
    %219 = vmatprep.subr.mxu0 0.0
    %220 = vmatpush1.msra.mxu0 %v75
    %221 = vmatprep.subr.mxu0 0.0
    %222 = vmatpush1.msra.mxu0 %v78
    %223 = vmatprep.subr.mxu0 0.0
    %224 = vmatpush1.msra.mxu0 %v81
    %225 = vmatprep.subr.mxu0 0.0
    %226 = vmatpush1.msra.mxu0 %v84
    %227 = vmatprep.subr.mxu0 0.0
    %228 = vmatpush1.msra.mxu0 %v87
    %229 = vmatprep.subr.mxu0 0.0
    %230 = vmatpush1.msra.mxu0 %v90
    %231 = vmatprep.subr.mxu0 0.0
    %232 = vmatpush1.msra.mxu0 %v93
    %233 = vmatprep.subr.mxu0 0.0
    %234 = vmatpush1.msra.mxu0 %v96
    %235 = vmatprep.subr.mxu0 0.0
    %236 = vmatpush1.msra.mxu0 %v99
    %237 = vmatprep.subr.mxu0 0.0
    %238 = vmatpush1.msra.mxu0 0.0
    %239 = vmatprep.subr.mxu0 0.0
    %240 = vmatpush1.msra.mxu0 0.0
    %241 = vmatprep.subr.mxu0 0.0
    %242 = vmatpush1.msra.mxu0 0.0
    %243 = vmatprep.subr.mxu0 0.0
    %244 = vmatpush1.msra.mxu0 0.0
    %245 = vmatprep.subr.mxu0 0.0
    %246 = vmatpush1.msra.mxu0 0.0
    %247 = vmatprep.subr.mxu0 0.0
    %248 = vmatpush1.msra.mxu0 0.0
    %249 = vmatprep.subr.mxu0 0.0
    %250 = vmatpush1.msra.mxu0 0.0
    %251 = vmatprep.subr.mxu0 0.0
    %252 = vmatpush1.msra.mxu0 0.0
    %253 = vmatprep.subr.mxu0 0.0
    %254 = vmatpush1.msra.mxu0 0.0
    %255 = vmatprep.subr.mxu0 0.0
    %256 = vmatpush1.msra.mxu0 0.0
    %257 = vmatprep.subr.mxu0 0.0
    %258 = vmatpush1.msra.mxu0 0.0
    %259 = vmatprep.subr.mxu0 0.0
    %260 = vmatpush1.msra.mxu0 0.0
    %261 = vmatprep.subr.mxu0 0.0
    %262 = vmatpush1.msra.mxu0 0.0
    %263 = vmatprep.subr.mxu0 0.0
    %264 = vmatpush1.msra.mxu0 0.0
    %265 = vmatprep.subr.mxu0 0.0
    %266 = vmatpush1.msra.mxu0 0.0
    %267 = vmatprep.subr.mxu0 0.0
    %268 = vmatpush1.msra.mxu0 0.0
    %269 = vmatprep.mubr.f32.mxu0 0.0
    %270 = vmatmul.mubr.f32.gmra.mrb[0].mxu0 %v101
    %v271 = vpop.f32.mrb[0].mxu0
    %v272 = vadd.f32 %v130, %v271
    %v273 = vpop.f32.mrb[0].mxu0
    %274 = vdwg.mxu0
    %v276 = vcombine.high %v201, %v201
    %v278 = vunpack.c.l.s4 1966171168
    %v279 = vunpack.c.0.s8 %v278
    %v280 = vlaneseq
    %v281 = vshrl.u32 %v280, 7
    %v282 = vsub.s32 %v279, %v281
    %v283 = vrot.slane %v201, %v282
    %v285 = vunpack.c.l.s4 1966171168
    %v286 = vunpack.c.0.s8 %v285
    %v287 = vlaneseq
    %v288 = vshrl.u32 %v287, 7
    %v289 = vsub.s32 %v286, %v288
    %v290 = vrot.slane %v276, %v289
    %v291 = vcombine.high %v283, %v283
    %v292 = vcombine.high %v290, %v290
    %v294 = vunpack.c.l.s4 1966171168
    %v295 = vunpack.c.0.s8 %v294
    %v296 = vlaneseq
    %v297 = vshrl.u32 %v296, 7
    %v298 = vsub.s32 %v295, %v297
    %v299 = vrot.slane %v283, %v298
    %v301 = vunpack.c.l.s4 1966171168
    %v302 = vunpack.c.0.s8 %v301
    %v303 = vlaneseq
    %v304 = vshrl.u32 %v303, 7
    %v305 = vsub.s32 %v302, %v304
    %v306 = vrot.slane %v290, %v305
    %v308 = vunpack.c.l.s4 1966171168
    %v309 = vunpack.c.0.s8 %v308
    %v310 = vlaneseq
    %v311 = vshrl.u32 %v310, 7
    %v312 = vsub.s32 %v309, %v311
    %v313 = vrot.slane %v291, %v312
    %v315 = vunpack.c.l.s4 1966171168
    %v316 = vunpack.c.0.s8 %v315
    %v317 = vlaneseq
    %v318 = vshrl.u32 %v317, 7
    %v319 = vsub.s32 %v316, %v318
    %v320 = vrot.slane %v292, %v319
    %v321 = vcombine.high %v299, %v299
    %v322 = vcombine.high %v306, %v306
    %v323 = vcombine.high %v313, %v313
    %v324 = vcombine.high %v320, %v320
    %v333 = vadd.f32 %v103, %v299
    %v334 = vadd.f32 %v105, %v313
    %v335 = vadd.f32 %v107, %v321
    %v336 = vadd.f32 %v109, %v323
    %v337 = vadd.f32 %v111, %v306
    %v338 = vadd.f32 %v113, %v320
    %v339 = vadd.f32 %v115, %v322
    %v340 = vadd.f32 %v117, %v324
    %v341 = vxor.u32 %v333, 2147483648
    %v342 = vxor.u32 %v334, 2147483648
    %v343 = vxor.u32 %v335, 2147483648
    %v344 = vxor.u32 %v336, 2147483648
    %v345 = vxor.u32 %v337, 2147483648
    %v346 = vxor.u32 %v338, 2147483648
    %v347 = vxor.u32 %v339, 2147483648
    %v348 = vxor.u32 %v340, 2147483648
    %v349 = vmul.f32 %v341, 1.442695
    %v350 = vpow.pop %v349
    %v351 = vmul.f32 %v342, 1.442695
    %v352 = vpow.pop %v351
    %v353 = vmul.f32 %v343, 1.442695
    %v354 = vpow.pop %v353
    %v355 = vmul.f32 %v344, 1.442695
    %v356 = vpow.pop %v355
    %v357 = vmul.f32 %v345, 1.442695
    %v358 = vpow.pop %v357
    %v359 = vmul.f32 %v346, 1.442695
    %v360 = vpow.pop %v359
    %v361 = vmul.f32 %v347, 1.442695
    %v362 = vpow.pop %v361
    %v363 = vmul.f32 %v348, 1.442695
    %v364 = vpow.pop %v363
    %v365 = vadd.f32 %v350, 1.0
    %v366 = vadd.f32 %v352, 1.0
    %v367 = vadd.f32 %v354, 1.0
    %v368 = vadd.f32 %v356, 1.0
    %v369 = vadd.f32 %v358, 1.0
    %v370 = vadd.f32 %v360, 1.0
    %v371 = vadd.f32 %v362, 1.0
    %v372 = vadd.f32 %v364, 1.0
    %v373 = vrcp.pop %v365
    %v374 = vmul.f32 1.0, %v373
    %v375 = vrcp.pop %v366
    %v376 = vmul.f32 1.0, %v375
    %v377 = vrcp.pop %v367
    %v378 = vmul.f32 1.0, %v377
    %v379 = vrcp.pop %v368
    %v380 = vmul.f32 1.0, %v379
    %v381 = vrcp.pop %v369
    %v382 = vmul.f32 1.0, %v381
    %v383 = vrcp.pop %v370
    %v384 = vmul.f32 1.0, %v383
    %v385 = vrcp.pop %v371
    %v386 = vmul.f32 1.0, %v385
    %v387 = vrcp.pop %v372
    %v388 = vmul.f32 1.0, %v387
    %v397 = vrot.slane %v103, 1
    %v398 = vrot.slane %v105, 1
    %v399 = vrot.slane %v107, 1
    %v400 = vrot.slane %v109, 1
    %v401 = vrot.slane %v111, 1
    %v402 = vrot.slane %v113, 1
    %v403 = vrot.slane %v115, 1
    %v404 = vrot.slane %v117, 1
    %v414 = vcombine.high %v203, %v203
    %v416 = vunpack.c.l.s4 1966171168
    %v417 = vunpack.c.0.s8 %v416
    %v418 = vlaneseq
    %v419 = vshrl.u32 %v418, 7
    %v420 = vsub.s32 %v417, %v419
    %v421 = vrot.slane %v203, %v420
    %v423 = vunpack.c.l.s4 1966171168
    %v424 = vunpack.c.0.s8 %v423
    %v425 = vlaneseq
    %v426 = vshrl.u32 %v425, 7
    %v427 = vsub.s32 %v424, %v426
    %v428 = vrot.slane %v414, %v427
    %v429 = vcombine.high %v421, %v421
    %v430 = vcombine.high %v428, %v428
    %v432 = vunpack.c.l.s4 1966171168
    %v433 = vunpack.c.0.s8 %v432
    %v434 = vlaneseq
    %v435 = vshrl.u32 %v434, 7
    %v436 = vsub.s32 %v433, %v435
    %v437 = vrot.slane %v421, %v436
    %v439 = vunpack.c.l.s4 1966171168
    %v440 = vunpack.c.0.s8 %v439
    %v441 = vlaneseq
    %v442 = vshrl.u32 %v441, 7
    %v443 = vsub.s32 %v440, %v442
    %v444 = vrot.slane %v428, %v443
    %v446 = vunpack.c.l.s4 1966171168
    %v447 = vunpack.c.0.s8 %v446
    %v448 = vlaneseq
    %v449 = vshrl.u32 %v448, 7
    %v450 = vsub.s32 %v447, %v449
    %v451 = vrot.slane %v429, %v450
    %v453 = vunpack.c.l.s4 1966171168
    %v454 = vunpack.c.0.s8 %v453
    %v455 = vlaneseq
    %v456 = vshrl.u32 %v455, 7
    %v457 = vsub.s32 %v454, %v456
    %v458 = vrot.slane %v430, %v457
    %v459 = vcombine.high %v437, %v437
    %v460 = vcombine.high %v444, %v444
    %v461 = vcombine.high %v451, %v451
    %v462 = vcombine.high %v458, %v458
    %v471 = vadd.f32 %v397, %v437
    %v472 = vadd.f32 %v398, %v451
    %v473 = vadd.f32 %v399, %v459
    %v474 = vadd.f32 %v400, %v461
    %v475 = vadd.f32 %v401, %v444
    %v476 = vadd.f32 %v402, %v458
    %v477 = vadd.f32 %v403, %v460
    %v478 = vadd.f32 %v404, %v462
    %v479 = vxor.u32 %v471, 2147483648
    %v480 = vxor.u32 %v472, 2147483648
    %v481 = vxor.u32 %v473, 2147483648
    %v482 = vxor.u32 %v474, 2147483648
    %v483 = vxor.u32 %v475, 2147483648
    %v484 = vxor.u32 %v476, 2147483648
    %v485 = vxor.u32 %v477, 2147483648
    %v486 = vxor.u32 %v478, 2147483648
    %v487 = vmul.f32 %v479, 1.442695
    %v488 = vpow.pop %v487
    %v489 = vmul.f32 %v480, 1.442695
    %v490 = vpow.pop %v489
    %v491 = vmul.f32 %v481, 1.442695
    %v492 = vpow.pop %v491
    %v493 = vmul.f32 %v482, 1.442695
    %v494 = vpow.pop %v493
    %v495 = vmul.f32 %v483, 1.442695
    %v496 = vpow.pop %v495
    %v497 = vmul.f32 %v484, 1.442695
    %v498 = vpow.pop %v497
    %v499 = vmul.f32 %v485, 1.442695
    %v500 = vpow.pop %v499
    %v501 = vmul.f32 %v486, 1.442695
    %v502 = vpow.pop %v501
    %v503 = vadd.f32 %v488, 1.0
    %v504 = vadd.f32 %v490, 1.0
    %v505 = vadd.f32 %v492, 1.0
    %v506 = vadd.f32 %v494, 1.0
    %v507 = vadd.f32 %v496, 1.0
    %v508 = vadd.f32 %v498, 1.0
    %v509 = vadd.f32 %v500, 1.0
    %v510 = vadd.f32 %v502, 1.0
    %v511 = vrcp.pop %v503
    %v512 = vmul.f32 1.0, %v511
    %v513 = vrcp.pop %v504
    %v514 = vmul.f32 1.0, %v513
    %v515 = vrcp.pop %v505
    %v516 = vmul.f32 1.0, %v515
    %v517 = vrcp.pop %v506
    %v518 = vmul.f32 1.0, %v517
    %v519 = vrcp.pop %v507
    %v520 = vmul.f32 1.0, %v519
    %v521 = vrcp.pop %v508
    %v522 = vmul.f32 1.0, %v521
    %v523 = vrcp.pop %v509
    %v524 = vmul.f32 1.0, %v523
    %v525 = vrcp.pop %v510
    %v526 = vmul.f32 1.0, %v525
    %v528 = vcombine.high %v272, %v272
    %v530 = vunpack.c.l.s4 1966171168
    %v531 = vunpack.c.0.s8 %v530
    %v532 = vlaneseq
    %v533 = vshrl.u32 %v532, 7
    %v534 = vsub.s32 %v531, %v533
    %v535 = vrot.slane %v272, %v534
    %v537 = vunpack.c.l.s4 1966171168
    %v538 = vunpack.c.0.s8 %v537
    %v539 = vlaneseq
    %v540 = vshrl.u32 %v539, 7
    %v541 = vsub.s32 %v538, %v540
    %v542 = vrot.slane %v528, %v541
    %v543 = vcombine.high %v535, %v535
    %v544 = vcombine.high %v542, %v542
    %v546 = vunpack.c.l.s4 1966171168
    %v547 = vunpack.c.0.s8 %v546
    %v548 = vlaneseq
    %v549 = vshrl.u32 %v548, 7
    %v550 = vsub.s32 %v547, %v549
    %v551 = vrot.slane %v535, %v550
    %v553 = vunpack.c.l.s4 1966171168
    %v554 = vunpack.c.0.s8 %v553
    %v555 = vlaneseq
    %v556 = vshrl.u32 %v555, 7
    %v557 = vsub.s32 %v554, %v556
    %v558 = vrot.slane %v542, %v557
    %v560 = vunpack.c.l.s4 1966171168
    %v561 = vunpack.c.0.s8 %v560
    %v562 = vlaneseq
    %v563 = vshrl.u32 %v562, 7
    %v564 = vsub.s32 %v561, %v563
    %v565 = vrot.slane %v543, %v564
    %v567 = vunpack.c.l.s4 1966171168
    %v568 = vunpack.c.0.s8 %v567
    %v569 = vlaneseq
    %v570 = vshrl.u32 %v569, 7
    %v571 = vsub.s32 %v568, %v570
    %v572 = vrot.slane %v544, %v571
    %v573 = vcombine.high %v551, %v551
    %v574 = vcombine.high %v558, %v558
    %v575 = vcombine.high %v565, %v565
    %v576 = vcombine.high %v572, %v572
    %v585 = vmul.f32 %v374, %v551
    %v586 = vmul.f32 %v376, %v565
    %v587 = vmul.f32 %v378, %v573
    %v588 = vmul.f32 %v380, %v575
    %v589 = vmul.f32 %v382, %v558
    %v590 = vmul.f32 %v384, %v572
    %v591 = vmul.f32 %v386, %v574
    %v592 = vmul.f32 %v388, %v576
    %v593 = vrot.slane %v103, 2
    %v594 = vrot.slane %v105, 2
    %v595 = vrot.slane %v107, 2
    %v596 = vrot.slane %v109, 2
    %v597 = vrot.slane %v111, 2
    %v598 = vrot.slane %v113, 2
    %v599 = vrot.slane %v115, 2
    %v600 = vrot.slane %v117, 2
    %v609 = vadd.f32 %v593, %v585
    %v610 = vadd.f32 %v594, %v586
    %v611 = vadd.f32 %v595, %v587
    %v612 = vadd.f32 %v596, %v588
    %v613 = vadd.f32 %v597, %v589
    %v614 = vadd.f32 %v598, %v590
    %v615 = vadd.f32 %v599, %v591
    %v616 = vadd.f32 %v600, %v592
    %v617 = vtanh.pop %v609
    %v618 = vtanh.pop %v610
    %v619 = vtanh.pop %v611
    %v620 = vtanh.pop %v612
    %v621 = vtanh.pop %v613
    %v622 = vtanh.pop %v614
    %v623 = vtanh.pop %v615
    %v624 = vtanh.pop %v616
    %v625 = vsub.f32 1.0, %v512
    %v626 = vsub.f32 1.0, %v514
    %v627 = vsub.f32 1.0, %v516
    %v628 = vsub.f32 1.0, %v518
    %v629 = vsub.f32 1.0, %v520
    %v630 = vsub.f32 1.0, %v522
    %v631 = vsub.f32 1.0, %v524
    %v632 = vsub.f32 1.0, %v526
    %v633 = vmul.f32 %v625, %v617
    %v634 = vmul.f32 %v626, %v618
    %v635 = vmul.f32 %v627, %v619
    %v636 = vmul.f32 %v628, %v620
    %v637 = vmul.f32 %v629, %v621
    %v638 = vmul.f32 %v630, %v622
    %v639 = vmul.f32 %v631, %v623
    %v640 = vmul.f32 %v632, %v624
    %v642 = vcombine.high %v101, %v101
    %v644 = vunpack.c.l.s4 1966171168
    %v645 = vunpack.c.0.s8 %v644
    %v646 = vlaneseq
    %v647 = vshrl.u32 %v646, 7
    %v648 = vsub.s32 %v645, %v647
    %v649 = vrot.slane %v101, %v648
    %v651 = vunpack.c.l.s4 1966171168
    %v652 = vunpack.c.0.s8 %v651
    %v653 = vlaneseq
    %v654 = vshrl.u32 %v653, 7
    %v655 = vsub.s32 %v652, %v654
    %v656 = vrot.slane %v642, %v655
    %v657 = vcombine.high %v649, %v649
    %v658 = vcombine.high %v656, %v656
    %v660 = vunpack.c.l.s4 1966171168
    %v661 = vunpack.c.0.s8 %v660
    %v662 = vlaneseq
    %v663 = vshrl.u32 %v662, 7
    %v664 = vsub.s32 %v661, %v663
    %v665 = vrot.slane %v649, %v664
    %v667 = vunpack.c.l.s4 1966171168
    %v668 = vunpack.c.0.s8 %v667
    %v669 = vlaneseq
    %v670 = vshrl.u32 %v669, 7
    %v671 = vsub.s32 %v668, %v670
    %v672 = vrot.slane %v656, %v671
    %v674 = vunpack.c.l.s4 1966171168
    %v675 = vunpack.c.0.s8 %v674
    %v676 = vlaneseq
    %v677 = vshrl.u32 %v676, 7
    %v678 = vsub.s32 %v675, %v677
    %v679 = vrot.slane %v657, %v678
    %v681 = vunpack.c.l.s4 1966171168
    %v682 = vunpack.c.0.s8 %v681
    %v683 = vlaneseq
    %v684 = vshrl.u32 %v683, 7
    %v685 = vsub.s32 %v682, %v684
    %v686 = vrot.slane %v658, %v685
    %v687 = vcombine.high %v665, %v665
    %v688 = vcombine.high %v672, %v672
    %v689 = vcombine.high %v679, %v679
    %v690 = vcombine.high %v686, %v686
    %v699 = vmul.f32 %v512, %v665
    %v700 = vmul.f32 %v514, %v679
    %v701 = vmul.f32 %v516, %v687
    %v702 = vmul.f32 %v518, %v689
    %v703 = vmul.f32 %v520, %v672
    %v704 = vmul.f32 %v522, %v686
    %v705 = vmul.f32 %v524, %v688
    %v706 = vmul.f32 %v526, %v690
    %v707 = vadd.f32 %v633, %v699
    %v708 = vadd.f32 %v634, %v700
    %v709 = vadd.f32 %v635, %v701
    %v710 = vadd.f32 %v636, %v702
    %v711 = vadd.f32 %v637, %v703
    %v712 = vadd.f32 %v638, %v704
    %v713 = vadd.f32 %v639, %v705
    %v714 = vadd.f32 %v640, %v706
    %v715 = vstv %s102
    %vm716 = vcmp.gt.s32.totalorder %v51, %v715
    %v717 = vsel %vm716, 1, 0
    %v718 = vcvt.s32.f32 %v717
    %720 = vset.pattern.permute.xlu0 0
    %721 = vperm.xlu0 %720, %v718
    %v722 = vpop.permute.xlu0 %721
    %v723 = vlaneseq
    %v724 = vshrl.u32 %v723, 7
    %v725 = vsub.s32 0, %v724
    %v726 = vrot.slane %v722, %v725
    %v727 = vlaneseq
    %v728 = vshrl.u32 %v727, 7
    %v729 = vsub.s32 1, %v728
    %v730 = vrot.slane %v722, %v729
    %v731 = vlaneseq
    %v732 = vshrl.u32 %v731, 7
    %v733 = vsub.s32 2, %v732
    %v734 = vrot.slane %v722, %v733
    %v735 = vlaneseq
    %v736 = vshrl.u32 %v735, 7
    %v737 = vsub.s32 3, %v736
    %v738 = vrot.slane %v722, %v737
    %v739 = vlaneseq
    %v740 = vshrl.u32 %v739, 7
    %v741 = vsub.s32 4, %v740
    %v742 = vrot.slane %v722, %v741
    %v743 = vlaneseq
    %v744 = vshrl.u32 %v743, 7
    %v745 = vsub.s32 5, %v744
    %v746 = vrot.slane %v722, %v745
    %v747 = vlaneseq
    %v748 = vshrl.u32 %v747, 7
    %v749 = vsub.s32 6, %v748
    %v750 = vrot.slane %v722, %v749
    %v751 = vlaneseq
    %v752 = vshrl.u32 %v751, 7
    %v753 = vsub.s32 7, %v752
    %v754 = vrot.slane %v722, %v753
    %v763 = vmul.f32 %v707, %v726
    %v764 = vmul.f32 %v708, %v730
    %v765 = vmul.f32 %v709, %v734
    %v766 = vmul.f32 %v710, %v738
    %v767 = vmul.f32 %v711, %v742
    %v768 = vmul.f32 %v712, %v746
    %v769 = vmul.f32 %v713, %v750
    %v770 = vmul.f32 %v714, %v754
    %v771 = vmul.f32 %v763, %v763
    %v772 = vmul.f32 %v764, %v764
    %v773 = vmul.f32 %v765, %v765
    %v774 = vmul.f32 %v766, %v766
    %v775 = vmul.f32 %v767, %v767
    %v776 = vmul.f32 %v768, %v768
    %v777 = vmul.f32 %v769, %v769
    %v778 = vmul.f32 %v770, %v770
    %v787 = vcombine.low %v771, %v772
    %v788 = vcombine.low %v773, %v774
    %v789 = vcombine.low %v775, %v776
    %v790 = vcombine.low %v777, %v778
    %v792 = vunpack.c.l.s4 1966171168
    %v793 = vunpack.c.0.s8 %v792
    %v794 = vlaneseq
    %v795 = vshrl.u32 %v794, 7
    %v796 = vsub.s32 %v793, %v795
    %v797 = vrot.slane %v787, %v796
    %v799 = vunpack.c.l.s4 1966171168
    %v800 = vunpack.c.0.s8 %v799
    %v801 = vlaneseq
    %v802 = vshrl.u32 %v801, 7
    %v803 = vsub.s32 %v800, %v802
    %v804 = vrot.slane %v788, %v803
    %v806 = vunpack.c.l.s4 1966171168
    %v807 = vunpack.c.0.s8 %v806
    %v808 = vlaneseq
    %v809 = vshrl.u32 %v808, 7
    %v810 = vsub.s32 %v807, %v809
    %v811 = vrot.slane %v789, %v810
    %v813 = vunpack.c.l.s4 1966171168
    %v814 = vunpack.c.0.s8 %v813
    %v815 = vlaneseq
    %v816 = vshrl.u32 %v815, 7
    %v817 = vsub.s32 %v814, %v816
    %v818 = vrot.slane %v790, %v817
    %v819 = vcombine.low %v797, %v804
    %v820 = vcombine.low %v811, %v818
    %v822 = vunpack.c.l.s4 1966171168
    %v823 = vunpack.c.0.s8 %v822
    %v824 = vlaneseq
    %v825 = vshrl.u32 %v824, 7
    %v826 = vsub.s32 %v823, %v825
    %v827 = vrot.slane %v819, %v826
    %v829 = vunpack.c.l.s4 1966171168
    %v830 = vunpack.c.0.s8 %v829
    %v831 = vlaneseq
    %v832 = vshrl.u32 %v831, 7
    %v833 = vsub.s32 %v830, %v832
    %v834 = vrot.slane %v820, %v833
    %v835 = vcombine.low %v827, %v834
    %837 = vadd.xlane.f32.xlu0 %v835
    %v838 = vpop.xlane.xlu0 %837
    %v839 = vrsqrt.pop %v838
    %v840 = vmul.f32 %v838, %v839
    %vm841 = vcmp.eq.f32.partialorder %v838, inf
    %v842 = vsel %vm841, %v838, %v840
    %vm843 = vcmp.eq.f32.partialorder %v838, 0.0
    %v844 = vand.u32 %v838, 2147483648
    %v845 = vsel %vm843, %v844, %v842
    %v846 = vadd.f32 %v845, 1e-08
    %v847 = vrcp.pop %v846
    %v848 = vmul.f32 %v846, %v847
    %v849 = vsub.f32 2.0, %v848
    %v850 = vmul.f32 %v847, %v849
    %v852 = vlaneseq
    %v853 = vshrl.u32 %v852, 7
    %v854 = vsub.s32 0, %v853
    %v855 = vrot.slane %v850, %v854
    %v856 = vlaneseq
    %v857 = vshrl.u32 %v856, 7
    %v858 = vsub.s32 1, %v857
    %v859 = vrot.slane %v850, %v858
    %v860 = vlaneseq
    %v861 = vshrl.u32 %v860, 7
    %v862 = vsub.s32 2, %v861
    %v863 = vrot.slane %v850, %v862
    %v864 = vlaneseq
    %v865 = vshrl.u32 %v864, 7
    %v866 = vsub.s32 3, %v865
    %v867 = vrot.slane %v850, %v866
    %v868 = vlaneseq
    %v869 = vshrl.u32 %v868, 7
    %v870 = vsub.s32 4, %v869
    %v871 = vrot.slane %v850, %v870
    %v872 = vlaneseq
    %v873 = vshrl.u32 %v872, 7
    %v874 = vsub.s32 5, %v873
    %v875 = vrot.slane %v850, %v874
    %v876 = vlaneseq
    %v877 = vshrl.u32 %v876, 7
    %v878 = vsub.s32 6, %v877
    %v879 = vrot.slane %v850, %v878
    %v880 = vlaneseq
    %v881 = vshrl.u32 %v880, 7
    %v882 = vsub.s32 7, %v881
    %v883 = vrot.slane %v850, %v882
    %v892 = vmul.f32 %v763, %v855
    %v893 = vmul.f32 %v764, %v859
    %v894 = vmul.f32 %v765, %v863
    %v895 = vmul.f32 %v766, %v867
    %v896 = vmul.f32 %v767, %v871
    %v897 = vmul.f32 %v768, %v875
    %v898 = vmul.f32 %v769, %v879
    %v899 = vmul.f32 %v770, %v883
    %900 = vst [vmem:[#allocation8] sm:$0x1] %v892
    %901 = vst [vmem:[#allocation8 + $0x8] sm:$0x1] %v893
    %902 = vst [vmem:[#allocation8 + $0x10] sm:$0x1] %v894
    %903 = vst [vmem:[#allocation8 + $0x18] sm:$0x1] %v895
    %904 = vst [vmem:[#allocation8 + $0x20] sm:$0x1] %v896
    %905 = vst [vmem:[#allocation8 + $0x28] sm:$0x1] %v897
    %906 = vst [vmem:[#allocation8 + $0x30] sm:$0x1] %v898
    %907 = vst [vmem:[#allocation8 + $0x38] sm:$0x1] %v899
    %s908 = scalar_lea.vmem [#allocation3], 1
    %v909 = vld [vmem:[%s908] ss:$8 sm:$0x7]
    %s910 = scalar_lea.vmem [#allocation3], 25
    %v911 = vld [vmem:[%s910] ss:$8 sm:$0x7]
    %s912 = scalar_lea.vmem [#allocation3], 49
    %v913 = vld [vmem:[%s912] ss:$8 sm:$0x7]
    %s914 = scalar_lea.vmem [#allocation3], 73
    %v915 = vld [vmem:[%s914] ss:$8 sm:$0x7]
    %s916 = scalar_lea.vmem [#allocation3], 97
    %v917 = vld [vmem:[%s916] ss:$8 sm:$0x7]
    %s918 = scalar_lea.vmem [#allocation3], 121
    %v919 = vld [vmem:[%s918] ss:$8 sm:$0x7]
    %s920 = scalar_lea.vmem [#allocation3], 145
    %v921 = vld [vmem:[%s920] ss:$8 sm:$0x7]
    %s922 = scalar_lea.vmem [#allocation3], 169
    %v923 = vld [vmem:[%s922] ss:$8 sm:$0x7]
    %v932 = vcombine.low %v707, %v708
    %v933 = vcombine.low %v709, %v710
    %v934 = vcombine.low %v711, %v712
    %v935 = vcombine.low %v713, %v714
    %v937 = vunpack.c.l.s4 1966171168
    %v938 = vunpack.c.0.s8 %v937
    %v939 = vlaneseq
    %v940 = vshrl.u32 %v939, 7
    %v941 = vsub.s32 %v938, %v940
    %v942 = vrot.slane %v932, %v941
    %v944 = vunpack.c.l.s4 1966171168
    %v945 = vunpack.c.0.s8 %v944
    %v946 = vlaneseq
    %v947 = vshrl.u32 %v946, 7
    %v948 = vsub.s32 %v945, %v947
    %v949 = vrot.slane %v933, %v948
    %v951 = vunpack.c.l.s4 1966171168
    %v952 = vunpack.c.0.s8 %v951
    %v953 = vlaneseq
    %v954 = vshrl.u32 %v953, 7
    %v955 = vsub.s32 %v952, %v954
    %v956 = vrot.slane %v934, %v955
    %v958 = vunpack.c.l.s4 1966171168
    %v959 = vunpack.c.0.s8 %v958
    %v960 = vlaneseq
    %v961 = vshrl.u32 %v960, 7
    %v962 = vsub.s32 %v959, %v961
    %v963 = vrot.slane %v935, %v962
    %v964 = vcombine.low %v942, %v949
    %v965 = vcombine.low %v956, %v963
    %v967 = vunpack.c.l.s4 1966171168
    %v968 = vunpack.c.0.s8 %v967
    %v969 = vlaneseq
    %v970 = vshrl.u32 %v969, 7
    %v971 = vsub.s32 %v968, %v970
    %v972 = vrot.slane %v964, %v971
    %v974 = vunpack.c.l.s4 1966171168
    %v975 = vunpack.c.0.s8 %v974
    %v976 = vlaneseq
    %v977 = vshrl.u32 %v976, 7
    %v978 = vsub.s32 %v975, %v977
    %v979 = vrot.slane %v965, %v978
    %v980 = vcombine.low %v972, %v979
    %982 = vmatprep.subr.mxu0 %v53
    %983 = vmatpush1.msra.mxu0 %v52
    %984 = vmatprep.subr.mxu0 %v56
    %985 = vmatpush1.msra.mxu0 %v55
    %986 = vmatprep.subr.mxu0 %v59
    %987 = vmatpush1.msra.mxu0 %v58
    %988 = vmatprep.subr.mxu0 %v62
    %989 = vmatpush1.msra.mxu0 %v61
    %990 = vmatprep.subr.mxu0 %v65
    %991 = vmatpush1.msra.mxu0 %v64
    %992 = vmatprep.subr.mxu0 %v68
    %993 = vmatpush1.msra.mxu0 %v67
    %994 = vmatprep.subr.mxu0 %v71
    %995 = vmatpush1.msra.mxu0 %v70
    %996 = vmatprep.subr.mxu0 %v74
    %997 = vmatpush1.msra.mxu0 %v73
    %998 = vmatprep.subr.mxu0 %v77
    %999 = vmatpush1.msra.mxu0 %v76
    %1000 = vmatprep.subr.mxu0 %v80
    %1001 = vmatpush1.msra.mxu0 %v79
    %1002 = vmatprep.subr.mxu0 %v83
    %1003 = vmatpush1.msra.mxu0 %v82
    %1004 = vmatprep.subr.mxu0 %v86
    %1005 = vmatpush1.msra.mxu0 %v85
    %1006 = vmatprep.subr.mxu0 %v89
    %1007 = vmatpush1.msra.mxu0 %v88
    %1008 = vmatprep.subr.mxu0 %v92
    %1009 = vmatpush1.msra.mxu0 %v91
    %1010 = vmatprep.subr.mxu0 %v95
    %1011 = vmatpush1.msra.mxu0 %v94
    %1012 = vmatprep.subr.mxu0 %v98
    %1013 = vmatpush1.msra.mxu0 %v97
    %1014 = vmatprep.subr.mxu0 0.0
    %1015 = vmatpush1.msra.mxu0 0.0
    %1016 = vmatprep.subr.mxu0 0.0
    %1017 = vmatpush1.msra.mxu0 0.0
    %1018 = vmatprep.subr.mxu0 0.0
    %1019 = vmatpush1.msra.mxu0 0.0
    %1020 = vmatprep.subr.mxu0 0.0
    %1021 = vmatpush1.msra.mxu0 0.0
    %1022 = vmatprep.subr.mxu0 0.0
    %1023 = vmatpush1.msra.mxu0 0.0
    %1024 = vmatprep.subr.mxu0 0.0
    %1025 = vmatpush1.msra.mxu0 0.0
    %1026 = vmatprep.subr.mxu0 0.0
    %1027 = vmatpush1.msra.mxu0 0.0
    %1028 = vmatprep.subr.mxu0 0.0
    %1029 = vmatpush1.msra.mxu0 0.0
    %1030 = vmatprep.subr.mxu0 0.0
    %1031 = vmatpush1.msra.mxu0 0.0
    %1032 = vmatprep.subr.mxu0 0.0
    %1033 = vmatpush1.msra.mxu0 0.0
    %1034 = vmatprep.subr.mxu0 0.0
    %1035 = vmatpush1.msra.mxu0 0.0
    %1036 = vmatprep.subr.mxu0 0.0
    %1037 = vmatpush1.msra.mxu0 0.0
    %1038 = vmatprep.subr.mxu0 0.0
    %1039 = vmatpush1.msra.mxu0 0.0
    %1040 = vmatprep.subr.mxu0 0.0
    %1041 = vmatpush1.msra.mxu0 0.0
    %1042 = vmatprep.subr.mxu0 0.0
    %1043 = vmatpush1.msra.mxu0 0.0
    %1044 = vmatprep.subr.mxu0 0.0
    %1045 = vmatpush1.msra.mxu0 0.0
    %1046 = vmatprep.mubr.f32.mxu0 0.0
    %1047 = vmatmul.mubr.f32.gmra.mrb[0].mxu0 %v980
    %v1048 = vpop.f32.mrb[0].mxu0
    %v1049 = vadd.f32 %v122, %v1048
    %v1050 = vpop.f32.mrb[0].mxu0
    %v1051 = vadd.f32 %v126, %v1050
    %1052 = vdwg.mxu0
    %1053 = vmatprep.subr.mxu0 0.0
    %1054 = vmatpush1.msra.mxu0 %v54
    %1055 = vmatprep.subr.mxu0 0.0
    %1056 = vmatpush1.msra.mxu0 %v57
    %1057 = vmatprep.subr.mxu0 0.0
    %1058 = vmatpush1.msra.mxu0 %v60
    %1059 = vmatprep.subr.mxu0 0.0
    %1060 = vmatpush1.msra.mxu0 %v63
    %1061 = vmatprep.subr.mxu0 0.0
    %1062 = vmatpush1.msra.mxu0 %v66
    %1063 = vmatprep.subr.mxu0 0.0
    %1064 = vmatpush1.msra.mxu0 %v69
    %1065 = vmatprep.subr.mxu0 0.0
    %1066 = vmatpush1.msra.mxu0 %v72
    %1067 = vmatprep.subr.mxu0 0.0
    %1068 = vmatpush1.msra.mxu0 %v75
    %1069 = vmatprep.subr.mxu0 0.0
    %1070 = vmatpush1.msra.mxu0 %v78
    %1071 = vmatprep.subr.mxu0 0.0
    %1072 = vmatpush1.msra.mxu0 %v81
    %1073 = vmatprep.subr.mxu0 0.0
    %1074 = vmatpush1.msra.mxu0 %v84
    %1075 = vmatprep.subr.mxu0 0.0
    %1076 = vmatpush1.msra.mxu0 %v87
    %1077 = vmatprep.subr.mxu0 0.0
    %1078 = vmatpush1.msra.mxu0 %v90
    %1079 = vmatprep.subr.mxu0 0.0
    %1080 = vmatpush1.msra.mxu0 %v93
    %1081 = vmatprep.subr.mxu0 0.0
    %1082 = vmatpush1.msra.mxu0 %v96
    %1083 = vmatprep.subr.mxu0 0.0
    %1084 = vmatpush1.msra.mxu0 %v99
    %1085 = vmatprep.subr.mxu0 0.0
    %1086 = vmatpush1.msra.mxu0 0.0
    %1087 = vmatprep.subr.mxu0 0.0
    %1088 = vmatpush1.msra.mxu0 0.0
    %1089 = vmatprep.subr.mxu0 0.0
    %1090 = vmatpush1.msra.mxu0 0.0
    %1091 = vmatprep.subr.mxu0 0.0
    %1092 = vmatpush1.msra.mxu0 0.0
    %1093 = vmatprep.subr.mxu0 0.0
    %1094 = vmatpush1.msra.mxu0 0.0
    %1095 = vmatprep.subr.mxu0 0.0
    %1096 = vmatpush1.msra.mxu0 0.0
    %1097 = vmatprep.subr.mxu0 0.0
    %1098 = vmatpush1.msra.mxu0 0.0
    %1099 = vmatprep.subr.mxu0 0.0
    %1100 = vmatpush1.msra.mxu0 0.0
    %1101 = vmatprep.subr.mxu0 0.0
    %1102 = vmatpush1.msra.mxu0 0.0
    %1103 = vmatprep.subr.mxu0 0.0
    %1104 = vmatpush1.msra.mxu0 0.0
    %1105 = vmatprep.subr.mxu0 0.0
    %1106 = vmatpush1.msra.mxu0 0.0
    %1107 = vmatprep.subr.mxu0 0.0
    %1108 = vmatpush1.msra.mxu0 0.0
    %1109 = vmatprep.subr.mxu0 0.0
    %1110 = vmatpush1.msra.mxu0 0.0
    %1111 = vmatprep.subr.mxu0 0.0
    %1112 = vmatpush1.msra.mxu0 0.0
    %1113 = vmatprep.subr.mxu0 0.0
    %1114 = vmatpush1.msra.mxu0 0.0
    %1115 = vmatprep.subr.mxu0 0.0
    %1116 = vmatpush1.msra.mxu0 0.0
    %1117 = vmatprep.mubr.f32.mxu0 0.0
    %1118 = vmatmul.mubr.f32.gmra.mrb[0].mxu0 %v980
    %v1119 = vpop.f32.mrb[0].mxu0
    %v1120 = vadd.f32 %v130, %v1119
    %v1121 = vpop.f32.mrb[0].mxu0
    %1122 = vdwg.mxu0
    %v1124 = vcombine.high %v1049, %v1049
    %v1126 = vunpack.c.l.s4 1966171168
    %v1127 = vunpack.c.0.s8 %v1126
    %v1128 = vlaneseq
    %v1129 = vshrl.u32 %v1128, 7
    %v1130 = vsub.s32 %v1127, %v1129
    %v1131 = vrot.slane %v1049, %v1130
    %v1133 = vunpack.c.l.s4 1966171168
    %v1134 = vunpack.c.0.s8 %v1133
    %v1135 = vlaneseq
    %v1136 = vshrl.u32 %v1135, 7
    %v1137 = vsub.s32 %v1134, %v1136
    %v1138 = vrot.slane %v1124, %v1137
    %v1139 = vcombine.high %v1131, %v1131
    %v1140 = vcombine.high %v1138, %v1138
    %v1142 = vunpack.c.l.s4 1966171168
    %v1143 = vunpack.c.0.s8 %v1142
    %v1144 = vlaneseq
    %v1145 = vshrl.u32 %v1144, 7
    %v1146 = vsub.s32 %v1143, %v1145
    %v1147 = vrot.slane %v1131, %v1146
    %v1149 = vunpack.c.l.s4 1966171168
    %v1150 = vunpack.c.0.s8 %v1149
    %v1151 = vlaneseq
    %v1152 = vshrl.u32 %v1151, 7
    %v1153 = vsub.s32 %v1150, %v1152
    %v1154 = vrot.slane %v1138, %v1153
    %v1156 = vunpack.c.l.s4 1966171168
    %v1157 = vunpack.c.0.s8 %v1156
    %v1158 = vlaneseq
    %v1159 = vshrl.u32 %v1158, 7
    %v1160 = vsub.s32 %v1157, %v1159
    %v1161 = vrot.slane %v1139, %v1160
    %v1163 = vunpack.c.l.s4 1966171168
    %v1164 = vunpack.c.0.s8 %v1163
    %v1165 = vlaneseq
    %v1166 = vshrl.u32 %v1165, 7
    %v1167 = vsub.s32 %v1164, %v1166
    %v1168 = vrot.slane %v1140, %v1167
    %v1169 = vcombine.high %v1147, %v1147
    %v1170 = vcombine.high %v1154, %v1154
    %v1171 = vcombine.high %v1161, %v1161
    %v1172 = vcombine.high %v1168, %v1168
    %v1181 = vadd.f32 %v909, %v1147
    %v1182 = vadd.f32 %v911, %v1161
    %v1183 = vadd.f32 %v913, %v1169
    %v1184 = vadd.f32 %v915, %v1171
    %v1185 = vadd.f32 %v917, %v1154
    %v1186 = vadd.f32 %v919, %v1168
    %v1187 = vadd.f32 %v921, %v1170
    %v1188 = vadd.f32 %v923, %v1172
    %v1189 = vxor.u32 %v1181, 2147483648
    %v1190 = vxor.u32 %v1182, 2147483648
    %v1191 = vxor.u32 %v1183, 2147483648
    %v1192 = vxor.u32 %v1184, 2147483648
    %v1193 = vxor.u32 %v1185, 2147483648
    %v1194 = vxor.u32 %v1186, 2147483648
    %v1195 = vxor.u32 %v1187, 2147483648
    %v1196 = vxor.u32 %v1188, 2147483648
    %v1197 = vmul.f32 %v1189, 1.442695
    %v1198 = vpow.pop %v1197
    %v1199 = vmul.f32 %v1190, 1.442695
    %v1200 = vpow.pop %v1199
    %v1201 = vmul.f32 %v1191, 1.442695
    %v1202 = vpow.pop %v1201
    %v1203 = vmul.f32 %v1192, 1.442695
    %v1204 = vpow.pop %v1203
    %v1205 = vmul.f32 %v1193, 1.442695
    %v1206 = vpow.pop %v1205
    %v1207 = vmul.f32 %v1194, 1.442695
    %v1208 = vpow.pop %v1207
    %v1209 = vmul.f32 %v1195, 1.442695
    %v1210 = vpow.pop %v1209
    %v1211 = vmul.f32 %v1196, 1.442695
    %v1212 = vpow.pop %v1211
    %v1213 = vadd.f32 %v1198, 1.0
    %v1214 = vadd.f32 %v1200, 1.0
    %v1215 = vadd.f32 %v1202, 1.0
    %v1216 = vadd.f32 %v1204, 1.0
    %v1217 = vadd.f32 %v1206, 1.0
    %v1218 = vadd.f32 %v1208, 1.0
    %v1219 = vadd.f32 %v1210, 1.0
    %v1220 = vadd.f32 %v1212, 1.0
    %v1221 = vrcp.pop %v1213
    %v1222 = vmul.f32 1.0, %v1221
    %v1223 = vrcp.pop %v1214
    %v1224 = vmul.f32 1.0, %v1223
    %v1225 = vrcp.pop %v1215
    %v1226 = vmul.f32 1.0, %v1225
    %v1227 = vrcp.pop %v1216
    %v1228 = vmul.f32 1.0, %v1227
    %v1229 = vrcp.pop %v1217
    %v1230 = vmul.f32 1.0, %v1229
    %v1231 = vrcp.pop %v1218
    %v1232 = vmul.f32 1.0, %v1231
    %v1233 = vrcp.pop %v1219
    %v1234 = vmul.f32 1.0, %v1233
    %v1235 = vrcp.pop %v1220
    %v1236 = vmul.f32 1.0, %v1235
    %v1245 = vrot.slane %v909, 1
    %v1246 = vrot.slane %v911, 1
    %v1247 = vrot.slane %v913, 1
    %v1248 = vrot.slane %v915, 1
    %v1249 = vrot.slane %v917, 1
    %v1250 = vrot.slane %v919, 1
    %v1251 = vrot.slane %v921, 1
    %v1252 = vrot.slane %v923, 1
    %v1262 = vcombine.high %v1051, %v1051
    %v1264 = vunpack.c.l.s4 1966171168
    %v1265 = vunpack.c.0.s8 %v1264
    %v1266 = vlaneseq
    %v1267 = vshrl.u32 %v1266, 7
    %v1268 = vsub.s32 %v1265, %v1267
    %v1269 = vrot.slane %v1051, %v1268
    %v1271 = vunpack.c.l.s4 1966171168
    %v1272 = vunpack.c.0.s8 %v1271
    %v1273 = vlaneseq
    %v1274 = vshrl.u32 %v1273, 7
    %v1275 = vsub.s32 %v1272, %v1274
    %v1276 = vrot.slane %v1262, %v1275
    %v1277 = vcombine.high %v1269, %v1269
    %v1278 = vcombine.high %v1276, %v1276
    %v1280 = vunpack.c.l.s4 1966171168
    %v1281 = vunpack.c.0.s8 %v1280
    %v1282 = vlaneseq
    %v1283 = vshrl.u32 %v1282, 7
    %v1284 = vsub.s32 %v1281, %v1283
    %v1285 = vrot.slane %v1269, %v1284
    %v1287 = vunpack.c.l.s4 1966171168
    %v1288 = vunpack.c.0.s8 %v1287
    %v1289 = vlaneseq
    %v1290 = vshrl.u32 %v1289, 7
    %v1291 = vsub.s32 %v1288, %v1290
    %v1292 = vrot.slane %v1276, %v1291
    %v1294 = vunpack.c.l.s4 1966171168
    %v1295 = vunpack.c.0.s8 %v1294
    %v1296 = vlaneseq
    %v1297 = vshrl.u32 %v1296, 7
    %v1298 = vsub.s32 %v1295, %v1297
    %v1299 = vrot.slane %v1277, %v1298
    %v1301 = vunpack.c.l.s4 1966171168
    %v1302 = vunpack.c.0.s8 %v1301
    %v1303 = vlaneseq
    %v1304 = vshrl.u32 %v1303, 7
    %v1305 = vsub.s32 %v1302, %v1304
    %v1306 = vrot.slane %v1278, %v1305
    %v1307 = vcombine.high %v1285, %v1285
    %v1308 = vcombine.high %v1292, %v1292
    %v1309 = vcombine.high %v1299, %v1299
    %v1310 = vcombine.high %v1306, %v1306
    %v1319 = vadd.f32 %v1245, %v1285
    %v1320 = vadd.f32 %v1246, %v1299
    %v1321 = vadd.f32 %v1247, %v1307
    %v1322 = vadd.f32 %v1248, %v1309
    %v1323 = vadd.f32 %v1249, %v1292
    %v1324 = vadd.f32 %v1250, %v1306
    %v1325 = vadd.f32 %v1251, %v1308
    %v1326 = vadd.f32 %v1252, %v1310
    %v1327 = vxor.u32 %v1319, 2147483648
    %v1328 = vxor.u32 %v1320, 2147483648
    %v1329 = vxor.u32 %v1321, 2147483648
    %v1330 = vxor.u32 %v1322, 2147483648
    %v1331 = vxor.u32 %v1323, 2147483648
    %v1332 = vxor.u32 %v1324, 2147483648
    %v1333 = vxor.u32 %v1325, 2147483648
    %v1334 = vxor.u32 %v1326, 2147483648
    %v1335 = vmul.f32 %v1327, 1.442695
    %v1336 = vpow.pop %v1335
    %v1337 = vmul.f32 %v1328, 1.442695
    %v1338 = vpow.pop %v1337
    %v1339 = vmul.f32 %v1329, 1.442695
    %v1340 = vpow.pop %v1339
    %v1341 = vmul.f32 %v1330, 1.442695
    %v1342 = vpow.pop %v1341
    %v1343 = vmul.f32 %v1331, 1.442695
    %v1344 = vpow.pop %v1343
    %v1345 = vmul.f32 %v1332, 1.442695
    %v1346 = vpow.pop %v1345
    %v1347 = vmul.f32 %v1333, 1.442695
    %v1348 = vpow.pop %v1347
    %v1349 = vmul.f32 %v1334, 1.442695
    %v1350 = vpow.pop %v1349
    %v1351 = vadd.f32 %v1336, 1.0
    %v1352 = vadd.f32 %v1338, 1.0
    %v1353 = vadd.f32 %v1340, 1.0
    %v1354 = vadd.f32 %v1342, 1.0
    %v1355 = vadd.f32 %v1344, 1.0
    %v1356 = vadd.f32 %v1346, 1.0
    %v1357 = vadd.f32 %v1348, 1.0
    %v1358 = vadd.f32 %v1350, 1.0
    %v1359 = vrcp.pop %v1351
    %v1360 = vmul.f32 1.0, %v1359
    %v1361 = vrcp.pop %v1352
    %v1362 = vmul.f32 1.0, %v1361
    %v1363 = vrcp.pop %v1353
    %v1364 = vmul.f32 1.0, %v1363
    %v1365 = vrcp.pop %v1354
    %v1366 = vmul.f32 1.0, %v1365
    %v1367 = vrcp.pop %v1355
    %v1368 = vmul.f32 1.0, %v1367
    %v1369 = vrcp.pop %v1356
    %v1370 = vmul.f32 1.0, %v1369
    %v1371 = vrcp.pop %v1357
    %v1372 = vmul.f32 1.0, %v1371
    %v1373 = vrcp.pop %v1358
    %v1374 = vmul.f32 1.0, %v1373
    %v1376 = vcombine.high %v1120, %v1120
    %v1378 = vunpack.c.l.s4 1966171168
    %v1379 = vunpack.c.0.s8 %v1378
    %v1380 = vlaneseq
    %v1381 = vshrl.u32 %v1380, 7
    %v1382 = vsub.s32 %v1379, %v1381
    %v1383 = vrot.slane %v1120, %v1382
    %v1385 = vunpack.c.l.s4 1966171168
    %v1386 = vunpack.c.0.s8 %v1385
    %v1387 = vlaneseq
    %v1388 = vshrl.u32 %v1387, 7
    %v1389 = vsub.s32 %v1386, %v1388
    %v1390 = vrot.slane %v1376, %v1389
    %v1391 = vcombine.high %v1383, %v1383
    %v1392 = vcombine.high %v1390, %v1390
    %v1394 = vunpack.c.l.s4 1966171168
    %v1395 = vunpack.c.0.s8 %v1394
    %v1396 = vlaneseq
    %v1397 = vshrl.u32 %v1396, 7
    %v1398 = vsub.s32 %v1395, %v1397
    %v1399 = vrot.slane %v1383, %v1398
    %v1401 = vunpack.c.l.s4 1966171168
    %v1402 = vunpack.c.0.s8 %v1401
    %v1403 = vlaneseq
    %v1404 = vshrl.u32 %v1403, 7
    %v1405 = vsub.s32 %v1402, %v1404
    %v1406 = vrot.slane %v1390, %v1405
    %v1408 = vunpack.c.l.s4 1966171168
    %v1409 = vunpack.c.0.s8 %v1408
    %v1410 = vlaneseq
    %v1411 = vshrl.u32 %v1410, 7
    %v1412 = vsub.s32 %v1409, %v1411
    %v1413 = vrot.slane %v1391, %v1412
    %v1415 = vunpack.c.l.s4 1966171168
    %v1416 = vunpack.c.0.s8 %v1415
    %v1417 = vlaneseq
    %v1418 = vshrl.u32 %v1417, 7
    %v1419 = vsub.s32 %v1416, %v1418
    %v1420 = vrot.slane %v1392, %v1419
    %v1421 = vcombine.high %v1399, %v1399
    %v1422 = vcombine.high %v1406, %v1406
    %v1423 = vcombine.high %v1413, %v1413
    %v1424 = vcombine.high %v1420, %v1420
    %v1433 = vmul.f32 %v1222, %v1399
    %v1434 = vmul.f32 %v1224, %v1413
    %v1435 = vmul.f32 %v1226, %v1421
    %v1436 = vmul.f32 %v1228, %v1423
    %v1437 = vmul.f32 %v1230, %v1406
    %v1438 = vmul.f32 %v1232, %v1420
    %v1439 = vmul.f32 %v1234, %v1422
    %v1440 = vmul.f32 %v1236, %v1424
    %v1441 = vrot.slane %v909, 2
    %v1442 = vrot.slane %v911, 2
    %v1443 = vrot.slane %v913, 2
    %v1444 = vrot.slane %v915, 2
    %v1445 = vrot.slane %v917, 2
    %v1446 = vrot.slane %v919, 2
    %v1447 = vrot.slane %v921, 2
    %v1448 = vrot.slane %v923, 2
    %v1457 = vadd.f32 %v1441, %v1433
    %v1458 = vadd.f32 %v1442, %v1434
    %v1459 = vadd.f32 %v1443, %v1435
    %v1460 = vadd.f32 %v1444, %v1436
    %v1461 = vadd.f32 %v1445, %v1437
    %v1462 = vadd.f32 %v1446, %v1438
    %v1463 = vadd.f32 %v1447, %v1439
    %v1464 = vadd.f32 %v1448, %v1440
    %v1465 = vtanh.pop %v1457
    %v1466 = vtanh.pop %v1458
    %v1467 = vtanh.pop %v1459
    %v1468 = vtanh.pop %v1460
    %v1469 = vtanh.pop %v1461
    %v1470 = vtanh.pop %v1462
    %v1471 = vtanh.pop %v1463
    %v1472 = vtanh.pop %v1464
    %v1473 = vsub.f32 1.0, %v1360
    %v1474 = vsub.f32 1.0, %v1362
    %v1475 = vsub.f32 1.0, %v1364
    %v1476 = vsub.f32 1.0, %v1366
    %v1477 = vsub.f32 1.0, %v1368
    %v1478 = vsub.f32 1.0, %v1370
    %v1479 = vsub.f32 1.0, %v1372
    %v1480 = vsub.f32 1.0, %v1374
    %v1481 = vmul.f32 %v1473, %v1465
    %v1482 = vmul.f32 %v1474, %v1466
    %v1483 = vmul.f32 %v1475, %v1467
    %v1484 = vmul.f32 %v1476, %v1468
    %v1485 = vmul.f32 %v1477, %v1469
    %v1486 = vmul.f32 %v1478, %v1470
    %v1487 = vmul.f32 %v1479, %v1471
    %v1488 = vmul.f32 %v1480, %v1472
    %v1489 = vmul.f32 %v1360, %v707
    %v1490 = vmul.f32 %v1362, %v708
    %v1491 = vmul.f32 %v1364, %v709
    %v1492 = vmul.f32 %v1366, %v710
    %v1493 = vmul.f32 %v1368, %v711
    %v1494 = vmul.f32 %v1370, %v712
    %v1495 = vmul.f32 %v1372, %v713
    %v1496 = vmul.f32 %v1374, %v714
    %v1497 = vadd.f32 %v1481, %v1489
    %v1498 = vadd.f32 %v1482, %v1490
    %v1499 = vadd.f32 %v1483, %v1491
    %v1500 = vadd.f32 %v1484, %v1492
    %v1501 = vadd.f32 %v1485, %v1493
    %v1502 = vadd.f32 %v1486, %v1494
    %v1503 = vadd.f32 %v1487, %v1495
    %v1504 = vadd.f32 %v1488, %v1496
    %s1505 = sadd.s32 %s102, 1
    %v1506 = vstv %s1505
    %vm1507 = vcmp.gt.s32.totalorder %v51, %v1506
    %v1508 = vsel %vm1507, 1, 0
    %v1509 = vcvt.s32.f32 %v1508
    %1511 = vset.pattern.permute.xlu0 0
    %1512 = vperm.xlu0 %1511, %v1509
    %v1513 = vpop.permute.xlu0 %1512
    %v1514 = vlaneseq
    %v1515 = vshrl.u32 %v1514, 7
    %v1516 = vsub.s32 0, %v1515
    %v1517 = vrot.slane %v1513, %v1516
    %v1518 = vlaneseq
    %v1519 = vshrl.u32 %v1518, 7
    %v1520 = vsub.s32 1, %v1519
    %v1521 = vrot.slane %v1513, %v1520
    %v1522 = vlaneseq
    %v1523 = vshrl.u32 %v1522, 7
    %v1524 = vsub.s32 2, %v1523
    %v1525 = vrot.slane %v1513, %v1524
    %v1526 = vlaneseq
    %v1527 = vshrl.u32 %v1526, 7
    %v1528 = vsub.s32 3, %v1527
    %v1529 = vrot.slane %v1513, %v1528
    %v1530 = vlaneseq
    %v1531 = vshrl.u32 %v1530, 7
    %v1532 = vsub.s32 4, %v1531
    %v1533 = vrot.slane %v1513, %v1532
    %v1534 = vlaneseq
    %v1535 = vshrl.u32 %v1534, 7
    %v1536 = vsub.s32 5, %v1535
    %v1537 = vrot.slane %v1513, %v1536
    %v1538 = vlaneseq
    %v1539 = vshrl.u32 %v1538, 7
    %v1540 = vsub.s32 6, %v1539
    %v1541 = vrot.slane %v1513, %v1540
    %v1542 = vlaneseq
    %v1543 = vshrl.u32 %v1542, 7
    %v1544 = vsub.s32 7, %v1543
    %v1545 = vrot.slane %v1513, %v1544
    %v1554 = vmul.f32 %v1497, %v1517
    %v1555 = vmul.f32 %v1498, %v1521
    %v1556 = vmul.f32 %v1499, %v1525
    %v1557 = vmul.f32 %v1500, %v1529
    %v1558 = vmul.f32 %v1501, %v1533
    %v1559 = vmul.f32 %v1502, %v1537
    %v1560 = vmul.f32 %v1503, %v1541
    %v1561 = vmul.f32 %v1504, %v1545
    %v1562 = vmul.f32 %v1554, %v1554
    %v1563 = vmul.f32 %v1555, %v1555
    %v1564 = vmul.f32 %v1556, %v1556
    %v1565 = vmul.f32 %v1557, %v1557
    %v1566 = vmul.f32 %v1558, %v1558
    %v1567 = vmul.f32 %v1559, %v1559
    %v1568 = vmul.f32 %v1560, %v1560
    %v1569 = vmul.f32 %v1561, %v1561
    %v1578 = vcombine.low %v1562, %v1563
    %v1579 = vcombine.low %v1564, %v1565
    %v1580 = vcombine.low %v1566, %v1567
    %v1581 = vcombine.low %v1568, %v1569
    %v1583 = vunpack.c.l.s4 1966171168
    %v1584 = vunpack.c.0.s8 %v1583
    %v1585 = vlaneseq
    %v1586 = vshrl.u32 %v1585, 7
    %v1587 = vsub.s32 %v1584, %v1586
    %v1588 = vrot.slane %v1578, %v1587
    %v1590 = vunpack.c.l.s4 1966171168
    %v1591 = vunpack.c.0.s8 %v1590
    %v1592 = vlaneseq
    %v1593 = vshrl.u32 %v1592, 7
    %v1594 = vsub.s32 %v1591, %v1593
    %v1595 = vrot.slane %v1579, %v1594
    %v1597 = vunpack.c.l.s4 1966171168
    %v1598 = vunpack.c.0.s8 %v1597
    %v1599 = vlaneseq
    %v1600 = vshrl.u32 %v1599, 7
    %v1601 = vsub.s32 %v1598, %v1600
    %v1602 = vrot.slane %v1580, %v1601
    %v1604 = vunpack.c.l.s4 1966171168
    %v1605 = vunpack.c.0.s8 %v1604
    %v1606 = vlaneseq
    %v1607 = vshrl.u32 %v1606, 7
    %v1608 = vsub.s32 %v1605, %v1607
    %v1609 = vrot.slane %v1581, %v1608
    %v1610 = vcombine.low %v1588, %v1595
    %v1611 = vcombine.low %v1602, %v1609
    %v1613 = vunpack.c.l.s4 1966171168
    %v1614 = vunpack.c.0.s8 %v1613
    %v1615 = vlaneseq
    %v1616 = vshrl.u32 %v1615, 7
    %v1617 = vsub.s32 %v1614, %v1616
    %v1618 = vrot.slane %v1610, %v1617
    %v1620 = vunpack.c.l.s4 1966171168
    %v1621 = vunpack.c.0.s8 %v1620
    %v1622 = vlaneseq
    %v1623 = vshrl.u32 %v1622, 7
    %v1624 = vsub.s32 %v1621, %v1623
    %v1625 = vrot.slane %v1611, %v1624
    %v1626 = vcombine.low %v1618, %v1625
    %1628 = vadd.xlane.f32.xlu0 %v1626
    %v1629 = vpop.xlane.xlu0 %1628
    %v1630 = vrsqrt.pop %v1629
    %v1631 = vmul.f32 %v1629, %v1630
    %vm1632 = vcmp.eq.f32.partialorder %v1629, inf
    %v1633 = vsel %vm1632, %v1629, %v1631
    %vm1634 = vcmp.eq.f32.partialorder %v1629, 0.0
    %v1635 = vand.u32 %v1629, 2147483648
    %v1636 = vsel %vm1634, %v1635, %v1633
    %v1637 = vadd.f32 %v1636, 1e-08
    %v1638 = vrcp.pop %v1637
    %v1639 = vmul.f32 %v1637, %v1638
    %v1640 = vsub.f32 2.0, %v1639
    %v1641 = vmul.f32 %v1638, %v1640
    %v1643 = vlaneseq
    %v1644 = vshrl.u32 %v1643, 7
    %v1645 = vsub.s32 0, %v1644
    %v1646 = vrot.slane %v1641, %v1645
    %v1647 = vlaneseq
    %v1648 = vshrl.u32 %v1647, 7
    %v1649 = vsub.s32 1, %v1648
    %v1650 = vrot.slane %v1641, %v1649
    %v1651 = vlaneseq
    %v1652 = vshrl.u32 %v1651, 7
    %v1653 = vsub.s32 2, %v1652
    %v1654 = vrot.slane %v1641, %v1653
    %v1655 = vlaneseq
    %v1656 = vshrl.u32 %v1655, 7
    %v1657 = vsub.s32 3, %v1656
    %v1658 = vrot.slane %v1641, %v1657
    %v1659 = vlaneseq
    %v1660 = vshrl.u32 %v1659, 7
    %v1661 = vsub.s32 4, %v1660
    %v1662 = vrot.slane %v1641, %v1661
    %v1663 = vlaneseq
    %v1664 = vshrl.u32 %v1663, 7
    %v1665 = vsub.s32 5, %v1664
    %v1666 = vrot.slane %v1641, %v1665
    %v1667 = vlaneseq
    %v1668 = vshrl.u32 %v1667, 7
    %v1669 = vsub.s32 6, %v1668
    %v1670 = vrot.slane %v1641, %v1669
    %v1671 = vlaneseq
    %v1672 = vshrl.u32 %v1671, 7
    %v1673 = vsub.s32 7, %v1672
    %v1674 = vrot.slane %v1641, %v1673
    %v1683 = vmul.f32 %v1554, %v1646
    %v1684 = vmul.f32 %v1555, %v1650
    %v1685 = vmul.f32 %v1556, %v1654
    %v1686 = vmul.f32 %v1557, %v1658
    %v1687 = vmul.f32 %v1558, %v1662
    %v1688 = vmul.f32 %v1559, %v1666
    %v1689 = vmul.f32 %v1560, %v1670
    %v1690 = vmul.f32 %v1561, %v1674
    %1691 = vst [vmem:[#allocation8 + $0x1] sm:$0x1] %v1683
    %1692 = vst [vmem:[#allocation8 + $0x9] sm:$0x1] %v1684
    %1693 = vst [vmem:[#allocation8 + $0x11] sm:$0x1] %v1685
    %1694 = vst [vmem:[#allocation8 + $0x19] sm:$0x1] %v1686
    %1695 = vst [vmem:[#allocation8 + $0x21] sm:$0x1] %v1687
    %1696 = vst [vmem:[#allocation8 + $0x29] sm:$0x1] %v1688
    %1697 = vst [vmem:[#allocation8 + $0x31] sm:$0x1] %v1689
    %1698 = vst [vmem:[#allocation8 + $0x39] sm:$0x1] %v1690
    %s1699 = scalar_lea.vmem [#allocation3], 2
    %v1700 = vld [vmem:[%s1699] ss:$8 sm:$0x7]
    %s1701 = scalar_lea.vmem [#allocation3], 26
    %v1702 = vld [vmem:[%s1701] ss:$8 sm:$0x7]
    %s1703 = scalar_lea.vmem [#allocation3], 50
    %v1704 = vld [vmem:[%s1703] ss:$8 sm:$0x7]
    %s1705 = scalar_lea.vmem [#allocation3], 74
    %v1706 = vld [vmem:[%s1705] ss:$8 sm:$0x7]
    %s1707 = scalar_lea.vmem [#allocation3], 98
    %v1708 = vld [vmem:[%s1707] ss:$8 sm:$0x7]
    %s1709 = scalar_lea.vmem [#allocation3], 122
    %v1710 = vld [vmem:[%s1709] ss:$8 sm:$0x7]
    %s1711 = scalar_lea.vmem [#allocation3], 146
    %v1712 = vld [vmem:[%s1711] ss:$8 sm:$0x7]
    %s1713 = scalar_lea.vmem [#allocation3], 170
    %v1714 = vld [vmem:[%s1713] ss:$8 sm:$0x7]
    %v1723 = vcombine.low %v1497, %v1498
    %v1724 = vcombine.low %v1499, %v1500
    %v1725 = vcombine.low %v1501, %v1502
    %v1726 = vcombine.low %v1503, %v1504
    %v1728 = vunpack.c.l.s4 1966171168
    %v1729 = vunpack.c.0.s8 %v1728
    %v1730 = vlaneseq
    %v1731 = vshrl.u32 %v1730, 7
    %v1732 = vsub.s32 %v1729, %v1731
    %v1733 = vrot.slane %v1723, %v1732
    %v1735 = vunpack.c.l.s4 1966171168
    %v1736 = vunpack.c.0.s8 %v1735
    %v1737 = vlaneseq
    %v1738 = vshrl.u32 %v1737, 7
    %v1739 = vsub.s32 %v1736, %v1738
    %v1740 = vrot.slane %v1724, %v1739
    %v1742 = vunpack.c.l.s4 1966171168
    %v1743 = vunpack.c.0.s8 %v1742
    %v1744 = vlaneseq
    %v1745 = vshrl.u32 %v1744, 7
    %v1746 = vsub.s32 %v1743, %v1745
    %v1747 = vrot.slane %v1725, %v1746
    %v1749 = vunpack.c.l.s4 1966171168
    %v1750 = vunpack.c.0.s8 %v1749
    %v1751 = vlaneseq
    %v1752 = vshrl.u32 %v1751, 7
    %v1753 = vsub.s32 %v1750, %v1752
    %v1754 = vrot.slane %v1726, %v1753
    %v1755 = vcombine.low %v1733, %v1740
    %v1756 = vcombine.low %v1747, %v1754
    %v1758 = vunpack.c.l.s4 1966171168
    %v1759 = vunpack.c.0.s8 %v1758
    %v1760 = vlaneseq
    %v1761 = vshrl.u32 %v1760, 7
    %v1762 = vsub.s32 %v1759, %v1761
    %v1763 = vrot.slane %v1755, %v1762
    %v1765 = vunpack.c.l.s4 1966171168
    %v1766 = vunpack.c.0.s8 %v1765
    %v1767 = vlaneseq
    %v1768 = vshrl.u32 %v1767, 7
    %v1769 = vsub.s32 %v1766, %v1768
    %v1770 = vrot.slane %v1756, %v1769
    %v1771 = vcombine.low %v1763, %v1770
    %1773 = vmatprep.subr.mxu0 %v53
    %1774 = vmatpush1.msra.mxu0 %v52
    %1775 = vmatprep.subr.mxu0 %v56
    %1776 = vmatpush1.msra.mxu0 %v55
    %1777 = vmatprep.subr.mxu0 %v59
    %1778 = vmatpush1.msra.mxu0 %v58
    %1779 = vmatprep.subr.mxu0 %v62
    %1780 = vmatpush1.msra.mxu0 %v61
    %1781 = vmatprep.subr.mxu0 %v65
    %1782 = vmatpush1.msra.mxu0 %v64
    %1783 = vmatprep.subr.mxu0 %v68
    %1784 = vmatpush1.msra.mxu0 %v67
    %1785 = vmatprep.subr.mxu0 %v71
    %1786 = vmatpush1.msra.mxu0 %v70
    %1787 = vmatprep.subr.mxu0 %v74
    %1788 = vmatpush1.msra.mxu0 %v73
    %1789 = vmatprep.subr.mxu0 %v77
    %1790 = vmatpush1.msra.mxu0 %v76
    %1791 = vmatprep.subr.mxu0 %v80
    %1792 = vmatpush1.msra.mxu0 %v79
    %1793 = vmatprep.subr.mxu0 %v83
    %1794 = vmatpush1.msra.mxu0 %v82
    %1795 = vmatprep.subr.mxu0 %v86
    %1796 = vmatpush1.msra.mxu0 %v85
    %1797 = vmatprep.subr.mxu0 %v89
    %1798 = vmatpush1.msra.mxu0 %v88
    %1799 = vmatprep.subr.mxu0 %v92
    %1800 = vmatpush1.msra.mxu0 %v91
    %1801 = vmatprep.subr.mxu0 %v95
    %1802 = vmatpush1.msra.mxu0 %v94
    %1803 = vmatprep.subr.mxu0 %v98
    %1804 = vmatpush1.msra.mxu0 %v97
    %1805 = vmatprep.subr.mxu0 0.0
    %1806 = vmatpush1.msra.mxu0 0.0
    %1807 = vmatprep.subr.mxu0 0.0
    %1808 = vmatpush1.msra.mxu0 0.0
    %1809 = vmatprep.subr.mxu0 0.0
    %1810 = vmatpush1.msra.mxu0 0.0
    %1811 = vmatprep.subr.mxu0 0.0
    %1812 = vmatpush1.msra.mxu0 0.0
    %1813 = vmatprep.subr.mxu0 0.0
    %1814 = vmatpush1.msra.mxu0 0.0
    %1815 = vmatprep.subr.mxu0 0.0
    %1816 = vmatpush1.msra.mxu0 0.0
    %1817 = vmatprep.subr.mxu0 0.0
    %1818 = vmatpush1.msra.mxu0 0.0
    %1819 = vmatprep.subr.mxu0 0.0
    %1820 = vmatpush1.msra.mxu0 0.0
    %1821 = vmatprep.subr.mxu0 0.0
    %1822 = vmatpush1.msra.mxu0 0.0
    %1823 = vmatprep.subr.mxu0 0.0
    %1824 = vmatpush1.msra.mxu0 0.0
    %1825 = vmatprep.subr.mxu0 0.0
    %1826 = vmatpush1.msra.mxu0 0.0
    %1827 = vmatprep.subr.mxu0 0.0
    %1828 = vmatpush1.msra.mxu0 0.0
    %1829 = vmatprep.subr.mxu0 0.0
    %1830 = vmatpush1.msra.mxu0 0.0
    %1831 = vmatprep.subr.mxu0 0.0
    %1832 = vmatpush1.msra.mxu0 0.0
    %1833 = vmatprep.subr.mxu0 0.0
    %1834 = vmatpush1.msra.mxu0 0.0
    %1835 = vmatprep.subr.mxu0 0.0
    %1836 = vmatpush1.msra.mxu0 0.0
    %1837 = vmatprep.mubr.f32.mxu0 0.0
    %1838 = vmatmul.mubr.f32.gmra.mrb[0].mxu0 %v1771
    %v1839 = vpop.f32.mrb[0].mxu0
    %v1840 = vadd.f32 %v122, %v1839
    %v1841 = vpop.f32.mrb[0].mxu0
    %v1842 = vadd.f32 %v126, %v1841
    %1843 = vdwg.mxu0
    %1844 = vmatprep.subr.mxu0 0.0
    %1845 = vmatpush1.msra.mxu0 %v54
    %1846 = vmatprep.subr.mxu0 0.0
    %1847 = vmatpush1.msra.mxu0 %v57
    %1848 = vmatprep.subr.mxu0 0.0
    %1849 = vmatpush1.msra.mxu0 %v60
    %1850 = vmatprep.subr.mxu0 0.0
    %1851 = vmatpush1.msra.mxu0 %v63
    %1852 = vmatprep.subr.mxu0 0.0
    %1853 = vmatpush1.msra.mxu0 %v66
    %1854 = vmatprep.subr.mxu0 0.0
    %1855 = vmatpush1.msra.mxu0 %v69
    %1856 = vmatprep.subr.mxu0 0.0
    %1857 = vmatpush1.msra.mxu0 %v72
    %1858 = vmatprep.subr.mxu0 0.0
    %1859 = vmatpush1.msra.mxu0 %v75
    %1860 = vmatprep.subr.mxu0 0.0
    %1861 = vmatpush1.msra.mxu0 %v78
    %1862 = vmatprep.subr.mxu0 0.0
    %1863 = vmatpush1.msra.mxu0 %v81
    %1864 = vmatprep.subr.mxu0 0.0
    %1865 = vmatpush1.msra.mxu0 %v84
    %1866 = vmatprep.subr.mxu0 0.0
    %1867 = vmatpush1.msra.mxu0 %v87
    %1868 = vmatprep.subr.mxu0 0.0
    %1869 = vmatpush1.msra.mxu0 %v90
    %1870 = vmatprep.subr.mxu0 0.0
    %1871 = vmatpush1.msra.mxu0 %v93
    %1872 = vmatprep.subr.mxu0 0.0
    %1873 = vmatpush1.msra.mxu0 %v96
    %1874 = vmatprep.subr.mxu0 0.0
    %1875 = vmatpush1.msra.mxu0 %v99
    %1876 = vmatprep.subr.mxu0 0.0
    %1877 = vmatpush1.msra.mxu0 0.0
    %1878 = vmatprep.subr.mxu0 0.0
    %1879 = vmatpush1.msra.mxu0 0.0
    %1880 = vmatprep.subr.mxu0 0.0
    %1881 = vmatpush1.msra.mxu0 0.0
    %1882 = vmatprep.subr.mxu0 0.0
    %1883 = vmatpush1.msra.mxu0 0.0
    %1884 = vmatprep.subr.mxu0 0.0
    %1885 = vmatpush1.msra.mxu0 0.0
    %1886 = vmatprep.subr.mxu0 0.0
    %1887 = vmatpush1.msra.mxu0 0.0
    %1888 = vmatprep.subr.mxu0 0.0
    %1889 = vmatpush1.msra.mxu0 0.0
    %1890 = vmatprep.subr.mxu0 0.0
    %1891 = vmatpush1.msra.mxu0 0.0
    %1892 = vmatprep.subr.mxu0 0.0
    %1893 = vmatpush1.msra.mxu0 0.0
    %1894 = vmatprep.subr.mxu0 0.0
    %1895 = vmatpush1.msra.mxu0 0.0
    %1896 = vmatprep.subr.mxu0 0.0
    %1897 = vmatpush1.msra.mxu0 0.0
    %1898 = vmatprep.subr.mxu0 0.0
    %1899 = vmatpush1.msra.mxu0 0.0
    %1900 = vmatprep.subr.mxu0 0.0
    %1901 = vmatpush1.msra.mxu0 0.0
    %1902 = vmatprep.subr.mxu0 0.0
    %1903 = vmatpush1.msra.mxu0 0.0
    %1904 = vmatprep.subr.mxu0 0.0
    %1905 = vmatpush1.msra.mxu0 0.0
    %1906 = vmatprep.subr.mxu0 0.0
    %1907 = vmatpush1.msra.mxu0 0.0
    %1908 = vmatprep.mubr.f32.mxu0 0.0
    %1909 = vmatmul.mubr.f32.gmra.mrb[0].mxu0 %v1771
    %v1910 = vpop.f32.mrb[0].mxu0
    %v1911 = vadd.f32 %v130, %v1910
    %v1912 = vpop.f32.mrb[0].mxu0
    %1913 = vdwg.mxu0
    %v1915 = vcombine.high %v1840, %v1840
    %v1917 = vunpack.c.l.s4 1966171168
    %v1918 = vunpack.c.0.s8 %v1917
    %v1919 = vlaneseq
    %v1920 = vshrl.u32 %v1919, 7
    %v1921 = vsub.s32 %v1918, %v1920
    %v1922 = vrot.slane %v1840, %v1921
    %v1924 = vunpack.c.l.s4 1966171168
    %v1925 = vunpack.c.0.s8 %v1924
    %v1926 = vlaneseq
    %v1927 = vshrl.u32 %v1926, 7
    %v1928 = vsub.s32 %v1925, %v1927
    %v1929 = vrot.slane %v1915, %v1928
    %v1930 = vcombine.high %v1922, %v1922
    %v1931 = vcombine.high %v1929, %v1929
    %v1933 = vunpack.c.l.s4 1966171168
    %v1934 = vunpack.c.0.s8 %v1933
    %v1935 = vlaneseq
    %v1936 = vshrl.u32 %v1935, 7
    %v1937 = vsub.s32 %v1934, %v1936
    %v1938 = vrot.slane %v1922, %v1937
    %v1940 = vunpack.c.l.s4 1966171168
    %v1941 = vunpack.c.0.s8 %v1940
    %v1942 = vlaneseq
    %v1943 = vshrl.u32 %v1942, 7
    %v1944 = vsub.s32 %v1941, %v1943
    %v1945 = vrot.slane %v1929, %v1944
    %v1947 = vunpack.c.l.s4 1966171168
    %v1948 = vunpack.c.0.s8 %v1947
    %v1949 = vlaneseq
    %v1950 = vshrl.u32 %v1949, 7
    %v1951 = vsub.s32 %v1948, %v1950
    %v1952 = vrot.slane %v1930, %v1951
    %v1954 = vunpack.c.l.s4 1966171168
    %v1955 = vunpack.c.0.s8 %v1954
    %v1956 = vlaneseq
    %v1957 = vshrl.u32 %v1956, 7
    %v1958 = vsub.s32 %v1955, %v1957
    %v1959 = vrot.slane %v1931, %v1958
    %v1960 = vcombine.high %v1938, %v1938
    %v1961 = vcombine.high %v1945, %v1945
    %v1962 = vcombine.high %v1952, %v1952
    %v1963 = vcombine.high %v1959, %v1959
    %v1972 = vadd.f32 %v1700, %v1938
    %v1973 = vadd.f32 %v1702, %v1952
    %v1974 = vadd.f32 %v1704, %v1960
    %v1975 = vadd.f32 %v1706, %v1962
    %v1976 = vadd.f32 %v1708, %v1945
    %v1977 = vadd.f32 %v1710, %v1959
    %v1978 = vadd.f32 %v1712, %v1961
    %v1979 = vadd.f32 %v1714, %v1963
    %v1980 = vxor.u32 %v1972, 2147483648
    %v1981 = vxor.u32 %v1973, 2147483648
    %v1982 = vxor.u32 %v1974, 2147483648
    %v1983 = vxor.u32 %v1975, 2147483648
    %v1984 = vxor.u32 %v1976, 2147483648
    %v1985 = vxor.u32 %v1977, 2147483648
    %v1986 = vxor.u32 %v1978, 2147483648
    %v1987 = vxor.u32 %v1979, 2147483648
    %v1988 = vmul.f32 %v1980, 1.442695
    %v1989 = vpow.pop %v1988
    %v1990 = vmul.f32 %v1981, 1.442695
    %v1991 = vpow.pop %v1990
    %v1992 = vmul.f32 %v1982, 1.442695
    %v1993 = vpow.pop %v1992
    %v1994 = vmul.f32 %v1983, 1.442695
    %v1995 = vpow.pop %v1994
    %v1996 = vmul.f32 %v1984, 1.442695
    %v1997 = vpow.pop %v1996
    %v1998 = vmul.f32 %v1985, 1.442695
    %v1999 = vpow.pop %v1998
    %v2000 = vmul.f32 %v1986, 1.442695
    %v2001 = vpow.pop %v2000
    %v2002 = vmul.f32 %v1987, 1.442695
    %v2003 = vpow.pop %v2002
    %v2004 = vadd.f32 %v1989, 1.0
    %v2005 = vadd.f32 %v1991, 1.0
    %v2006 = vadd.f32 %v1993, 1.0
    %v2007 = vadd.f32 %v1995, 1.0
    %v2008 = vadd.f32 %v1997, 1.0
    %v2009 = vadd.f32 %v1999, 1.0
    %v2010 = vadd.f32 %v2001, 1.0
    %v2011 = vadd.f32 %v2003, 1.0
    %v2012 = vrcp.pop %v2004
    %v2013 = vmul.f32 1.0, %v2012
    %v2014 = vrcp.pop %v2005
    %v2015 = vmul.f32 1.0, %v2014
    %v2016 = vrcp.pop %v2006
    %v2017 = vmul.f32 1.0, %v2016
    %v2018 = vrcp.pop %v2007
    %v2019 = vmul.f32 1.0, %v2018
    %v2020 = vrcp.pop %v2008
    %v2021 = vmul.f32 1.0, %v2020
    %v2022 = vrcp.pop %v2009
    %v2023 = vmul.f32 1.0, %v2022
    %v2024 = vrcp.pop %v2010
    %v2025 = vmul.f32 1.0, %v2024
    %v2026 = vrcp.pop %v2011
    %v2027 = vmul.f32 1.0, %v2026
    %v2036 = vrot.slane %v1700, 1
    %v2037 = vrot.slane %v1702, 1
    %v2038 = vrot.slane %v1704, 1
    %v2039 = vrot.slane %v1706, 1
    %v2040 = vrot.slane %v1708, 1
    %v2041 = vrot.slane %v1710, 1
    %v2042 = vrot.slane %v1712, 1
    %v2043 = vrot.slane %v1714, 1
    %v2053 = vcombine.high %v1842, %v1842
    %v2055 = vunpack.c.l.s4 1966171168
    %v2056 = vunpack.c.0.s8 %v2055
    %v2057 = vlaneseq
    %v2058 = vshrl.u32 %v2057, 7
    %v2059 = vsub.s32 %v2056, %v2058
    %v2060 = vrot.slane %v1842, %v2059
    %v2062 = vunpack.c.l.s4 1966171168
    %v2063 = vunpack.c.0.s8 %v2062
    %v2064 = vlaneseq
    %v2065 = vshrl.u32 %v2064, 7
    %v2066 = vsub.s32 %v2063, %v2065
    %v2067 = vrot.slane %v2053, %v2066
    %v2068 = vcombine.high %v2060, %v2060
    %v2069 = vcombine.high %v2067, %v2067
    %v2071 = vunpack.c.l.s4 1966171168
    %v2072 = vunpack.c.0.s8 %v2071
    %v2073 = vlaneseq
    %v2074 = vshrl.u32 %v2073, 7
    %v2075 = vsub.s32 %v2072, %v2074
    %v2076 = vrot.slane %v2060, %v2075
    %v2078 = vunpack.c.l.s4 1966171168
    %v2079 = vunpack.c.0.s8 %v2078
    %v2080 = vlaneseq
    %v2081 = vshrl.u32 %v2080, 7
    %v2082 = vsub.s32 %v2079, %v2081
    %v2083 = vrot.slane %v2067, %v2082
    %v2085 = vunpack.c.l.s4 1966171168
    %v2086 = vunpack.c.0.s8 %v2085
    %v2087 = vlaneseq
    %v2088 = vshrl.u32 %v2087, 7
    %v2089 = vsub.s32 %v2086, %v2088
    %v2090 = vrot.slane %v2068, %v2089
    %v2092 = vunpack.c.l.s4 1966171168
    %v2093 = vunpack.c.0.s8 %v2092
    %v2094 = vlaneseq
    %v2095 = vshrl.u32 %v2094, 7
    %v2096 = vsub.s32 %v2093, %v2095
    %v2097 = vrot.slane %v2069, %v2096
    %v2098 = vcombine.high %v2076, %v2076
    %v2099 = vcombine.high %v2083, %v2083
    %v2100 = vcombine.high %v2090, %v2090
    %v2101 = vcombine.high %v2097, %v2097
    %v2110 = vadd.f32 %v2036, %v2076
    %v2111 = vadd.f32 %v2037, %v2090
    %v2112 = vadd.f32 %v2038, %v2098
    %v2113 = vadd.f32 %v2039, %v2100
    %v2114 = vadd.f32 %v2040, %v2083
    %v2115 = vadd.f32 %v2041, %v2097
    %v2116 = vadd.f32 %v2042, %v2099
    %v2117 = vadd.f32 %v2043, %v2101
    %v2118 = vxor.u32 %v2110, 2147483648
    %v2119 = vxor.u32 %v2111, 2147483648
    %v2120 = vxor.u32 %v2112, 2147483648
    %v2121 = vxor.u32 %v2113, 2147483648
    %v2122 = vxor.u32 %v2114, 2147483648
    %v2123 = vxor.u32 %v2115, 2147483648
    %v2124 = vxor.u32 %v2116, 2147483648
    %v2125 = vxor.u32 %v2117, 2147483648
    %v2126 = vmul.f32 %v2118, 1.442695
    %v2127 = vpow.pop %v2126
    %v2128 = vmul.f32 %v2119, 1.442695
    %v2129 = vpow.pop %v2128
    %v2130 = vmul.f32 %v2120, 1.442695
    %v2131 = vpow.pop %v2130
    %v2132 = vmul.f32 %v2121, 1.442695
    %v2133 = vpow.pop %v2132
    %v2134 = vmul.f32 %v2122, 1.442695
    %v2135 = vpow.pop %v2134
    %v2136 = vmul.f32 %v2123, 1.442695
    %v2137 = vpow.pop %v2136
    %v2138 = vmul.f32 %v2124, 1.442695
    %v2139 = vpow.pop %v2138
    %v2140 = vmul.f32 %v2125, 1.442695
    %v2141 = vpow.pop %v2140
    %v2142 = vadd.f32 %v2127, 1.0
    %v2143 = vadd.f32 %v2129, 1.0
    %v2144 = vadd.f32 %v2131, 1.0
    %v2145 = vadd.f32 %v2133, 1.0
    %v2146 = vadd.f32 %v2135, 1.0
    %v2147 = vadd.f32 %v2137, 1.0
    %v2148 = vadd.f32 %v2139, 1.0
    %v2149 = vadd.f32 %v2141, 1.0
    %v2150 = vrcp.pop %v2142
    %v2151 = vmul.f32 1.0, %v2150
    %v2152 = vrcp.pop %v2143
    %v2153 = vmul.f32 1.0, %v2152
    %v2154 = vrcp.pop %v2144
    %v2155 = vmul.f32 1.0, %v2154
    %v2156 = vrcp.pop %v2145
    %v2157 = vmul.f32 1.0, %v2156
    %v2158 = vrcp.pop %v2146
    %v2159 = vmul.f32 1.0, %v2158
    %v2160 = vrcp.pop %v2147
    %v2161 = vmul.f32 1.0, %v2160
    %v2162 = vrcp.pop %v2148
    %v2163 = vmul.f32 1.0, %v2162
    %v2164 = vrcp.pop %v2149
    %v2165 = vmul.f32 1.0, %v2164
    %v2167 = vcombine.high %v1911, %v1911
    %v2169 = vunpack.c.l.s4 1966171168
    %v2170 = vunpack.c.0.s8 %v2169
    %v2171 = vlaneseq
    %v2172 = vshrl.u32 %v2171, 7
    %v2173 = vsub.s32 %v2170, %v2172
    %v2174 = vrot.slane %v1911, %v2173
    %v2176 = vunpack.c.l.s4 1966171168
    %v2177 = vunpack.c.0.s8 %v2176
    %v2178 = vlaneseq
    %v2179 = vshrl.u32 %v2178, 7
    %v2180 = vsub.s32 %v2177, %v2179
    %v2181 = vrot.slane %v2167, %v2180
    %v2182 = vcombine.high %v2174, %v2174
    %v2183 = vcombine.high %v2181, %v2181
    %v2185 = vunpack.c.l.s4 1966171168
    %v2186 = vunpack.c.0.s8 %v2185
    %v2187 = vlaneseq
    %v2188 = vshrl.u32 %v2187, 7
    %v2189 = vsub.s32 %v2186, %v2188
    %v2190 = vrot.slane %v2174, %v2189
    %v2192 = vunpack.c.l.s4 1966171168
    %v2193 = vunpack.c.0.s8 %v2192
    %v2194 = vlaneseq
    %v2195 = vshrl.u32 %v2194, 7
    %v2196 = vsub.s32 %v2193, %v2195
    %v2197 = vrot.slane %v2181, %v2196
    %v2199 = vunpack.c.l.s4 1966171168
    %v2200 = vunpack.c.0.s8 %v2199
    %v2201 = vlaneseq
    %v2202 = vshrl.u32 %v2201, 7
    %v2203 = vsub.s32 %v2200, %v2202
    %v2204 = vrot.slane %v2182, %v2203
    %v2206 = vunpack.c.l.s4 1966171168
    %v2207 = vunpack.c.0.s8 %v2206
    %v2208 = vlaneseq
    %v2209 = vshrl.u32 %v2208, 7
    %v2210 = vsub.s32 %v2207, %v2209
    %v2211 = vrot.slane %v2183, %v2210
    %v2212 = vcombine.high %v2190, %v2190
    %v2213 = vcombine.high %v2197, %v2197
    %v2214 = vcombine.high %v2204, %v2204
    %v2215 = vcombine.high %v2211, %v2211
    %v2224 = vmul.f32 %v2013, %v2190
    %v2225 = vmul.f32 %v2015, %v2204
    %v2226 = vmul.f32 %v2017, %v2212
    %v2227 = vmul.f32 %v2019, %v2214
    %v2228 = vmul.f32 %v2021, %v2197
    %v2229 = vmul.f32 %v2023, %v2211
    %v2230 = vmul.f32 %v2025, %v2213
    %v2231 = vmul.f32 %v2027, %v2215
    %v2232 = vrot.slane %v1700, 2
    %v2233 = vrot.slane %v1702, 2
    %v2234 = vrot.slane %v1704, 2
    %v2235 = vrot.slane %v1706, 2
    %v2236 = vrot.slane %v1708, 2
    %v2237 = vrot.slane %v1710, 2
    %v2238 = vrot.slane %v1712, 2
    %v2239 = vrot.slane %v1714, 2
    %v2248 = vadd.f32 %v2232, %v2224
    %v2249 = vadd.f32 %v2233, %v2225
    %v2250 = vadd.f32 %v2234, %v2226
    %v2251 = vadd.f32 %v2235, %v2227
    %v2252 = vadd.f32 %v2236, %v2228
    %v2253 = vadd.f32 %v2237, %v2229
    %v2254 = vadd.f32 %v2238, %v2230
    %v2255 = vadd.f32 %v2239, %v2231
    %v2256 = vtanh.pop %v2248
    %v2257 = vtanh.pop %v2249
    %v2258 = vtanh.pop %v2250
    %v2259 = vtanh.pop %v2251
    %v2260 = vtanh.pop %v2252
    %v2261 = vtanh.pop %v2253
    %v2262 = vtanh.pop %v2254
    %v2263 = vtanh.pop %v2255
    %v2264 = vsub.f32 1.0, %v2151
    %v2265 = vsub.f32 1.0, %v2153
    %v2266 = vsub.f32 1.0, %v2155
    %v2267 = vsub.f32 1.0, %v2157
    %v2268 = vsub.f32 1.0, %v2159
    %v2269 = vsub.f32 1.0, %v2161
    %v2270 = vsub.f32 1.0, %v2163
    %v2271 = vsub.f32 1.0, %v2165
    %v2272 = vmul.f32 %v2264, %v2256
    %v2273 = vmul.f32 %v2265, %v2257
    %v2274 = vmul.f32 %v2266, %v2258
    %v2275 = vmul.f32 %v2267, %v2259
    %v2276 = vmul.f32 %v2268, %v2260
    %v2277 = vmul.f32 %v2269, %v2261
    %v2278 = vmul.f32 %v2270, %v2262
    %v2279 = vmul.f32 %v2271, %v2263
    %v2280 = vmul.f32 %v2151, %v1497
    %v2281 = vmul.f32 %v2153, %v1498
    %v2282 = vmul.f32 %v2155, %v1499
    %v2283 = vmul.f32 %v2157, %v1500
    %v2284 = vmul.f32 %v2159, %v1501
    %v2285 = vmul.f32 %v2161, %v1502
    %v2286 = vmul.f32 %v2163, %v1503
    %v2287 = vmul.f32 %v2165, %v1504
    %v2288 = vadd.f32 %v2272, %v2280
    %v2289 = vadd.f32 %v2273, %v2281
    %v2290 = vadd.f32 %v2274, %v2282
    %v2291 = vadd.f32 %v2275, %v2283
    %v2292 = vadd.f32 %v2276, %v2284
    %v2293 = vadd.f32 %v2277, %v2285
    %v2294 = vadd.f32 %v2278, %v2286
    %v2295 = vadd.f32 %v2279, %v2287
    %s2296 = sadd.s32 %s102, 2
    %v2297 = vstv %s2296
    %vm2298 = vcmp.gt.s32.totalorder %v51, %v2297
    %v2299 = vsel %vm2298, 1, 0
    %v2300 = vcvt.s32.f32 %v2299
    %2302 = vset.pattern.permute.xlu0 0
    %2303 = vperm.xlu0 %2302, %v2300
    %v2304 = vpop.permute.xlu0 %2303
    %v2305 = vlaneseq
    %v2306 = vshrl.u32 %v2305, 7
    %v2307 = vsub.s32 0, %v2306
    %v2308 = vrot.slane %v2304, %v2307
    %v2309 = vlaneseq
    %v2310 = vshrl.u32 %v2309, 7
    %v2311 = vsub.s32 1, %v2310
    %v2312 = vrot.slane %v2304, %v2311
    %v2313 = vlaneseq
    %v2314 = vshrl.u32 %v2313, 7
    %v2315 = vsub.s32 2, %v2314
    %v2316 = vrot.slane %v2304, %v2315
    %v2317 = vlaneseq
    %v2318 = vshrl.u32 %v2317, 7
    %v2319 = vsub.s32 3, %v2318
    %v2320 = vrot.slane %v2304, %v2319
    %v2321 = vlaneseq
    %v2322 = vshrl.u32 %v2321, 7
    %v2323 = vsub.s32 4, %v2322
    %v2324 = vrot.slane %v2304, %v2323
    %v2325 = vlaneseq
    %v2326 = vshrl.u32 %v2325, 7
    %v2327 = vsub.s32 5, %v2326
    %v2328 = vrot.slane %v2304, %v2327
    %v2329 = vlaneseq
    %v2330 = vshrl.u32 %v2329, 7
    %v2331 = vsub.s32 6, %v2330
    %v2332 = vrot.slane %v2304, %v2331
    %v2333 = vlaneseq
    %v2334 = vshrl.u32 %v2333, 7
    %v2335 = vsub.s32 7, %v2334
    %v2336 = vrot.slane %v2304, %v2335
    %v2345 = vmul.f32 %v2288, %v2308
    %v2346 = vmul.f32 %v2289, %v2312
    %v2347 = vmul.f32 %v2290, %v2316
    %v2348 = vmul.f32 %v2291, %v2320
    %v2349 = vmul.f32 %v2292, %v2324
    %v2350 = vmul.f32 %v2293, %v2328
    %v2351 = vmul.f32 %v2294, %v2332
    %v2352 = vmul.f32 %v2295, %v2336
    %v2353 = vmul.f32 %v2345, %v2345
    %v2354 = vmul.f32 %v2346, %v2346
    %v2355 = vmul.f32 %v2347, %v2347
    %v2356 = vmul.f32 %v2348, %v2348
    %v2357 = vmul.f32 %v2349, %v2349
    %v2358 = vmul.f32 %v2350, %v2350
    %v2359 = vmul.f32 %v2351, %v2351
    %v2360 = vmul.f32 %v2352, %v2352
    %v2369 = vcombine.low %v2353, %v2354
    %v2370 = vcombine.low %v2355, %v2356
    %v2371 = vcombine.low %v2357, %v2358
    %v2372 = vcombine.low %v2359, %v2360
    %v2374 = vunpack.c.l.s4 1966171168
    %v2375 = vunpack.c.0.s8 %v2374
    %v2376 = vlaneseq
    %v2377 = vshrl.u32 %v2376, 7
    %v2378 = vsub.s32 %v2375, %v2377
    %v2379 = vrot.slane %v2369, %v2378
    %v2381 = vunpack.c.l.s4 1966171168
    %v2382 = vunpack.c.0.s8 %v2381
    %v2383 = vlaneseq
    %v2384 = vshrl.u32 %v2383, 7
    %v2385 = vsub.s32 %v2382, %v2384
    %v2386 = vrot.slane %v2370, %v2385
    %v2388 = vunpack.c.l.s4 1966171168
    %v2389 = vunpack.c.0.s8 %v2388
    %v2390 = vlaneseq
    %v2391 = vshrl.u32 %v2390, 7
    %v2392 = vsub.s32 %v2389, %v2391
    %v2393 = vrot.slane %v2371, %v2392
    %v2395 = vunpack.c.l.s4 1966171168
    %v2396 = vunpack.c.0.s8 %v2395
    %v2397 = vlaneseq
    %v2398 = vshrl.u32 %v2397, 7
    %v2399 = vsub.s32 %v2396, %v2398
    %v2400 = vrot.slane %v2372, %v2399
    %v2401 = vcombine.low %v2379, %v2386
    %v2402 = vcombine.low %v2393, %v2400
    %v2404 = vunpack.c.l.s4 1966171168
    %v2405 = vunpack.c.0.s8 %v2404
    %v2406 = vlaneseq
    %v2407 = vshrl.u32 %v2406, 7
    %v2408 = vsub.s32 %v2405, %v2407
    %v2409 = vrot.slane %v2401, %v2408
    %v2411 = vunpack.c.l.s4 1966171168
    %v2412 = vunpack.c.0.s8 %v2411
    %v2413 = vlaneseq
    %v2414 = vshrl.u32 %v2413, 7
    %v2415 = vsub.s32 %v2412, %v2414
    %v2416 = vrot.slane %v2402, %v2415
    %v2417 = vcombine.low %v2409, %v2416
    %2419 = vadd.xlane.f32.xlu0 %v2417
    %v2420 = vpop.xlane.xlu0 %2419
    %v2421 = vrsqrt.pop %v2420
    %v2422 = vmul.f32 %v2420, %v2421
    %vm2423 = vcmp.eq.f32.partialorder %v2420, inf
    %v2424 = vsel %vm2423, %v2420, %v2422
    %vm2425 = vcmp.eq.f32.partialorder %v2420, 0.0
    %v2426 = vand.u32 %v2420, 2147483648
    %v2427 = vsel %vm2425, %v2426, %v2424
    %v2428 = vadd.f32 %v2427, 1e-08
    %v2429 = vrcp.pop %v2428
    %v2430 = vmul.f32 %v2428, %v2429
    %v2431 = vsub.f32 2.0, %v2430
    %v2432 = vmul.f32 %v2429, %v2431
    %v2434 = vlaneseq
    %v2435 = vshrl.u32 %v2434, 7
    %v2436 = vsub.s32 0, %v2435
    %v2437 = vrot.slane %v2432, %v2436
    %v2438 = vlaneseq
    %v2439 = vshrl.u32 %v2438, 7
    %v2440 = vsub.s32 1, %v2439
    %v2441 = vrot.slane %v2432, %v2440
    %v2442 = vlaneseq
    %v2443 = vshrl.u32 %v2442, 7
    %v2444 = vsub.s32 2, %v2443
    %v2445 = vrot.slane %v2432, %v2444
    %v2446 = vlaneseq
    %v2447 = vshrl.u32 %v2446, 7
    %v2448 = vsub.s32 3, %v2447
    %v2449 = vrot.slane %v2432, %v2448
    %v2450 = vlaneseq
    %v2451 = vshrl.u32 %v2450, 7
    %v2452 = vsub.s32 4, %v2451
    %v2453 = vrot.slane %v2432, %v2452
    %v2454 = vlaneseq
    %v2455 = vshrl.u32 %v2454, 7
    %v2456 = vsub.s32 5, %v2455
    %v2457 = vrot.slane %v2432, %v2456
    %v2458 = vlaneseq
    %v2459 = vshrl.u32 %v2458, 7
    %v2460 = vsub.s32 6, %v2459
    %v2461 = vrot.slane %v2432, %v2460
    %v2462 = vlaneseq
    %v2463 = vshrl.u32 %v2462, 7
    %v2464 = vsub.s32 7, %v2463
    %v2465 = vrot.slane %v2432, %v2464
    %v2474 = vmul.f32 %v2345, %v2437
    %v2475 = vmul.f32 %v2346, %v2441
    %v2476 = vmul.f32 %v2347, %v2445
    %v2477 = vmul.f32 %v2348, %v2449
    %v2478 = vmul.f32 %v2349, %v2453
    %v2479 = vmul.f32 %v2350, %v2457
    %v2480 = vmul.f32 %v2351, %v2461
    %v2481 = vmul.f32 %v2352, %v2465
    %2482 = vst [vmem:[#allocation8 + $0x2] sm:$0x1] %v2474
    %2483 = vst [vmem:[#allocation8 + $0xa] sm:$0x1] %v2475
    %2484 = vst [vmem:[#allocation8 + $0x12] sm:$0x1] %v2476
    %2485 = vst [vmem:[#allocation8 + $0x1a] sm:$0x1] %v2477
    %2486 = vst [vmem:[#allocation8 + $0x22] sm:$0x1] %v2478
    %2487 = vst [vmem:[#allocation8 + $0x2a] sm:$0x1] %v2479
    %2488 = vst [vmem:[#allocation8 + $0x32] sm:$0x1] %v2480
    %2489 = vst [vmem:[#allocation8 + $0x3a] sm:$0x1] %v2481
    %s2490 = scalar_lea.vmem [#allocation3], 3
    %v2491 = vld [vmem:[%s2490] ss:$8 sm:$0x7]
    %s2492 = scalar_lea.vmem [#allocation3], 27
    %v2493 = vld [vmem:[%s2492] ss:$8 sm:$0x7]
    %s2494 = scalar_lea.vmem [#allocation3], 51
    %v2495 = vld [vmem:[%s2494] ss:$8 sm:$0x7]
    %s2496 = scalar_lea.vmem [#allocation3], 75
    %v2497 = vld [vmem:[%s2496] ss:$8 sm:$0x7]
    %s2498 = scalar_lea.vmem [#allocation3], 99
    %v2499 = vld [vmem:[%s2498] ss:$8 sm:$0x7]
    %s2500 = scalar_lea.vmem [#allocation3], 123
    %v2501 = vld [vmem:[%s2500] ss:$8 sm:$0x7]
    %s2502 = scalar_lea.vmem [#allocation3], 147
    %v2503 = vld [vmem:[%s2502] ss:$8 sm:$0x7]
    %s2504 = scalar_lea.vmem [#allocation3], 171
    %v2505 = vld [vmem:[%s2504] ss:$8 sm:$0x7]
    %v2514 = vcombine.low %v2288, %v2289
    %v2515 = vcombine.low %v2290, %v2291
    %v2516 = vcombine.low %v2292, %v2293
    %v2517 = vcombine.low %v2294, %v2295
    %v2519 = vunpack.c.l.s4 1966171168
    %v2520 = vunpack.c.0.s8 %v2519
    %v2521 = vlaneseq
    %v2522 = vshrl.u32 %v2521, 7
    %v2523 = vsub.s32 %v2520, %v2522
    %v2524 = vrot.slane %v2514, %v2523
    %v2526 = vunpack.c.l.s4 1966171168
    %v2527 = vunpack.c.0.s8 %v2526
    %v2528 = vlaneseq
    %v2529 = vshrl.u32 %v2528, 7
    %v2530 = vsub.s32 %v2527, %v2529
    %v2531 = vrot.slane %v2515, %v2530
    %v2533 = vunpack.c.l.s4 1966171168
    %v2534 = vunpack.c.0.s8 %v2533
    %v2535 = vlaneseq
    %v2536 = vshrl.u32 %v2535, 7
    %v2537 = vsub.s32 %v2534, %v2536
    %v2538 = vrot.slane %v2516, %v2537
    %v2540 = vunpack.c.l.s4 1966171168
    %v2541 = vunpack.c.0.s8 %v2540
    %v2542 = vlaneseq
    %v2543 = vshrl.u32 %v2542, 7
    %v2544 = vsub.s32 %v2541, %v2543
    %v2545 = vrot.slane %v2517, %v2544
    %v2546 = vcombine.low %v2524, %v2531
    %v2547 = vcombine.low %v2538, %v2545
    %v2549 = vunpack.c.l.s4 1966171168
    %v2550 = vunpack.c.0.s8 %v2549
    %v2551 = vlaneseq
    %v2552 = vshrl.u32 %v2551, 7
    %v2553 = vsub.s32 %v2550, %v2552
    %v2554 = vrot.slane %v2546, %v2553
    %v2556 = vunpack.c.l.s4 1966171168
    %v2557 = vunpack.c.0.s8 %v2556
    %v2558 = vlaneseq
    %v2559 = vshrl.u32 %v2558, 7
    %v2560 = vsub.s32 %v2557, %v2559
    %v2561 = vrot.slane %v2547, %v2560
    %v2562 = vcombine.low %v2554, %v2561
    %2564 = vmatprep.subr.mxu0 %v53
    %2565 = vmatpush1.msra.mxu0 %v52
    %2566 = vmatprep.subr.mxu0 %v56
    %2567 = vmatpush1.msra.mxu0 %v55
    %2568 = vmatprep.subr.mxu0 %v59
    %2569 = vmatpush1.msra.mxu0 %v58
    %2570 = vmatprep.subr.mxu0 %v62
    %2571 = vmatpush1.msra.mxu0 %v61
    %2572 = vmatprep.subr.mxu0 %v65
    %2573 = vmatpush1.msra.mxu0 %v64
    %2574 = vmatprep.subr.mxu0 %v68
    %2575 = vmatpush1.msra.mxu0 %v67
    %2576 = vmatprep.subr.mxu0 %v71
    %2577 = vmatpush1.msra.mxu0 %v70
    %2578 = vmatprep.subr.mxu0 %v74
    %2579 = vmatpush1.msra.mxu0 %v73
    %2580 = vmatprep.subr.mxu0 %v77
    %2581 = vmatpush1.msra.mxu0 %v76
    %2582 = vmatprep.subr.mxu0 %v80
    %2583 = vmatpush1.msra.mxu0 %v79
    %2584 = vmatprep.subr.mxu0 %v83
    %2585 = vmatpush1.msra.mxu0 %v82
    %2586 = vmatprep.subr.mxu0 %v86
    %2587 = vmatpush1.msra.mxu0 %v85
    %2588 = vmatprep.subr.mxu0 %v89
    %2589 = vmatpush1.msra.mxu0 %v88
    %2590 = vmatprep.subr.mxu0 %v92
    %2591 = vmatpush1.msra.mxu0 %v91
    %2592 = vmatprep.subr.mxu0 %v95
    %2593 = vmatpush1.msra.mxu0 %v94
    %2594 = vmatprep.subr.mxu0 %v98
    %2595 = vmatpush1.msra.mxu0 %v97
    %2596 = vmatprep.subr.mxu0 0.0
    %2597 = vmatpush1.msra.mxu0 0.0
    %2598 = vmatprep.subr.mxu0 0.0
    %2599 = vmatpush1.msra.mxu0 0.0
    %2600 = vmatprep.subr.mxu0 0.0
    %2601 = vmatpush1.msra.mxu0 0.0
    %2602 = vmatprep.subr.mxu0 0.0
    %2603 = vmatpush1.msra.mxu0 0.0
    %2604 = vmatprep.subr.mxu0 0.0
    %2605 = vmatpush1.msra.mxu0 0.0
    %2606 = vmatprep.subr.mxu0 0.0
    %2607 = vmatpush1.msra.mxu0 0.0
    %2608 = vmatprep.subr.mxu0 0.0
    %2609 = vmatpush1.msra.mxu0 0.0
    %2610 = vmatprep.subr.mxu0 0.0
    %2611 = vmatpush1.msra.mxu0 0.0
    %2612 = vmatprep.subr.mxu0 0.0
    %2613 = vmatpush1.msra.mxu0 0.0
    %2614 = vmatprep.subr.mxu0 0.0
    %2615 = vmatpush1.msra.mxu0 0.0
    %2616 = vmatprep.subr.mxu0 0.0
    %2617 = vmatpush1.msra.mxu0 0.0
    %2618 = vmatprep.subr.mxu0 0.0
    %2619 = vmatpush1.msra.mxu0 0.0
    %2620 = vmatprep.subr.mxu0 0.0
    %2621 = vmatpush1.msra.mxu0 0.0
    %2622 = vmatprep.subr.mxu0 0.0
    %2623 = vmatpush1.msra.mxu0 0.0
    %2624 = vmatprep.subr.mxu0 0.0
    %2625 = vmatpush1.msra.mxu0 0.0
    %2626 = vmatprep.subr.mxu0 0.0
    %2627 = vmatpush1.msra.mxu0 0.0
    %2628 = vmatprep.mubr.f32.mxu0 0.0
    %2629 = vmatmul.mubr.f32.gmra.mrb[0].mxu0 %v2562
    %v2630 = vpop.f32.mrb[0].mxu0
    %v2631 = vadd.f32 %v122, %v2630
    %v2632 = vpop.f32.mrb[0].mxu0
    %v2633 = vadd.f32 %v126, %v2632
    %2634 = vdwg.mxu0
    %2635 = vmatprep.subr.mxu0 0.0
    %2636 = vmatpush1.msra.mxu0 %v54
    %2637 = vmatprep.subr.mxu0 0.0
    %2638 = vmatpush1.msra.mxu0 %v57
    %2639 = vmatprep.subr.mxu0 0.0
    %2640 = vmatpush1.msra.mxu0 %v60
    %2641 = vmatprep.subr.mxu0 0.0
    %2642 = vmatpush1.msra.mxu0 %v63
    %2643 = vmatprep.subr.mxu0 0.0
    %2644 = vmatpush1.msra.mxu0 %v66
    %2645 = vmatprep.subr.mxu0 0.0
    %2646 = vmatpush1.msra.mxu0 %v69
    %2647 = vmatprep.subr.mxu0 0.0
    %2648 = vmatpush1.msra.mxu0 %v72
    %2649 = vmatprep.subr.mxu0 0.0
    %2650 = vmatpush1.msra.mxu0 %v75
    %2651 = vmatprep.subr.mxu0 0.0
    %2652 = vmatpush1.msra.mxu0 %v78
    %2653 = vmatprep.subr.mxu0 0.0
    %2654 = vmatpush1.msra.mxu0 %v81
    %2655 = vmatprep.subr.mxu0 0.0
    %2656 = vmatpush1.msra.mxu0 %v84
    %2657 = vmatprep.subr.mxu0 0.0
    %2658 = vmatpush1.msra.mxu0 %v87
    %2659 = vmatprep.subr.mxu0 0.0
    %2660 = vmatpush1.msra.mxu0 %v90
    %2661 = vmatprep.subr.mxu0 0.0
    %2662 = vmatpush1.msra.mxu0 %v93
    %2663 = vmatprep.subr.mxu0 0.0
    %2664 = vmatpush1.msra.mxu0 %v96
    %2665 = vmatprep.subr.mxu0 0.0
    %2666 = vmatpush1.msra.mxu0 %v99
    %2667 = vmatprep.subr.mxu0 0.0
    %2668 = vmatpush1.msra.mxu0 0.0
    %2669 = vmatprep.subr.mxu0 0.0
    %2670 = vmatpush1.msra.mxu0 0.0
    %2671 = vmatprep.subr.mxu0 0.0
    %2672 = vmatpush1.msra.mxu0 0.0
    %2673 = vmatprep.subr.mxu0 0.0
    %2674 = vmatpush1.msra.mxu0 0.0
    %2675 = vmatprep.subr.mxu0 0.0
    %2676 = vmatpush1.msra.mxu0 0.0
    %2677 = vmatprep.subr.mxu0 0.0
    %2678 = vmatpush1.msra.mxu0 0.0
    %2679 = vmatprep.subr.mxu0 0.0
    %2680 = vmatpush1.msra.mxu0 0.0
    %2681 = vmatprep.subr.mxu0 0.0
    %2682 = vmatpush1.msra.mxu0 0.0
    %2683 = vmatprep.subr.mxu0 0.0
    %2684 = vmatpush1.msra.mxu0 0.0
    %2685 = vmatprep.subr.mxu0 0.0
    %2686 = vmatpush1.msra.mxu0 0.0
    %2687 = vmatprep.subr.mxu0 0.0
    %2688 = vmatpush1.msra.mxu0 0.0
    %2689 = vmatprep.subr.mxu0 0.0
    %2690 = vmatpush1.msra.mxu0 0.0
    %2691 = vmatprep.subr.mxu0 0.0
    %2692 = vmatpush1.msra.mxu0 0.0
    %2693 = vmatprep.subr.mxu0 0.0
    %2694 = vmatpush1.msra.mxu0 0.0
    %2695 = vmatprep.subr.mxu0 0.0
    %2696 = vmatpush1.msra.mxu0 0.0
    %2697 = vmatprep.subr.mxu0 0.0
    %2698 = vmatpush1.msra.mxu0 0.0
    %2699 = vmatprep.mubr.f32.mxu0 0.0
    %2700 = vmatmul.mubr.f32.gmra.mrb[0].mxu0 %v2562
    %v2701 = vpop.f32.mrb[0].mxu0
    %v2702 = vadd.f32 %v130, %v2701
    %v2703 = vpop.f32.mrb[0].mxu0
    %2704 = vdwg.mxu0
    %v2706 = vcombine.high %v2631, %v2631
    %v2708 = vunpack.c.l.s4 1966171168
    %v2709 = vunpack.c.0.s8 %v2708
    %v2710 = vlaneseq
    %v2711 = vshrl.u32 %v2710, 7
    %v2712 = vsub.s32 %v2709, %v2711
    %v2713 = vrot.slane %v2631, %v2712
    %v2715 = vunpack.c.l.s4 1966171168
    %v2716 = vunpack.c.0.s8 %v2715
    %v2717 = vlaneseq
    %v2718 = vshrl.u32 %v2717, 7
    %v2719 = vsub.s32 %v2716, %v2718
    %v2720 = vrot.slane %v2706, %v2719
    %v2721 = vcombine.high %v2713, %v2713
    %v2722 = vcombine.high %v2720, %v2720
    %v2724 = vunpack.c.l.s4 1966171168
    %v2725 = vunpack.c.0.s8 %v2724
    %v2726 = vlaneseq
    %v2727 = vshrl.u32 %v2726, 7
    %v2728 = vsub.s32 %v2725, %v2727
    %v2729 = vrot.slane %v2713, %v2728
    %v2731 = vunpack.c.l.s4 1966171168
    %v2732 = vunpack.c.0.s8 %v2731
    %v2733 = vlaneseq
    %v2734 = vshrl.u32 %v2733, 7
    %v2735 = vsub.s32 %v2732, %v2734
    %v2736 = vrot.slane %v2720, %v2735
    %v2738 = vunpack.c.l.s4 1966171168
    %v2739 = vunpack.c.0.s8 %v2738
    %v2740 = vlaneseq
    %v2741 = vshrl.u32 %v2740, 7
    %v2742 = vsub.s32 %v2739, %v2741
    %v2743 = vrot.slane %v2721, %v2742
    %v2745 = vunpack.c.l.s4 1966171168
    %v2746 = vunpack.c.0.s8 %v2745
    %v2747 = vlaneseq
    %v2748 = vshrl.u32 %v2747, 7
    %v2749 = vsub.s32 %v2746, %v2748
    %v2750 = vrot.slane %v2722, %v2749
    %v2751 = vcombine.high %v2729, %v2729
    %v2752 = vcombine.high %v2736, %v2736
    %v2753 = vcombine.high %v2743, %v2743
    %v2754 = vcombine.high %v2750, %v2750
    %v2763 = vadd.f32 %v2491, %v2729
    %v2764 = vadd.f32 %v2493, %v2743
    %v2765 = vadd.f32 %v2495, %v2751
    %v2766 = vadd.f32 %v2497, %v2753
    %v2767 = vadd.f32 %v2499, %v2736
    %v2768 = vadd.f32 %v2501, %v2750
    %v2769 = vadd.f32 %v2503, %v2752
    %v2770 = vadd.f32 %v2505, %v2754
    %v2771 = vxor.u32 %v2763, 2147483648
    %v2772 = vxor.u32 %v2764, 2147483648
    %v2773 = vxor.u32 %v2765, 2147483648
    %v2774 = vxor.u32 %v2766, 2147483648
    %v2775 = vxor.u32 %v2767, 2147483648
    %v2776 = vxor.u32 %v2768, 2147483648
    %v2777 = vxor.u32 %v2769, 2147483648
    %v2778 = vxor.u32 %v2770, 2147483648
    %v2779 = vmul.f32 %v2771, 1.442695
    %v2780 = vpow.pop %v2779
    %v2781 = vmul.f32 %v2772, 1.442695
    %v2782 = vpow.pop %v2781
    %v2783 = vmul.f32 %v2773, 1.442695
    %v2784 = vpow.pop %v2783
    %v2785 = vmul.f32 %v2774, 1.442695
    %v2786 = vpow.pop %v2785
    %v2787 = vmul.f32 %v2775, 1.442695
    %v2788 = vpow.pop %v2787
    %v2789 = vmul.f32 %v2776, 1.442695
    %v2790 = vpow.pop %v2789
    %v2791 = vmul.f32 %v2777, 1.442695
    %v2792 = vpow.pop %v2791
    %v2793 = vmul.f32 %v2778, 1.442695
    %v2794 = vpow.pop %v2793
    %v2795 = vadd.f32 %v2780, 1.0
    %v2796 = vadd.f32 %v2782, 1.0
    %v2797 = vadd.f32 %v2784, 1.0
    %v2798 = vadd.f32 %v2786, 1.0
    %v2799 = vadd.f32 %v2788, 1.0
    %v2800 = vadd.f32 %v2790, 1.0
    %v2801 = vadd.f32 %v2792, 1.0
    %v2802 = vadd.f32 %v2794, 1.0
    %v2803 = vrcp.pop %v2795
    %v2804 = vmul.f32 1.0, %v2803
    %v2805 = vrcp.pop %v2796
    %v2806 = vmul.f32 1.0, %v2805
    %v2807 = vrcp.pop %v2797
    %v2808 = vmul.f32 1.0, %v2807
    %v2809 = vrcp.pop %v2798
    %v2810 = vmul.f32 1.0, %v2809
    %v2811 = vrcp.pop %v2799
    %v2812 = vmul.f32 1.0, %v2811
    %v2813 = vrcp.pop %v2800
    %v2814 = vmul.f32 1.0, %v2813
    %v2815 = vrcp.pop %v2801
    %v2816 = vmul.f32 1.0, %v2815
    %v2817 = vrcp.pop %v2802
    %v2818 = vmul.f32 1.0, %v2817
    %v2827 = vrot.slane %v2491, 1
    %v2828 = vrot.slane %v2493, 1
    %v2829 = vrot.slane %v2495, 1
    %v2830 = vrot.slane %v2497, 1
    %v2831 = vrot.slane %v2499, 1
    %v2832 = vrot.slane %v2501, 1
    %v2833 = vrot.slane %v2503, 1
    %v2834 = vrot.slane %v2505, 1
    %v2844 = vcombine.high %v2633, %v2633
    %v2846 = vunpack.c.l.s4 1966171168
    %v2847 = vunpack.c.0.s8 %v2846
    %v2848 = vlaneseq
    %v2849 = vshrl.u32 %v2848, 7
    %v2850 = vsub.s32 %v2847, %v2849
    %v2851 = vrot.slane %v2633, %v2850
    %v2853 = vunpack.c.l.s4 1966171168
    %v2854 = vunpack.c.0.s8 %v2853
    %v2855 = vlaneseq
    %v2856 = vshrl.u32 %v2855, 7
    %v2857 = vsub.s32 %v2854, %v2856
    %v2858 = vrot.slane %v2844, %v2857
    %v2859 = vcombine.high %v2851, %v2851
    %v2860 = vcombine.high %v2858, %v2858
    %v2862 = vunpack.c.l.s4 1966171168
    %v2863 = vunpack.c.0.s8 %v2862
    %v2864 = vlaneseq
    %v2865 = vshrl.u32 %v2864, 7
    %v2866 = vsub.s32 %v2863, %v2865
    %v2867 = vrot.slane %v2851, %v2866
    %v2869 = vunpack.c.l.s4 1966171168
    %v2870 = vunpack.c.0.s8 %v2869
    %v2871 = vlaneseq
    %v2872 = vshrl.u32 %v2871, 7
    %v2873 = vsub.s32 %v2870, %v2872
    %v2874 = vrot.slane %v2858, %v2873
    %v2876 = vunpack.c.l.s4 1966171168
    %v2877 = vunpack.c.0.s8 %v2876
    %v2878 = vlaneseq
    %v2879 = vshrl.u32 %v2878, 7
    %v2880 = vsub.s32 %v2877, %v2879
    %v2881 = vrot.slane %v2859, %v2880
    %v2883 = vunpack.c.l.s4 1966171168
    %v2884 = vunpack.c.0.s8 %v2883
    %v2885 = vlaneseq
    %v2886 = vshrl.u32 %v2885, 7
    %v2887 = vsub.s32 %v2884, %v2886
    %v2888 = vrot.slane %v2860, %v2887
    %v2889 = vcombine.high %v2867, %v2867
    %v2890 = vcombine.high %v2874, %v2874
    %v2891 = vcombine.high %v2881, %v2881
    %v2892 = vcombine.high %v2888, %v2888
    %v2901 = vadd.f32 %v2827, %v2867
    %v2902 = vadd.f32 %v2828, %v2881
    %v2903 = vadd.f32 %v2829, %v2889
    %v2904 = vadd.f32 %v2830, %v2891
    %v2905 = vadd.f32 %v2831, %v2874
    %v2906 = vadd.f32 %v2832, %v2888
    %v2907 = vadd.f32 %v2833, %v2890
    %v2908 = vadd.f32 %v2834, %v2892
    %v2909 = vxor.u32 %v2901, 2147483648
    %v2910 = vxor.u32 %v2902, 2147483648
    %v2911 = vxor.u32 %v2903, 2147483648
    %v2912 = vxor.u32 %v2904, 2147483648
    %v2913 = vxor.u32 %v2905, 2147483648
    %v2914 = vxor.u32 %v2906, 2147483648
    %v2915 = vxor.u32 %v2907, 2147483648
    %v2916 = vxor.u32 %v2908, 2147483648
    %v2917 = vmul.f32 %v2909, 1.442695
    %v2918 = vpow.pop %v2917
    %v2919 = vmul.f32 %v2910, 1.442695
    %v2920 = vpow.pop %v2919
    %v2921 = vmul.f32 %v2911, 1.442695
    %v2922 = vpow.pop %v2921
    %v2923 = vmul.f32 %v2912, 1.442695
    %v2924 = vpow.pop %v2923
    %v2925 = vmul.f32 %v2913, 1.442695
    %v2926 = vpow.pop %v2925
    %v2927 = vmul.f32 %v2914, 1.442695
    %v2928 = vpow.pop %v2927
    %v2929 = vmul.f32 %v2915, 1.442695
    %v2930 = vpow.pop %v2929
    %v2931 = vmul.f32 %v2916, 1.442695
    %v2932 = vpow.pop %v2931
    %v2933 = vadd.f32 %v2918, 1.0
    %v2934 = vadd.f32 %v2920, 1.0
    %v2935 = vadd.f32 %v2922, 1.0
    %v2936 = vadd.f32 %v2924, 1.0
    %v2937 = vadd.f32 %v2926, 1.0
    %v2938 = vadd.f32 %v2928, 1.0
    %v2939 = vadd.f32 %v2930, 1.0
    %v2940 = vadd.f32 %v2932, 1.0
    %v2941 = vrcp.pop %v2933
    %v2942 = vmul.f32 1.0, %v2941
    %v2943 = vrcp.pop %v2934
    %v2944 = vmul.f32 1.0, %v2943
    %v2945 = vrcp.pop %v2935
    %v2946 = vmul.f32 1.0, %v2945
    %v2947 = vrcp.pop %v2936
    %v2948 = vmul.f32 1.0, %v2947
    %v2949 = vrcp.pop %v2937
    %v2950 = vmul.f32 1.0, %v2949
    %v2951 = vrcp.pop %v2938
    %v2952 = vmul.f32 1.0, %v2951
    %v2953 = vrcp.pop %v2939
    %v2954 = vmul.f32 1.0, %v2953
    %v2955 = vrcp.pop %v2940
    %v2956 = vmul.f32 1.0, %v2955
    %v2958 = vcombine.high %v2702, %v2702
    %v2960 = vunpack.c.l.s4 1966171168
    %v2961 = vunpack.c.0.s8 %v2960
    %v2962 = vlaneseq
    %v2963 = vshrl.u32 %v2962, 7
    %v2964 = vsub.s32 %v2961, %v2963
    %v2965 = vrot.slane %v2702, %v2964
    %v2967 = vunpack.c.l.s4 1966171168
    %v2968 = vunpack.c.0.s8 %v2967
    %v2969 = vlaneseq
    %v2970 = vshrl.u32 %v2969, 7
    %v2971 = vsub.s32 %v2968, %v2970
    %v2972 = vrot.slane %v2958, %v2971
    %v2973 = vcombine.high %v2965, %v2965
    %v2974 = vcombine.high %v2972, %v2972
    %v2976 = vunpack.c.l.s4 1966171168
    %v2977 = vunpack.c.0.s8 %v2976
    %v2978 = vlaneseq
    %v2979 = vshrl.u32 %v2978, 7
    %v2980 = vsub.s32 %v2977, %v2979
    %v2981 = vrot.slane %v2965, %v2980
    %v2983 = vunpack.c.l.s4 1966171168
    %v2984 = vunpack.c.0.s8 %v2983
    %v2985 = vlaneseq
    %v2986 = vshrl.u32 %v2985, 7
    %v2987 = vsub.s32 %v2984, %v2986
    %v2988 = vrot.slane %v2972, %v2987
    %v2990 = vunpack.c.l.s4 1966171168
    %v2991 = vunpack.c.0.s8 %v2990
    %v2992 = vlaneseq
    %v2993 = vshrl.u32 %v2992, 7
    %v2994 = vsub.s32 %v2991, %v2993
    %v2995 = vrot.slane %v2973, %v2994
    %v2997 = vunpack.c.l.s4 1966171168
    %v2998 = vunpack.c.0.s8 %v2997
    %v2999 = vlaneseq
    %v3000 = vshrl.u32 %v2999, 7
    %v3001 = vsub.s32 %v2998, %v3000
    %v3002 = vrot.slane %v2974, %v3001
    %v3003 = vcombine.high %v2981, %v2981
    %v3004 = vcombine.high %v2988, %v2988
    %v3005 = vcombine.high %v2995, %v2995
    %v3006 = vcombine.high %v3002, %v3002
    %v3015 = vmul.f32 %v2804, %v2981
    %v3016 = vmul.f32 %v2806, %v2995
    %v3017 = vmul.f32 %v2808, %v3003
    %v3018 = vmul.f32 %v2810, %v3005
    %v3019 = vmul.f32 %v2812, %v2988
    %v3020 = vmul.f32 %v2814, %v3002
    %v3021 = vmul.f32 %v2816, %v3004
    %v3022 = vmul.f32 %v2818, %v3006
    %v3023 = vrot.slane %v2491, 2
    %v3024 = vrot.slane %v2493, 2
    %v3025 = vrot.slane %v2495, 2
    %v3026 = vrot.slane %v2497, 2
    %v3027 = vrot.slane %v2499, 2
    %v3028 = vrot.slane %v2501, 2
    %v3029 = vrot.slane %v2503, 2
    %v3030 = vrot.slane %v2505, 2
    %v3039 = vadd.f32 %v3023, %v3015
    %v3040 = vadd.f32 %v3024, %v3016
    %v3041 = vadd.f32 %v3025, %v3017
    %v3042 = vadd.f32 %v3026, %v3018
    %v3043 = vadd.f32 %v3027, %v3019
    %v3044 = vadd.f32 %v3028, %v3020
    %v3045 = vadd.f32 %v3029, %v3021
    %v3046 = vadd.f32 %v3030, %v3022
    %v3047 = vtanh.pop %v3039
    %v3048 = vtanh.pop %v3040
    %v3049 = vtanh.pop %v3041
    %v3050 = vtanh.pop %v3042
    %v3051 = vtanh.pop %v3043
    %v3052 = vtanh.pop %v3044
    %v3053 = vtanh.pop %v3045
    %v3054 = vtanh.pop %v3046
    %v3055 = vsub.f32 1.0, %v2942
    %v3056 = vsub.f32 1.0, %v2944
    %v3057 = vsub.f32 1.0, %v2946
    %v3058 = vsub.f32 1.0, %v2948
    %v3059 = vsub.f32 1.0, %v2950
    %v3060 = vsub.f32 1.0, %v2952
    %v3061 = vsub.f32 1.0, %v2954
    %v3062 = vsub.f32 1.0, %v2956
    %v3063 = vmul.f32 %v3055, %v3047
    %v3064 = vmul.f32 %v3056, %v3048
    %v3065 = vmul.f32 %v3057, %v3049
    %v3066 = vmul.f32 %v3058, %v3050
    %v3067 = vmul.f32 %v3059, %v3051
    %v3068 = vmul.f32 %v3060, %v3052
    %v3069 = vmul.f32 %v3061, %v3053
    %v3070 = vmul.f32 %v3062, %v3054
    %v3071 = vmul.f32 %v2942, %v2288
    %v3072 = vmul.f32 %v2944, %v2289
    %v3073 = vmul.f32 %v2946, %v2290
    %v3074 = vmul.f32 %v2948, %v2291
    %v3075 = vmul.f32 %v2950, %v2292
    %v3076 = vmul.f32 %v2952, %v2293
    %v3077 = vmul.f32 %v2954, %v2294
    %v3078 = vmul.f32 %v2956, %v2295
    %v3079 = vadd.f32 %v3063, %v3071
    %v3080 = vadd.f32 %v3064, %v3072
    %v3081 = vadd.f32 %v3065, %v3073
    %v3082 = vadd.f32 %v3066, %v3074
    %v3083 = vadd.f32 %v3067, %v3075
    %v3084 = vadd.f32 %v3068, %v3076
    %v3085 = vadd.f32 %v3069, %v3077
    %v3086 = vadd.f32 %v3070, %v3078
    %s3087 = sadd.s32 %s102, 3
    %v3088 = vstv %s3087
    %vm3089 = vcmp.gt.s32.totalorder %v51, %v3088
    %v3090 = vsel %vm3089, 1, 0
    %v3091 = vcvt.s32.f32 %v3090
    %3093 = vset.pattern.permute.xlu0 0
    %3094 = vperm.xlu0 %3093, %v3091
    %v3095 = vpop.permute.xlu0 %3094
    %v3096 = vlaneseq
    %v3097 = vshrl.u32 %v3096, 7
    %v3098 = vsub.s32 0, %v3097
    %v3099 = vrot.slane %v3095, %v3098
    %v3100 = vlaneseq
    %v3101 = vshrl.u32 %v3100, 7
    %v3102 = vsub.s32 1, %v3101
    %v3103 = vrot.slane %v3095, %v3102
    %v3104 = vlaneseq
    %v3105 = vshrl.u32 %v3104, 7
    %v3106 = vsub.s32 2, %v3105
    %v3107 = vrot.slane %v3095, %v3106
    %v3108 = vlaneseq
    %v3109 = vshrl.u32 %v3108, 7
    %v3110 = vsub.s32 3, %v3109
    %v3111 = vrot.slane %v3095, %v3110
    %v3112 = vlaneseq
    %v3113 = vshrl.u32 %v3112, 7
    %v3114 = vsub.s32 4, %v3113
    %v3115 = vrot.slane %v3095, %v3114
    %v3116 = vlaneseq
    %v3117 = vshrl.u32 %v3116, 7
    %v3118 = vsub.s32 5, %v3117
    %v3119 = vrot.slane %v3095, %v3118
    %v3120 = vlaneseq
    %v3121 = vshrl.u32 %v3120, 7
    %v3122 = vsub.s32 6, %v3121
    %v3123 = vrot.slane %v3095, %v3122
    %v3124 = vlaneseq
    %v3125 = vshrl.u32 %v3124, 7
    %v3126 = vsub.s32 7, %v3125
    %v3127 = vrot.slane %v3095, %v3126
    %v3136 = vmul.f32 %v3079, %v3099
    %v3137 = vmul.f32 %v3080, %v3103
    %v3138 = vmul.f32 %v3081, %v3107
    %v3139 = vmul.f32 %v3082, %v3111
    %v3140 = vmul.f32 %v3083, %v3115
    %v3141 = vmul.f32 %v3084, %v3119
    %v3142 = vmul.f32 %v3085, %v3123
    %v3143 = vmul.f32 %v3086, %v3127
    %v3144 = vmul.f32 %v3136, %v3136
    %v3145 = vmul.f32 %v3137, %v3137
    %v3146 = vmul.f32 %v3138, %v3138
    %v3147 = vmul.f32 %v3139, %v3139
    %v3148 = vmul.f32 %v3140, %v3140
    %v3149 = vmul.f32 %v3141, %v3141
    %v3150 = vmul.f32 %v3142, %v3142
    %v3151 = vmul.f32 %v3143, %v3143
    %v3160 = vcombine.low %v3144, %v3145
    %v3161 = vcombine.low %v3146, %v3147
    %v3162 = vcombine.low %v3148, %v3149
    %v3163 = vcombine.low %v3150, %v3151
    %v3165 = vunpack.c.l.s4 1966171168
    %v3166 = vunpack.c.0.s8 %v3165
    %v3167 = vlaneseq
    %v3168 = vshrl.u32 %v3167, 7
    %v3169 = vsub.s32 %v3166, %v3168
    %v3170 = vrot.slane %v3160, %v3169
    %v3172 = vunpack.c.l.s4 1966171168
    %v3173 = vunpack.c.0.s8 %v3172
    %v3174 = vlaneseq
    %v3175 = vshrl.u32 %v3174, 7
    %v3176 = vsub.s32 %v3173, %v3175
    %v3177 = vrot.slane %v3161, %v3176
    %v3179 = vunpack.c.l.s4 1966171168
    %v3180 = vunpack.c.0.s8 %v3179
    %v3181 = vlaneseq
    %v3182 = vshrl.u32 %v3181, 7
    %v3183 = vsub.s32 %v3180, %v3182
    %v3184 = vrot.slane %v3162, %v3183
    %v3186 = vunpack.c.l.s4 1966171168
    %v3187 = vunpack.c.0.s8 %v3186
    %v3188 = vlaneseq
    %v3189 = vshrl.u32 %v3188, 7
    %v3190 = vsub.s32 %v3187, %v3189
    %v3191 = vrot.slane %v3163, %v3190
    %v3192 = vcombine.low %v3170, %v3177
    %v3193 = vcombine.low %v3184, %v3191
    %v3195 = vunpack.c.l.s4 1966171168
    %v3196 = vunpack.c.0.s8 %v3195
    %v3197 = vlaneseq
    %v3198 = vshrl.u32 %v3197, 7
    %v3199 = vsub.s32 %v3196, %v3198
    %v3200 = vrot.slane %v3192, %v3199
    %v3202 = vunpack.c.l.s4 1966171168
    %v3203 = vunpack.c.0.s8 %v3202
    %v3204 = vlaneseq
    %v3205 = vshrl.u32 %v3204, 7
    %v3206 = vsub.s32 %v3203, %v3205
    %v3207 = vrot.slane %v3193, %v3206
    %v3208 = vcombine.low %v3200, %v3207
    %3210 = vadd.xlane.f32.xlu0 %v3208
    %v3211 = vpop.xlane.xlu0 %3210
    %v3212 = vrsqrt.pop %v3211
    %v3213 = vmul.f32 %v3211, %v3212
    %vm3214 = vcmp.eq.f32.partialorder %v3211, inf
    %v3215 = vsel %vm3214, %v3211, %v3213
    %vm3216 = vcmp.eq.f32.partialorder %v3211, 0.0
    %v3217 = vand.u32 %v3211, 2147483648
    %v3218 = vsel %vm3216, %v3217, %v3215
    %v3219 = vadd.f32 %v3218, 1e-08
    %v3220 = vrcp.pop %v3219
    %v3221 = vmul.f32 %v3219, %v3220
    %v3222 = vsub.f32 2.0, %v3221
    %v3223 = vmul.f32 %v3220, %v3222
    %v3225 = vlaneseq
    %v3226 = vshrl.u32 %v3225, 7
    %v3227 = vsub.s32 0, %v3226
    %v3228 = vrot.slane %v3223, %v3227
    %v3229 = vlaneseq
    %v3230 = vshrl.u32 %v3229, 7
    %v3231 = vsub.s32 1, %v3230
    %v3232 = vrot.slane %v3223, %v3231
    %v3233 = vlaneseq
    %v3234 = vshrl.u32 %v3233, 7
    %v3235 = vsub.s32 2, %v3234
    %v3236 = vrot.slane %v3223, %v3235
    %v3237 = vlaneseq
    %v3238 = vshrl.u32 %v3237, 7
    %v3239 = vsub.s32 3, %v3238
    %v3240 = vrot.slane %v3223, %v3239
    %v3241 = vlaneseq
    %v3242 = vshrl.u32 %v3241, 7
    %v3243 = vsub.s32 4, %v3242
    %v3244 = vrot.slane %v3223, %v3243
    %v3245 = vlaneseq
    %v3246 = vshrl.u32 %v3245, 7
    %v3247 = vsub.s32 5, %v3246
    %v3248 = vrot.slane %v3223, %v3247
    %v3249 = vlaneseq
    %v3250 = vshrl.u32 %v3249, 7
    %v3251 = vsub.s32 6, %v3250
    %v3252 = vrot.slane %v3223, %v3251
    %v3253 = vlaneseq
    %v3254 = vshrl.u32 %v3253, 7
    %v3255 = vsub.s32 7, %v3254
    %v3256 = vrot.slane %v3223, %v3255
    %v3265 = vmul.f32 %v3136, %v3228
    %v3266 = vmul.f32 %v3137, %v3232
    %v3267 = vmul.f32 %v3138, %v3236
    %v3268 = vmul.f32 %v3139, %v3240
    %v3269 = vmul.f32 %v3140, %v3244
    %v3270 = vmul.f32 %v3141, %v3248
    %v3271 = vmul.f32 %v3142, %v3252
    %v3272 = vmul.f32 %v3143, %v3256
    %3273 = vst [vmem:[#allocation8 + $0x3] sm:$0x1] %v3265
    %3274 = vst [vmem:[#allocation8 + $0xb] sm:$0x1] %v3266
    %3275 = vst [vmem:[#allocation8 + $0x13] sm:$0x1] %v3267
    %3276 = vst [vmem:[#allocation8 + $0x1b] sm:$0x1] %v3268
    %3277 = vst [vmem:[#allocation8 + $0x23] sm:$0x1] %v3269
    %3278 = vst [vmem:[#allocation8 + $0x2b] sm:$0x1] %v3270
    %3279 = vst [vmem:[#allocation8 + $0x33] sm:$0x1] %v3271
    %3280 = vst [vmem:[#allocation8 + $0x3b] sm:$0x1] %v3272
    %s3281 = scalar_lea.vmem [#allocation3], 4
    %v3282 = vld [vmem:[%s3281] ss:$8 sm:$0x7]
    %s3283 = scalar_lea.vmem [#allocation3], 28
    %v3284 = vld [vmem:[%s3283] ss:$8 sm:$0x7]
    %s3285 = scalar_lea.vmem [#allocation3], 52
    %v3286 = vld [vmem:[%s3285] ss:$8 sm:$0x7]
    %s3287 = scalar_lea.vmem [#allocation3], 76
    %v3288 = vld [vmem:[%s3287] ss:$8 sm:$0x7]
    %s3289 = scalar_lea.vmem [#allocation3], 100
    %v3290 = vld [vmem:[%s3289] ss:$8 sm:$0x7]
    %s3291 = scalar_lea.vmem [#allocation3], 124
    %v3292 = vld [vmem:[%s3291] ss:$8 sm:$0x7]
    %s3293 = scalar_lea.vmem [#allocation3], 148
    %v3294 = vld [vmem:[%s3293] ss:$8 sm:$0x7]
    %s3295 = scalar_lea.vmem [#allocation3], 172
    %v3296 = vld [vmem:[%s3295] ss:$8 sm:$0x7]
    %v3305 = vcombine.low %v3079, %v3080
    %v3306 = vcombine.low %v3081, %v3082
    %v3307 = vcombine.low %v3083, %v3084
    %v3308 = vcombine.low %v3085, %v3086
    %v3310 = vunpack.c.l.s4 1966171168
    %v3311 = vunpack.c.0.s8 %v3310
    %v3312 = vlaneseq
    %v3313 = vshrl.u32 %v3312, 7
    %v3314 = vsub.s32 %v3311, %v3313
    %v3315 = vrot.slane %v3305, %v3314
    %v3317 = vunpack.c.l.s4 1966171168
    %v3318 = vunpack.c.0.s8 %v3317
    %v3319 = vlaneseq
    %v3320 = vshrl.u32 %v3319, 7
    %v3321 = vsub.s32 %v3318, %v3320
    %v3322 = vrot.slane %v3306, %v3321
    %v3324 = vunpack.c.l.s4 1966171168
    %v3325 = vunpack.c.0.s8 %v3324
    %v3326 = vlaneseq
    %v3327 = vshrl.u32 %v3326, 7
    %v3328 = vsub.s32 %v3325, %v3327
    %v3329 = vrot.slane %v3307, %v3328
    %v3331 = vunpack.c.l.s4 1966171168
    %v3332 = vunpack.c.0.s8 %v3331
    %v3333 = vlaneseq
    %v3334 = vshrl.u32 %v3333, 7
    %v3335 = vsub.s32 %v3332, %v3334
    %v3336 = vrot.slane %v3308, %v3335
    %v3337 = vcombine.low %v3315, %v3322
    %v3338 = vcombine.low %v3329, %v3336
    %v3340 = vunpack.c.l.s4 1966171168
    %v3341 = vunpack.c.0.s8 %v3340
    %v3342 = vlaneseq
    %v3343 = vshrl.u32 %v3342, 7
    %v3344 = vsub.s32 %v3341, %v3343
    %v3345 = vrot.slane %v3337, %v3344
    %v3347 = vunpack.c.l.s4 1966171168
    %v3348 = vunpack.c.0.s8 %v3347
    %v3349 = vlaneseq
    %v3350 = vshrl.u32 %v3349, 7
    %v3351 = vsub.s32 %v3348, %v3350
    %v3352 = vrot.slane %v3338, %v3351
    %v3353 = vcombine.low %v3345, %v3352
    %3355 = vmatprep.subr.mxu0 %v53
    %3356 = vmatpush1.msra.mxu0 %v52
    %3357 = vmatprep.subr.mxu0 %v56
    %3358 = vmatpush1.msra.mxu0 %v55
    %3359 = vmatprep.subr.mxu0 %v59
    %3360 = vmatpush1.msra.mxu0 %v58
    %3361 = vmatprep.subr.mxu0 %v62
    %3362 = vmatpush1.msra.mxu0 %v61
    %3363 = vmatprep.subr.mxu0 %v65
    %3364 = vmatpush1.msra.mxu0 %v64
    %3365 = vmatprep.subr.mxu0 %v68
    %3366 = vmatpush1.msra.mxu0 %v67
    %3367 = vmatprep.subr.mxu0 %v71
    %3368 = vmatpush1.msra.mxu0 %v70
    %3369 = vmatprep.subr.mxu0 %v74
    %3370 = vmatpush1.msra.mxu0 %v73
    %3371 = vmatprep.subr.mxu0 %v77
    %3372 = vmatpush1.msra.mxu0 %v76
    %3373 = vmatprep.subr.mxu0 %v80
    %3374 = vmatpush1.msra.mxu0 %v79
    %3375 = vmatprep.subr.mxu0 %v83
    %3376 = vmatpush1.msra.mxu0 %v82
    %3377 = vmatprep.subr.mxu0 %v86
    %3378 = vmatpush1.msra.mxu0 %v85
    %3379 = vmatprep.subr.mxu0 %v89
    %3380 = vmatpush1.msra.mxu0 %v88
    %3381 = vmatprep.subr.mxu0 %v92
    %3382 = vmatpush1.msra.mxu0 %v91
    %3383 = vmatprep.subr.mxu0 %v95
    %3384 = vmatpush1.msra.mxu0 %v94
    %3385 = vmatprep.subr.mxu0 %v98
    %3386 = vmatpush1.msra.mxu0 %v97
    %3387 = vmatprep.subr.mxu0 0.0
    %3388 = vmatpush1.msra.mxu0 0.0
    %3389 = vmatprep.subr.mxu0 0.0
    %3390 = vmatpush1.msra.mxu0 0.0
    %3391 = vmatprep.subr.mxu0 0.0
    %3392 = vmatpush1.msra.mxu0 0.0
    %3393 = vmatprep.subr.mxu0 0.0
    %3394 = vmatpush1.msra.mxu0 0.0
    %3395 = vmatprep.subr.mxu0 0.0
    %3396 = vmatpush1.msra.mxu0 0.0
    %3397 = vmatprep.subr.mxu0 0.0
    %3398 = vmatpush1.msra.mxu0 0.0
    %3399 = vmatprep.subr.mxu0 0.0
    %3400 = vmatpush1.msra.mxu0 0.0
    %3401 = vmatprep.subr.mxu0 0.0
    %3402 = vmatpush1.msra.mxu0 0.0
    %3403 = vmatprep.subr.mxu0 0.0
    %3404 = vmatpush1.msra.mxu0 0.0
    %3405 = vmatprep.subr.mxu0 0.0
    %3406 = vmatpush1.msra.mxu0 0.0
    %3407 = vmatprep.subr.mxu0 0.0
    %3408 = vmatpush1.msra.mxu0 0.0
    %3409 = vmatprep.subr.mxu0 0.0
    %3410 = vmatpush1.msra.mxu0 0.0
    %3411 = vmatprep.subr.mxu0 0.0
    %3412 = vmatpush1.msra.mxu0 0.0
    %3413 = vmatprep.subr.mxu0 0.0
    %3414 = vmatpush1.msra.mxu0 0.0
    %3415 = vmatprep.subr.mxu0 0.0
    %3416 = vmatpush1.msra.mxu0 0.0
    %3417 = vmatprep.subr.mxu0 0.0
    %3418 = vmatpush1.msra.mxu0 0.0
    %3419 = vmatprep.mubr.f32.mxu0 0.0
    %3420 = vmatmul.mubr.f32.gmra.mrb[0].mxu0 %v3353
    %v3421 = vpop.f32.mrb[0].mxu0
    %v3422 = vadd.f32 %v122, %v3421
    %v3423 = vpop.f32.mrb[0].mxu0
    %v3424 = vadd.f32 %v126, %v3423
    %3425 = vdwg.mxu0
    %3426 = vmatprep.subr.mxu0 0.0
    %3427 = vmatpush1.msra.mxu0 %v54
    %3428 = vmatprep.subr.mxu0 0.0
    %3429 = vmatpush1.msra.mxu0 %v57
    %3430 = vmatprep.subr.mxu0 0.0
    %3431 = vmatpush1.msra.mxu0 %v60
    %3432 = vmatprep.subr.mxu0 0.0
    %3433 = vmatpush1.msra.mxu0 %v63
    %3434 = vmatprep.subr.mxu0 0.0
    %3435 = vmatpush1.msra.mxu0 %v66
    %3436 = vmatprep.subr.mxu0 0.0
    %3437 = vmatpush1.msra.mxu0 %v69
    %3438 = vmatprep.subr.mxu0 0.0
    %3439 = vmatpush1.msra.mxu0 %v72
    %3440 = vmatprep.subr.mxu0 0.0
    %3441 = vmatpush1.msra.mxu0 %v75
    %3442 = vmatprep.subr.mxu0 0.0
    %3443 = vmatpush1.msra.mxu0 %v78
    %3444 = vmatprep.subr.mxu0 0.0
    %3445 = vmatpush1.msra.mxu0 %v81
    %3446 = vmatprep.subr.mxu0 0.0
    %3447 = vmatpush1.msra.mxu0 %v84
    %3448 = vmatprep.subr.mxu0 0.0
    %3449 = vmatpush1.msra.mxu0 %v87
    %3450 = vmatprep.subr.mxu0 0.0
    %3451 = vmatpush1.msra.mxu0 %v90
    %3452 = vmatprep.subr.mxu0 0.0
    %3453 = vmatpush1.msra.mxu0 %v93
    %3454 = vmatprep.subr.mxu0 0.0
    %3455 = vmatpush1.msra.mxu0 %v96
    %3456 = vmatprep.subr.mxu0 0.0
    %3457 = vmatpush1.msra.mxu0 %v99
    %3458 = vmatprep.subr.mxu0 0.0
    %3459 = vmatpush1.msra.mxu0 0.0
    %3460 = vmatprep.subr.mxu0 0.0
    %3461 = vmatpush1.msra.mxu0 0.0
    %3462 = vmatprep.subr.mxu0 0.0
    %3463 = vmatpush1.msra.mxu0 0.0
    %3464 = vmatprep.subr.mxu0 0.0
    %3465 = vmatpush1.msra.mxu0 0.0
    %3466 = vmatprep.subr.mxu0 0.0
    %3467 = vmatpush1.msra.mxu0 0.0
    %3468 = vmatprep.subr.mxu0 0.0
    %3469 = vmatpush1.msra.mxu0 0.0
    %3470 = vmatprep.subr.mxu0 0.0
    %3471 = vmatpush1.msra.mxu0 0.0
    %3472 = vmatprep.subr.mxu0 0.0
    %3473 = vmatpush1.msra.mxu0 0.0
    %3474 = vmatprep.subr.mxu0 0.0
    %3475 = vmatpush1.msra.mxu0 0.0
    %3476 = vmatprep.subr.mxu0 0.0
    %3477 = vmatpush1.msra.mxu0 0.0
    %3478 = vmatprep.subr.mxu0 0.0
    %3479 = vmatpush1.msra.mxu0 0.0
    %3480 = vmatprep.subr.mxu0 0.0
    %3481 = vmatpush1.msra.mxu0 0.0
    %3482 = vmatprep.subr.mxu0 0.0
    %3483 = vmatpush1.msra.mxu0 0.0
    %3484 = vmatprep.subr.mxu0 0.0
    %3485 = vmatpush1.msra.mxu0 0.0
    %3486 = vmatprep.subr.mxu0 0.0
    %3487 = vmatpush1.msra.mxu0 0.0
    %3488 = vmatprep.subr.mxu0 0.0
    %3489 = vmatpush1.msra.mxu0 0.0
    %3490 = vmatprep.mubr.f32.mxu0 0.0
    %3491 = vmatmul.mubr.f32.gmra.mrb[0].mxu0 %v3353
    %v3492 = vpop.f32.mrb[0].mxu0
    %v3493 = vadd.f32 %v130, %v3492
    %v3494 = vpop.f32.mrb[0].mxu0
    %3495 = vdwg.mxu0
    %v3497 = vcombine.high %v3422, %v3422
    %v3499 = vunpack.c.l.s4 1966171168
    %v3500 = vunpack.c.0.s8 %v3499
    %v3501 = vlaneseq
    %v3502 = vshrl.u32 %v3501, 7
    %v3503 = vsub.s32 %v3500, %v3502
    %v3504 = vrot.slane %v3422, %v3503
    %v3506 = vunpack.c.l.s4 1966171168
    %v3507 = vunpack.c.0.s8 %v3506
    %v3508 = vlaneseq
    %v3509 = vshrl.u32 %v3508, 7
    %v3510 = vsub.s32 %v3507, %v3509
    %v3511 = vrot.slane %v3497, %v3510
    %v3512 = vcombine.high %v3504, %v3504
    %v3513 = vcombine.high %v3511, %v3511
    %v3515 = vunpack.c.l.s4 1966171168
    %v3516 = vunpack.c.0.s8 %v3515
    %v3517 = vlaneseq
    %v3518 = vshrl.u32 %v3517, 7
    %v3519 = vsub.s32 %v3516, %v3518
    %v3520 = vrot.slane %v3504, %v3519
    %v3522 = vunpack.c.l.s4 1966171168
    %v3523 = vunpack.c.0.s8 %v3522
    %v3524 = vlaneseq
    %v3525 = vshrl.u32 %v3524, 7
    %v3526 = vsub.s32 %v3523, %v3525
    %v3527 = vrot.slane %v3511, %v3526
    %v3529 = vunpack.c.l.s4 1966171168
    %v3530 = vunpack.c.0.s8 %v3529
    %v3531 = vlaneseq
    %v3532 = vshrl.u32 %v3531, 7
    %v3533 = vsub.s32 %v3530, %v3532
    %v3534 = vrot.slane %v3512, %v3533
    %v3536 = vunpack.c.l.s4 1966171168
    %v3537 = vunpack.c.0.s8 %v3536
    %v3538 = vlaneseq
    %v3539 = vshrl.u32 %v3538, 7
    %v3540 = vsub.s32 %v3537, %v3539
    %v3541 = vrot.slane %v3513, %v3540
    %v3542 = vcombine.high %v3520, %v3520
    %v3543 = vcombine.high %v3527, %v3527
    %v3544 = vcombine.high %v3534, %v3534
    %v3545 = vcombine.high %v3541, %v3541
    %v3554 = vadd.f32 %v3282, %v3520
    %v3555 = vadd.f32 %v3284, %v3534
    %v3556 = vadd.f32 %v3286, %v3542
    %v3557 = vadd.f32 %v3288, %v3544
    %v3558 = vadd.f32 %v3290, %v3527
    %v3559 = vadd.f32 %v3292, %v3541
    %v3560 = vadd.f32 %v3294, %v3543
    %v3561 = vadd.f32 %v3296, %v3545
    %v3562 = vxor.u32 %v3554, 2147483648
    %v3563 = vxor.u32 %v3555, 2147483648
    %v3564 = vxor.u32 %v3556, 2147483648
    %v3565 = vxor.u32 %v3557, 2147483648
    %v3566 = vxor.u32 %v3558, 2147483648
    %v3567 = vxor.u32 %v3559, 2147483648
    %v3568 = vxor.u32 %v3560, 2147483648
    %v3569 = vxor.u32 %v3561, 2147483648
    %v3570 = vmul.f32 %v3562, 1.442695
    %v3571 = vpow.pop %v3570
    %v3572 = vmul.f32 %v3563, 1.442695
    %v3573 = vpow.pop %v3572
    %v3574 = vmul.f32 %v3564, 1.442695
    %v3575 = vpow.pop %v3574
    %v3576 = vmul.f32 %v3565, 1.442695
    %v3577 = vpow.pop %v3576
    %v3578 = vmul.f32 %v3566, 1.442695
    %v3579 = vpow.pop %v3578
    %v3580 = vmul.f32 %v3567, 1.442695
    %v3581 = vpow.pop %v3580
    %v3582 = vmul.f32 %v3568, 1.442695
    %v3583 = vpow.pop %v3582
    %v3584 = vmul.f32 %v3569, 1.442695
    %v3585 = vpow.pop %v3584
    %v3586 = vadd.f32 %v3571, 1.0
    %v3587 = vadd.f32 %v3573, 1.0
    %v3588 = vadd.f32 %v3575, 1.0
    %v3589 = vadd.f32 %v3577, 1.0
    %v3590 = vadd.f32 %v3579, 1.0
    %v3591 = vadd.f32 %v3581, 1.0
    %v3592 = vadd.f32 %v3583, 1.0
    %v3593 = vadd.f32 %v3585, 1.0
    %v3594 = vrcp.pop %v3586
    %v3595 = vmul.f32 1.0, %v3594
    %v3596 = vrcp.pop %v3587
    %v3597 = vmul.f32 1.0, %v3596
    %v3598 = vrcp.pop %v3588
    %v3599 = vmul.f32 1.0, %v3598
    %v3600 = vrcp.pop %v3589
    %v3601 = vmul.f32 1.0, %v3600
    %v3602 = vrcp.pop %v3590
    %v3603 = vmul.f32 1.0, %v3602
    %v3604 = vrcp.pop %v3591
    %v3605 = vmul.f32 1.0, %v3604
    %v3606 = vrcp.pop %v3592
    %v3607 = vmul.f32 1.0, %v3606
    %v3608 = vrcp.pop %v3593
    %v3609 = vmul.f32 1.0, %v3608
    %v3618 = vrot.slane %v3282, 1
    %v3619 = vrot.slane %v3284, 1
    %v3620 = vrot.slane %v3286, 1
    %v3621 = vrot.slane %v3288, 1
    %v3622 = vrot.slane %v3290, 1
    %v3623 = vrot.slane %v3292, 1
    %v3624 = vrot.slane %v3294, 1
    %v3625 = vrot.slane %v3296, 1
    %v3635 = vcombine.high %v3424, %v3424
    %v3637 = vunpack.c.l.s4 1966171168
    %v3638 = vunpack.c.0.s8 %v3637
    %v3639 = vlaneseq
    %v3640 = vshrl.u32 %v3639, 7
    %v3641 = vsub.s32 %v3638, %v3640
    %v3642 = vrot.slane %v3424, %v3641
    %v3644 = vunpack.c.l.s4 1966171168
    %v3645 = vunpack.c.0.s8 %v3644
    %v3646 = vlaneseq
    %v3647 = vshrl.u32 %v3646, 7
    %v3648 = vsub.s32 %v3645, %v3647
    %v3649 = vrot.slane %v3635, %v3648
    %v3650 = vcombine.high %v3642, %v3642
    %v3651 = vcombine.high %v3649, %v3649
    %v3653 = vunpack.c.l.s4 1966171168
    %v3654 = vunpack.c.0.s8 %v3653
    %v3655 = vlaneseq
    %v3656 = vshrl.u32 %v3655, 7
    %v3657 = vsub.s32 %v3654, %v3656
    %v3658 = vrot.slane %v3642, %v3657
    %v3660 = vunpack.c.l.s4 1966171168
    %v3661 = vunpack.c.0.s8 %v3660
    %v3662 = vlaneseq
    %v3663 = vshrl.u32 %v3662, 7
    %v3664 = vsub.s32 %v3661, %v3663
    %v3665 = vrot.slane %v3649, %v3664
    %v3667 = vunpack.c.l.s4 1966171168
    %v3668 = vunpack.c.0.s8 %v3667
    %v3669 = vlaneseq
    %v3670 = vshrl.u32 %v3669, 7
    %v3671 = vsub.s32 %v3668, %v3670
    %v3672 = vrot.slane %v3650, %v3671
    %v3674 = vunpack.c.l.s4 1966171168
    %v3675 = vunpack.c.0.s8 %v3674
    %v3676 = vlaneseq
    %v3677 = vshrl.u32 %v3676, 7
    %v3678 = vsub.s32 %v3675, %v3677
    %v3679 = vrot.slane %v3651, %v3678
    %v3680 = vcombine.high %v3658, %v3658
    %v3681 = vcombine.high %v3665, %v3665
    %v3682 = vcombine.high %v3672, %v3672
    %v3683 = vcombine.high %v3679, %v3679
    %v3692 = vadd.f32 %v3618, %v3658
    %v3693 = vadd.f32 %v3619, %v3672
    %v3694 = vadd.f32 %v3620, %v3680
    %v3695 = vadd.f32 %v3621, %v3682
    %v3696 = vadd.f32 %v3622, %v3665
    %v3697 = vadd.f32 %v3623, %v3679
    %v3698 = vadd.f32 %v3624, %v3681
    %v3699 = vadd.f32 %v3625, %v3683
    %v3700 = vxor.u32 %v3692, 2147483648
    %v3701 = vxor.u32 %v3693, 2147483648
    %v3702 = vxor.u32 %v3694, 2147483648
    %v3703 = vxor.u32 %v3695, 2147483648
    %v3704 = vxor.u32 %v3696, 2147483648
    %v3705 = vxor.u32 %v3697, 2147483648
    %v3706 = vxor.u32 %v3698, 2147483648
    %v3707 = vxor.u32 %v3699, 2147483648
    %v3708 = vmul.f32 %v3700, 1.442695
    %v3709 = vpow.pop %v3708
    %v3710 = vmul.f32 %v3701, 1.442695
    %v3711 = vpow.pop %v3710
    %v3712 = vmul.f32 %v3702, 1.442695
    %v3713 = vpow.pop %v3712
    %v3714 = vmul.f32 %v3703, 1.442695
    %v3715 = vpow.pop %v3714
    %v3716 = vmul.f32 %v3704, 1.442695
    %v3717 = vpow.pop %v3716
    %v3718 = vmul.f32 %v3705, 1.442695
    %v3719 = vpow.pop %v3718
    %v3720 = vmul.f32 %v3706, 1.442695
    %v3721 = vpow.pop %v3720
    %v3722 = vmul.f32 %v3707, 1.442695
    %v3723 = vpow.pop %v3722
    %v3724 = vadd.f32 %v3709, 1.0
    %v3725 = vadd.f32 %v3711, 1.0
    %v3726 = vadd.f32 %v3713, 1.0
    %v3727 = vadd.f32 %v3715, 1.0
    %v3728 = vadd.f32 %v3717, 1.0
    %v3729 = vadd.f32 %v3719, 1.0
    %v3730 = vadd.f32 %v3721, 1.0
    %v3731 = vadd.f32 %v3723, 1.0
    %v3732 = vrcp.pop %v3724
    %v3733 = vmul.f32 1.0, %v3732
    %v3734 = vrcp.pop %v3725
    %v3735 = vmul.f32 1.0, %v3734
    %v3736 = vrcp.pop %v3726
    %v3737 = vmul.f32 1.0, %v3736
    %v3738 = vrcp.pop %v3727
    %v3739 = vmul.f32 1.0, %v3738
    %v3740 = vrcp.pop %v3728
    %v3741 = vmul.f32 1.0, %v3740
    %v3742 = vrcp.pop %v3729
    %v3743 = vmul.f32 1.0, %v3742
    %v3744 = vrcp.pop %v3730
    %v3745 = vmul.f32 1.0, %v3744
    %v3746 = vrcp.pop %v3731
    %v3747 = vmul.f32 1.0, %v3746
    %v3749 = vcombine.high %v3493, %v3493
    %v3751 = vunpack.c.l.s4 1966171168
    %v3752 = vunpack.c.0.s8 %v3751
    %v3753 = vlaneseq
    %v3754 = vshrl.u32 %v3753, 7
    %v3755 = vsub.s32 %v3752, %v3754
    %v3756 = vrot.slane %v3493, %v3755
    %v3758 = vunpack.c.l.s4 1966171168
    %v3759 = vunpack.c.0.s8 %v3758
    %v3760 = vlaneseq
    %v3761 = vshrl.u32 %v3760, 7
    %v3762 = vsub.s32 %v3759, %v3761
    %v3763 = vrot.slane %v3749, %v3762
    %v3764 = vcombine.high %v3756, %v3756
    %v3765 = vcombine.high %v3763, %v3763
    %v3767 = vunpack.c.l.s4 1966171168
    %v3768 = vunpack.c.0.s8 %v3767
    %v3769 = vlaneseq
    %v3770 = vshrl.u32 %v3769, 7
    %v3771 = vsub.s32 %v3768, %v3770
    %v3772 = vrot.slane %v3756, %v3771
    %v3774 = vunpack.c.l.s4 1966171168
    %v3775 = vunpack.c.0.s8 %v3774
    %v3776 = vlaneseq
    %v3777 = vshrl.u32 %v3776, 7
    %v3778 = vsub.s32 %v3775, %v3777
    %v3779 = vrot.slane %v3763, %v3778
    %v3781 = vunpack.c.l.s4 1966171168
    %v3782 = vunpack.c.0.s8 %v3781
    %v3783 = vlaneseq
    %v3784 = vshrl.u32 %v3783, 7
    %v3785 = vsub.s32 %v3782, %v3784
    %v3786 = vrot.slane %v3764, %v3785
    %v3788 = vunpack.c.l.s4 1966171168
    %v3789 = vunpack.c.0.s8 %v3788
    %v3790 = vlaneseq
    %v3791 = vshrl.u32 %v3790, 7
    %v3792 = vsub.s32 %v3789, %v3791
    %v3793 = vrot.slane %v3765, %v3792
    %v3794 = vcombine.high %v3772, %v3772
    %v3795 = vcombine.high %v3779, %v3779
    %v3796 = vcombine.high %v3786, %v3786
    %v3797 = vcombine.high %v3793, %v3793
    %v3806 = vmul.f32 %v3595, %v3772
    %v3807 = vmul.f32 %v3597, %v3786
    %v3808 = vmul.f32 %v3599, %v3794
    %v3809 = vmul.f32 %v3601, %v3796
    %v3810 = vmul.f32 %v3603, %v3779
    %v3811 = vmul.f32 %v3605, %v3793
    %v3812 = vmul.f32 %v3607, %v3795
    %v3813 = vmul.f32 %v3609, %v3797
    %v3814 = vrot.slane %v3282, 2
    %v3815 = vrot.slane %v3284, 2
    %v3816 = vrot.slane %v3286, 2
    %v3817 = vrot.slane %v3288, 2
    %v3818 = vrot.slane %v3290, 2
    %v3819 = vrot.slane %v3292, 2
    %v3820 = vrot.slane %v3294, 2
    %v3821 = vrot.slane %v3296, 2
    %v3830 = vadd.f32 %v3814, %v3806
    %v3831 = vadd.f32 %v3815, %v3807
    %v3832 = vadd.f32 %v3816, %v3808
    %v3833 = vadd.f32 %v3817, %v3809
    %v3834 = vadd.f32 %v3818, %v3810
    %v3835 = vadd.f32 %v3819, %v3811
    %v3836 = vadd.f32 %v3820, %v3812
    %v3837 = vadd.f32 %v3821, %v3813
    %v3838 = vtanh.pop %v3830
    %v3839 = vtanh.pop %v3831
    %v3840 = vtanh.pop %v3832
    %v3841 = vtanh.pop %v3833
    %v3842 = vtanh.pop %v3834
    %v3843 = vtanh.pop %v3835
    %v3844 = vtanh.pop %v3836
    %v3845 = vtanh.pop %v3837
    %v3846 = vsub.f32 1.0, %v3733
    %v3847 = vsub.f32 1.0, %v3735
    %v3848 = vsub.f32 1.0, %v3737
    %v3849 = vsub.f32 1.0, %v3739
    %v3850 = vsub.f32 1.0, %v3741
    %v3851 = vsub.f32 1.0, %v3743
    %v3852 = vsub.f32 1.0, %v3745
    %v3853 = vsub.f32 1.0, %v3747
    %v3854 = vmul.f32 %v3846, %v3838
    %v3855 = vmul.f32 %v3847, %v3839
    %v3856 = vmul.f32 %v3848, %v3840
    %v3857 = vmul.f32 %v3849, %v3841
    %v3858 = vmul.f32 %v3850, %v3842
    %v3859 = vmul.f32 %v3851, %v3843
    %v3860 = vmul.f32 %v3852, %v3844
    %v3861 = vmul.f32 %v3853, %v3845
    %v3862 = vmul.f32 %v3733, %v3079
    %v3863 = vmul.f32 %v3735, %v3080
    %v3864 = vmul.f32 %v3737, %v3081
    %v3865 = vmul.f32 %v3739, %v3082
    %v3866 = vmul.f32 %v3741, %v3083
    %v3867 = vmul.f32 %v3743, %v3084
    %v3868 = vmul.f32 %v3745, %v3085
    %v3869 = vmul.f32 %v3747, %v3086
    %v3870 = vadd.f32 %v3854, %v3862
    %v3871 = vadd.f32 %v3855, %v3863
    %v3872 = vadd.f32 %v3856, %v3864
    %v3873 = vadd.f32 %v3857, %v3865
    %v3874 = vadd.f32 %v3858, %v3866
    %v3875 = vadd.f32 %v3859, %v3867
    %v3876 = vadd.f32 %v3860, %v3868
    %v3877 = vadd.f32 %v3861, %v3869
    %s3878 = sadd.s32 %s102, 4
    %v3879 = vstv %s3878
    %vm3880 = vcmp.gt.s32.totalorder %v51, %v3879
    %v3881 = vsel %vm3880, 1, 0
    %v3882 = vcvt.s32.f32 %v3881
    %3884 = vset.pattern.permute.xlu0 0
    %3885 = vperm.xlu0 %3884, %v3882
    %v3886 = vpop.permute.xlu0 %3885
    %v3887 = vlaneseq
    %v3888 = vshrl.u32 %v3887, 7
    %v3889 = vsub.s32 0, %v3888
    %v3890 = vrot.slane %v3886, %v3889
    %v3891 = vlaneseq
    %v3892 = vshrl.u32 %v3891, 7
    %v3893 = vsub.s32 1, %v3892
    %v3894 = vrot.slane %v3886, %v3893
    %v3895 = vlaneseq
    %v3896 = vshrl.u32 %v3895, 7
    %v3897 = vsub.s32 2, %v3896
    %v3898 = vrot.slane %v3886, %v3897
    %v3899 = vlaneseq
    %v3900 = vshrl.u32 %v3899, 7
    %v3901 = vsub.s32 3, %v3900
    %v3902 = vrot.slane %v3886, %v3901
    %v3903 = vlaneseq
    %v3904 = vshrl.u32 %v3903, 7
    %v3905 = vsub.s32 4, %v3904
    %v3906 = vrot.slane %v3886, %v3905
    %v3907 = vlaneseq
    %v3908 = vshrl.u32 %v3907, 7
    %v3909 = vsub.s32 5, %v3908
    %v3910 = vrot.slane %v3886, %v3909
    %v3911 = vlaneseq
    %v3912 = vshrl.u32 %v3911, 7
    %v3913 = vsub.s32 6, %v3912
    %v3914 = vrot.slane %v3886, %v3913
    %v3915 = vlaneseq
    %v3916 = vshrl.u32 %v3915, 7
    %v3917 = vsub.s32 7, %v3916
    %v3918 = vrot.slane %v3886, %v3917
    %v3927 = vmul.f32 %v3870, %v3890
    %v3928 = vmul.f32 %v3871, %v3894
    %v3929 = vmul.f32 %v3872, %v3898
    %v3930 = vmul.f32 %v3873, %v3902
    %v3931 = vmul.f32 %v3874, %v3906
    %v3932 = vmul.f32 %v3875, %v3910
    %v3933 = vmul.f32 %v3876, %v3914
    %v3934 = vmul.f32 %v3877, %v3918
    %v3935 = vmul.f32 %v3927, %v3927
    %v3936 = vmul.f32 %v3928, %v3928
    %v3937 = vmul.f32 %v3929, %v3929
    %v3938 = vmul.f32 %v3930, %v3930
    %v3939 = vmul.f32 %v3931, %v3931
    %v3940 = vmul.f32 %v3932, %v3932
    %v3941 = vmul.f32 %v3933, %v3933
    %v3942 = vmul.f32 %v3934, %v3934
    %v3951 = vcombine.low %v3935, %v3936
    %v3952 = vcombine.low %v3937, %v3938
    %v3953 = vcombine.low %v3939, %v3940
    %v3954 = vcombine.low %v3941, %v3942
    %v3956 = vunpack.c.l.s4 1966171168
    %v3957 = vunpack.c.0.s8 %v3956
    %v3958 = vlaneseq
    %v3959 = vshrl.u32 %v3958, 7
    %v3960 = vsub.s32 %v3957, %v3959
    %v3961 = vrot.slane %v3951, %v3960
    %v3963 = vunpack.c.l.s4 1966171168
    %v3964 = vunpack.c.0.s8 %v3963
    %v3965 = vlaneseq
    %v3966 = vshrl.u32 %v3965, 7
    %v3967 = vsub.s32 %v3964, %v3966
    %v3968 = vrot.slane %v3952, %v3967
    %v3970 = vunpack.c.l.s4 1966171168
    %v3971 = vunpack.c.0.s8 %v3970
    %v3972 = vlaneseq
    %v3973 = vshrl.u32 %v3972, 7
    %v3974 = vsub.s32 %v3971, %v3973
    %v3975 = vrot.slane %v3953, %v3974
    %v3977 = vunpack.c.l.s4 1966171168
    %v3978 = vunpack.c.0.s8 %v3977
    %v3979 = vlaneseq
    %v3980 = vshrl.u32 %v3979, 7
    %v3981 = vsub.s32 %v3978, %v3980
    %v3982 = vrot.slane %v3954, %v3981
    %v3983 = vcombine.low %v3961, %v3968
    %v3984 = vcombine.low %v3975, %v3982
    %v3986 = vunpack.c.l.s4 1966171168
    %v3987 = vunpack.c.0.s8 %v3986
    %v3988 = vlaneseq
    %v3989 = vshrl.u32 %v3988, 7
    %v3990 = vsub.s32 %v3987, %v3989
    %v3991 = vrot.slane %v3983, %v3990
    %v3993 = vunpack.c.l.s4 1966171168
    %v3994 = vunpack.c.0.s8 %v3993
    %v3995 = vlaneseq
    %v3996 = vshrl.u32 %v3995, 7
    %v3997 = vsub.s32 %v3994, %v3996
    %v3998 = vrot.slane %v3984, %v3997
    %v3999 = vcombine.low %v3991, %v3998
    %4001 = vadd.xlane.f32.xlu0 %v3999
    %v4002 = vpop.xlane.xlu0 %4001
    %v4003 = vrsqrt.pop %v4002
    %v4004 = vmul.f32 %v4002, %v4003
    %vm4005 = vcmp.eq.f32.partialorder %v4002, inf
    %v4006 = vsel %vm4005, %v4002, %v4004
    %vm4007 = vcmp.eq.f32.partialorder %v4002, 0.0
    %v4008 = vand.u32 %v4002, 2147483648
    %v4009 = vsel %vm4007, %v4008, %v4006
    %v4010 = vadd.f32 %v4009, 1e-08
    %v4011 = vrcp.pop %v4010
    %v4012 = vmul.f32 %v4010, %v4011
    %v4013 = vsub.f32 2.0, %v4012
    %v4014 = vmul.f32 %v4011, %v4013
    %v4016 = vlaneseq
    %v4017 = vshrl.u32 %v4016, 7
    %v4018 = vsub.s32 0, %v4017
    %v4019 = vrot.slane %v4014, %v4018
    %v4020 = vlaneseq
    %v4021 = vshrl.u32 %v4020, 7
    %v4022 = vsub.s32 1, %v4021
    %v4023 = vrot.slane %v4014, %v4022
    %v4024 = vlaneseq
    %v4025 = vshrl.u32 %v4024, 7
    %v4026 = vsub.s32 2, %v4025
    %v4027 = vrot.slane %v4014, %v4026
    %v4028 = vlaneseq
    %v4029 = vshrl.u32 %v4028, 7
    %v4030 = vsub.s32 3, %v4029
    %v4031 = vrot.slane %v4014, %v4030
    %v4032 = vlaneseq
    %v4033 = vshrl.u32 %v4032, 7
    %v4034 = vsub.s32 4, %v4033
    %v4035 = vrot.slane %v4014, %v4034
    %v4036 = vlaneseq
    %v4037 = vshrl.u32 %v4036, 7
    %v4038 = vsub.s32 5, %v4037
    %v4039 = vrot.slane %v4014, %v4038
    %v4040 = vlaneseq
    %v4041 = vshrl.u32 %v4040, 7
    %v4042 = vsub.s32 6, %v4041
    %v4043 = vrot.slane %v4014, %v4042
    %v4044 = vlaneseq
    %v4045 = vshrl.u32 %v4044, 7
    %v4046 = vsub.s32 7, %v4045
    %v4047 = vrot.slane %v4014, %v4046
    %v4056 = vmul.f32 %v3927, %v4019
    %v4057 = vmul.f32 %v3928, %v4023
    %v4058 = vmul.f32 %v3929, %v4027
    %v4059 = vmul.f32 %v3930, %v4031
    %v4060 = vmul.f32 %v3931, %v4035
    %v4061 = vmul.f32 %v3932, %v4039
    %v4062 = vmul.f32 %v3933, %v4043
    %v4063 = vmul.f32 %v3934, %v4047
    %4064 = vst [vmem:[#allocation8 + $0x4] sm:$0x1] %v4056
    %4065 = vst [vmem:[#allocation8 + $0xc] sm:$0x1] %v4057
    %4066 = vst [vmem:[#allocation8 + $0x14] sm:$0x1] %v4058
    %4067 = vst [vmem:[#allocation8 + $0x1c] sm:$0x1] %v4059
    %4068 = vst [vmem:[#allocation8 + $0x24] sm:$0x1] %v4060
    %4069 = vst [vmem:[#allocation8 + $0x2c] sm:$0x1] %v4061
    %4070 = vst [vmem:[#allocation8 + $0x34] sm:$0x1] %v4062
    %4071 = vst [vmem:[#allocation8 + $0x3c] sm:$0x1] %v4063
    %s4072 = scalar_lea.vmem [#allocation3], 5
    %v4073 = vld [vmem:[%s4072] ss:$8 sm:$0x7]
    %s4074 = scalar_lea.vmem [#allocation3], 29
    %v4075 = vld [vmem:[%s4074] ss:$8 sm:$0x7]
    %s4076 = scalar_lea.vmem [#allocation3], 53
    %v4077 = vld [vmem:[%s4076] ss:$8 sm:$0x7]
    %s4078 = scalar_lea.vmem [#allocation3], 77
    %v4079 = vld [vmem:[%s4078] ss:$8 sm:$0x7]
    %s4080 = scalar_lea.vmem [#allocation3], 101
    %v4081 = vld [vmem:[%s4080] ss:$8 sm:$0x7]
    %s4082 = scalar_lea.vmem [#allocation3], 125
    %v4083 = vld [vmem:[%s4082] ss:$8 sm:$0x7]
    %s4084 = scalar_lea.vmem [#allocation3], 149
    %v4085 = vld [vmem:[%s4084] ss:$8 sm:$0x7]
    %s4086 = scalar_lea.vmem [#allocation3], 173
    %v4087 = vld [vmem:[%s4086] ss:$8 sm:$0x7]
    %v4096 = vcombine.low %v3870, %v3871
    %v4097 = vcombine.low %v3872, %v3873
    %v4098 = vcombine.low %v3874, %v3875
    %v4099 = vcombine.low %v3876, %v3877
    %v4101 = vunpack.c.l.s4 1966171168
    %v4102 = vunpack.c.0.s8 %v4101
    %v4103 = vlaneseq
    %v4104 = vshrl.u32 %v4103, 7
    %v4105 = vsub.s32 %v4102, %v4104
    %v4106 = vrot.slane %v4096, %v4105
    %v4108 = vunpack.c.l.s4 1966171168
    %v4109 = vunpack.c.0.s8 %v4108
    %v4110 = vlaneseq
    %v4111 = vshrl.u32 %v4110, 7
    %v4112 = vsub.s32 %v4109, %v4111
    %v4113 = vrot.slane %v4097, %v4112
    %v4115 = vunpack.c.l.s4 1966171168
    %v4116 = vunpack.c.0.s8 %v4115
    %v4117 = vlaneseq
    %v4118 = vshrl.u32 %v4117, 7
    %v4119 = vsub.s32 %v4116, %v4118
    %v4120 = vrot.slane %v4098, %v4119
    %v4122 = vunpack.c.l.s4 1966171168
    %v4123 = vunpack.c.0.s8 %v4122
    %v4124 = vlaneseq
    %v4125 = vshrl.u32 %v4124, 7
    %v4126 = vsub.s32 %v4123, %v4125
    %v4127 = vrot.slane %v4099, %v4126
    %v4128 = vcombine.low %v4106, %v4113
    %v4129 = vcombine.low %v4120, %v4127
    %v4131 = vunpack.c.l.s4 1966171168
    %v4132 = vunpack.c.0.s8 %v4131
    %v4133 = vlaneseq
    %v4134 = vshrl.u32 %v4133, 7
    %v4135 = vsub.s32 %v4132, %v4134
    %v4136 = vrot.slane %v4128, %v4135
    %v4138 = vunpack.c.l.s4 1966171168
    %v4139 = vunpack.c.0.s8 %v4138
    %v4140 = vlaneseq
    %v4141 = vshrl.u32 %v4140, 7
    %v4142 = vsub.s32 %v4139, %v4141
    %v4143 = vrot.slane %v4129, %v4142
    %v4144 = vcombine.low %v4136, %v4143
    %4146 = vmatprep.subr.mxu0 %v53
    %4147 = vmatpush1.msra.mxu0 %v52
    %4148 = vmatprep.subr.mxu0 %v56
    %4149 = vmatpush1.msra.mxu0 %v55
    %4150 = vmatprep.subr.mxu0 %v59
    %4151 = vmatpush1.msra.mxu0 %v58
    %4152 = vmatprep.subr.mxu0 %v62
    %4153 = vmatpush1.msra.mxu0 %v61
    %4154 = vmatprep.subr.mxu0 %v65
    %4155 = vmatpush1.msra.mxu0 %v64
    %4156 = vmatprep.subr.mxu0 %v68
    %4157 = vmatpush1.msra.mxu0 %v67
    %4158 = vmatprep.subr.mxu0 %v71
    %4159 = vmatpush1.msra.mxu0 %v70
    %4160 = vmatprep.subr.mxu0 %v74
    %4161 = vmatpush1.msra.mxu0 %v73
    %4162 = vmatprep.subr.mxu0 %v77
    %4163 = vmatpush1.msra.mxu0 %v76
    %4164 = vmatprep.subr.mxu0 %v80
    %4165 = vmatpush1.msra.mxu0 %v79
    %4166 = vmatprep.subr.mxu0 %v83
    %4167 = vmatpush1.msra.mxu0 %v82
    %4168 = vmatprep.subr.mxu0 %v86
    %4169 = vmatpush1.msra.mxu0 %v85
    %4170 = vmatprep.subr.mxu0 %v89
    %4171 = vmatpush1.msra.mxu0 %v88
    %4172 = vmatprep.subr.mxu0 %v92
    %4173 = vmatpush1.msra.mxu0 %v91
    %4174 = vmatprep.subr.mxu0 %v95
    %4175 = vmatpush1.msra.mxu0 %v94
    %4176 = vmatprep.subr.mxu0 %v98
    %4177 = vmatpush1.msra.mxu0 %v97
    %4178 = vmatprep.subr.mxu0 0.0
    %4179 = vmatpush1.msra.mxu0 0.0
    %4180 = vmatprep.subr.mxu0 0.0
    %4181 = vmatpush1.msra.mxu0 0.0
    %4182 = vmatprep.subr.mxu0 0.0
    %4183 = vmatpush1.msra.mxu0 0.0
    %4184 = vmatprep.subr.mxu0 0.0
    %4185 = vmatpush1.msra.mxu0 0.0
    %4186 = vmatprep.subr.mxu0 0.0
    %4187 = vmatpush1.msra.mxu0 0.0
    %4188 = vmatprep.subr.mxu0 0.0
    %4189 = vmatpush1.msra.mxu0 0.0
    %4190 = vmatprep.subr.mxu0 0.0
    %4191 = vmatpush1.msra.mxu0 0.0
    %4192 = vmatprep.subr.mxu0 0.0
    %4193 = vmatpush1.msra.mxu0 0.0
    %4194 = vmatprep.subr.mxu0 0.0
    %4195 = vmatpush1.msra.mxu0 0.0
    %4196 = vmatprep.subr.mxu0 0.0
    %4197 = vmatpush1.msra.mxu0 0.0
    %4198 = vmatprep.subr.mxu0 0.0
    %4199 = vmatpush1.msra.mxu0 0.0
    %4200 = vmatprep.subr.mxu0 0.0
    %4201 = vmatpush1.msra.mxu0 0.0
    %4202 = vmatprep.subr.mxu0 0.0
    %4203 = vmatpush1.msra.mxu0 0.0
    %4204 = vmatprep.subr.mxu0 0.0
    %4205 = vmatpush1.msra.mxu0 0.0
    %4206 = vmatprep.subr.mxu0 0.0
    %4207 = vmatpush1.msra.mxu0 0.0
    %4208 = vmatprep.subr.mxu0 0.0
    %4209 = vmatpush1.msra.mxu0 0.0
    %4210 = vmatprep.mubr.f32.mxu0 0.0
    %4211 = vmatmul.mubr.f32.gmra.mrb[0].mxu0 %v4144
    %v4212 = vpop.f32.mrb[0].mxu0
    %v4213 = vadd.f32 %v122, %v4212
    %v4214 = vpop.f32.mrb[0].mxu0
    %v4215 = vadd.f32 %v126, %v4214
    %4216 = vdwg.mxu0
    %4217 = vmatprep.subr.mxu0 0.0
    %4218 = vmatpush1.msra.mxu0 %v54
    %4219 = vmatprep.subr.mxu0 0.0
    %4220 = vmatpush1.msra.mxu0 %v57
    %4221 = vmatprep.subr.mxu0 0.0
    %4222 = vmatpush1.msra.mxu0 %v60
    %4223 = vmatprep.subr.mxu0 0.0
    %4224 = vmatpush1.msra.mxu0 %v63
    %4225 = vmatprep.subr.mxu0 0.0
    %4226 = vmatpush1.msra.mxu0 %v66
    %4227 = vmatprep.subr.mxu0 0.0
    %4228 = vmatpush1.msra.mxu0 %v69
    %4229 = vmatprep.subr.mxu0 0.0
    %4230 = vmatpush1.msra.mxu0 %v72
    %4231 = vmatprep.subr.mxu0 0.0
    %4232 = vmatpush1.msra.mxu0 %v75
    %4233 = vmatprep.subr.mxu0 0.0
    %4234 = vmatpush1.msra.mxu0 %v78
    %4235 = vmatprep.subr.mxu0 0.0
    %4236 = vmatpush1.msra.mxu0 %v81
    %4237 = vmatprep.subr.mxu0 0.0
    %4238 = vmatpush1.msra.mxu0 %v84
    %4239 = vmatprep.subr.mxu0 0.0
    %4240 = vmatpush1.msra.mxu0 %v87
    %4241 = vmatprep.subr.mxu0 0.0
    %4242 = vmatpush1.msra.mxu0 %v90
    %4243 = vmatprep.subr.mxu0 0.0
    %4244 = vmatpush1.msra.mxu0 %v93
    %4245 = vmatprep.subr.mxu0 0.0
    %4246 = vmatpush1.msra.mxu0 %v96
    %4247 = vmatprep.subr.mxu0 0.0
    %4248 = vmatpush1.msra.mxu0 %v99
    %4249 = vmatprep.subr.mxu0 0.0
    %4250 = vmatpush1.msra.mxu0 0.0
    %4251 = vmatprep.subr.mxu0 0.0
    %4252 = vmatpush1.msra.mxu0 0.0
    %4253 = vmatprep.subr.mxu0 0.0
    %4254 = vmatpush1.msra.mxu0 0.0
    %4255 = vmatprep.subr.mxu0 0.0
    %4256 = vmatpush1.msra.mxu0 0.0
    %4257 = vmatprep.subr.mxu0 0.0
    %4258 = vmatpush1.msra.mxu0 0.0
    %4259 = vmatprep.subr.mxu0 0.0
    %4260 = vmatpush1.msra.mxu0 0.0
    %4261 = vmatprep.subr.mxu0 0.0
    %4262 = vmatpush1.msra.mxu0 0.0
    %4263 = vmatprep.subr.mxu0 0.0
    %4264 = vmatpush1.msra.mxu0 0.0
    %4265 = vmatprep.subr.mxu0 0.0
    %4266 = vmatpush1.msra.mxu0 0.0
    %4267 = vmatprep.subr.mxu0 0.0
    %4268 = vmatpush1.msra.mxu0 0.0
    %4269 = vmatprep.subr.mxu0 0.0
    %4270 = vmatpush1.msra.mxu0 0.0
    %4271 = vmatprep.subr.mxu0 0.0
    %4272 = vmatpush1.msra.mxu0 0.0
    %4273 = vmatprep.subr.mxu0 0.0
    %4274 = vmatpush1.msra.mxu0 0.0
    %4275 = vmatprep.subr.mxu0 0.0
    %4276 = vmatpush1.msra.mxu0 0.0
    %4277 = vmatprep.subr.mxu0 0.0
    %4278 = vmatpush1.msra.mxu0 0.0
    %4279 = vmatprep.subr.mxu0 0.0
    %4280 = vmatpush1.msra.mxu0 0.0
    %4281 = vmatprep.mubr.f32.mxu0 0.0
    %4282 = vmatmul.mubr.f32.gmra.mrb[0].mxu0 %v4144
    %v4283 = vpop.f32.mrb[0].mxu0
    %v4284 = vadd.f32 %v130, %v4283
    %v4285 = vpop.f32.mrb[0].mxu0
    %4286 = vdwg.mxu0
    %v4288 = vcombine.high %v4213, %v4213
    %v4290 = vunpack.c.l.s4 1966171168
    %v4291 = vunpack.c.0.s8 %v4290
    %v4292 = vlaneseq
    %v4293 = vshrl.u32 %v4292, 7
    %v4294 = vsub.s32 %v4291, %v4293
    %v4295 = vrot.slane %v4213, %v4294
    %v4297 = vunpack.c.l.s4 1966171168
    %v4298 = vunpack.c.0.s8 %v4297
    %v4299 = vlaneseq
    %v4300 = vshrl.u32 %v4299, 7
    %v4301 = vsub.s32 %v4298, %v4300
    %v4302 = vrot.slane %v4288, %v4301
    %v4303 = vcombine.high %v4295, %v4295
    %v4304 = vcombine.high %v4302, %v4302
    %v4306 = vunpack.c.l.s4 1966171168
    %v4307 = vunpack.c.0.s8 %v4306
    %v4308 = vlaneseq
    %v4309 = vshrl.u32 %v4308, 7
    %v4310 = vsub.s32 %v4307, %v4309
    %v4311 = vrot.slane %v4295, %v4310
    %v4313 = vunpack.c.l.s4 1966171168
    %v4314 = vunpack.c.0.s8 %v4313
    %v4315 = vlaneseq
    %v4316 = vshrl.u32 %v4315, 7
    %v4317 = vsub.s32 %v4314, %v4316
    %v4318 = vrot.slane %v4302, %v4317
    %v4320 = vunpack.c.l.s4 1966171168
    %v4321 = vunpack.c.0.s8 %v4320
    %v4322 = vlaneseq
    %v4323 = vshrl.u32 %v4322, 7
    %v4324 = vsub.s32 %v4321, %v4323
    %v4325 = vrot.slane %v4303, %v4324
    %v4327 = vunpack.c.l.s4 1966171168
    %v4328 = vunpack.c.0.s8 %v4327
    %v4329 = vlaneseq
    %v4330 = vshrl.u32 %v4329, 7
    %v4331 = vsub.s32 %v4328, %v4330
    %v4332 = vrot.slane %v4304, %v4331
    %v4333 = vcombine.high %v4311, %v4311
    %v4334 = vcombine.high %v4318, %v4318
    %v4335 = vcombine.high %v4325, %v4325
    %v4336 = vcombine.high %v4332, %v4332
    %v4345 = vadd.f32 %v4073, %v4311
    %v4346 = vadd.f32 %v4075, %v4325
    %v4347 = vadd.f32 %v4077, %v4333
    %v4348 = vadd.f32 %v4079, %v4335
    %v4349 = vadd.f32 %v4081, %v4318
    %v4350 = vadd.f32 %v4083, %v4332
    %v4351 = vadd.f32 %v4085, %v4334
    %v4352 = vadd.f32 %v4087, %v4336
    %v4353 = vxor.u32 %v4345, 2147483648
    %v4354 = vxor.u32 %v4346, 2147483648
    %v4355 = vxor.u32 %v4347, 2147483648
    %v4356 = vxor.u32 %v4348, 2147483648
    %v4357 = vxor.u32 %v4349, 2147483648
    %v4358 = vxor.u32 %v4350, 2147483648
    %v4359 = vxor.u32 %v4351, 2147483648
    %v4360 = vxor.u32 %v4352, 2147483648
    %v4361 = vmul.f32 %v4353, 1.442695
    %v4362 = vpow.pop %v4361
    %v4363 = vmul.f32 %v4354, 1.442695
    %v4364 = vpow.pop %v4363
    %v4365 = vmul.f32 %v4355, 1.442695
    %v4366 = vpow.pop %v4365
    %v4367 = vmul.f32 %v4356, 1.442695
    %v4368 = vpow.pop %v4367
    %v4369 = vmul.f32 %v4357, 1.442695
    %v4370 = vpow.pop %v4369
    %v4371 = vmul.f32 %v4358, 1.442695
    %v4372 = vpow.pop %v4371
    %v4373 = vmul.f32 %v4359, 1.442695
    %v4374 = vpow.pop %v4373
    %v4375 = vmul.f32 %v4360, 1.442695
    %v4376 = vpow.pop %v4375
    %v4377 = vadd.f32 %v4362, 1.0
    %v4378 = vadd.f32 %v4364, 1.0
    %v4379 = vadd.f32 %v4366, 1.0
    %v4380 = vadd.f32 %v4368, 1.0
    %v4381 = vadd.f32 %v4370, 1.0
    %v4382 = vadd.f32 %v4372, 1.0
    %v4383 = vadd.f32 %v4374, 1.0
    %v4384 = vadd.f32 %v4376, 1.0
    %v4385 = vrcp.pop %v4377
    %v4386 = vmul.f32 1.0, %v4385
    %v4387 = vrcp.pop %v4378
    %v4388 = vmul.f32 1.0, %v4387
    %v4389 = vrcp.pop %v4379
    %v4390 = vmul.f32 1.0, %v4389
    %v4391 = vrcp.pop %v4380
    %v4392 = vmul.f32 1.0, %v4391
    %v4393 = vrcp.pop %v4381
    %v4394 = vmul.f32 1.0, %v4393
    %v4395 = vrcp.pop %v4382
    %v4396 = vmul.f32 1.0, %v4395
    %v4397 = vrcp.pop %v4383
    %v4398 = vmul.f32 1.0, %v4397
    %v4399 = vrcp.pop %v4384
    %v4400 = vmul.f32 1.0, %v4399
    %v4409 = vrot.slane %v4073, 1
    %v4410 = vrot.slane %v4075, 1
    %v4411 = vrot.slane %v4077, 1
    %v4412 = vrot.slane %v4079, 1
    %v4413 = vrot.slane %v4081, 1
    %v4414 = vrot.slane %v4083, 1
    %v4415 = vrot.slane %v4085, 1
    %v4416 = vrot.slane %v4087, 1
    %v4426 = vcombine.high %v4215, %v4215
    %v4428 = vunpack.c.l.s4 1966171168
    %v4429 = vunpack.c.0.s8 %v4428
    %v4430 = vlaneseq
    %v4431 = vshrl.u32 %v4430, 7
    %v4432 = vsub.s32 %v4429, %v4431
    %v4433 = vrot.slane %v4215, %v4432
    %v4435 = vunpack.c.l.s4 1966171168
    %v4436 = vunpack.c.0.s8 %v4435
    %v4437 = vlaneseq
    %v4438 = vshrl.u32 %v4437, 7
    %v4439 = vsub.s32 %v4436, %v4438
    %v4440 = vrot.slane %v4426, %v4439
    %v4441 = vcombine.high %v4433, %v4433
    %v4442 = vcombine.high %v4440, %v4440
    %v4444 = vunpack.c.l.s4 1966171168
    %v4445 = vunpack.c.0.s8 %v4444
    %v4446 = vlaneseq
    %v4447 = vshrl.u32 %v4446, 7
    %v4448 = vsub.s32 %v4445, %v4447
    %v4449 = vrot.slane %v4433, %v4448
    %v4451 = vunpack.c.l.s4 1966171168
    %v4452 = vunpack.c.0.s8 %v4451
    %v4453 = vlaneseq
    %v4454 = vshrl.u32 %v4453, 7
    %v4455 = vsub.s32 %v4452, %v4454
    %v4456 = vrot.slane %v4440, %v4455
    %v4458 = vunpack.c.l.s4 1966171168
    %v4459 = vunpack.c.0.s8 %v4458
    %v4460 = vlaneseq
    %v4461 = vshrl.u32 %v4460, 7
    %v4462 = vsub.s32 %v4459, %v4461
    %v4463 = vrot.slane %v4441, %v4462
    %v4465 = vunpack.c.l.s4 1966171168
    %v4466 = vunpack.c.0.s8 %v4465
    %v4467 = vlaneseq
    %v4468 = vshrl.u32 %v4467, 7
    %v4469 = vsub.s32 %v4466, %v4468
    %v4470 = vrot.slane %v4442, %v4469
    %v4471 = vcombine.high %v4449, %v4449
    %v4472 = vcombine.high %v4456, %v4456
    %v4473 = vcombine.high %v4463, %v4463
    %v4474 = vcombine.high %v4470, %v4470
    %v4483 = vadd.f32 %v4409, %v4449
    %v4484 = vadd.f32 %v4410, %v4463
    %v4485 = vadd.f32 %v4411, %v4471
    %v4486 = vadd.f32 %v4412, %v4473
    %v4487 = vadd.f32 %v4413, %v4456
    %v4488 = vadd.f32 %v4414, %v4470
    %v4489 = vadd.f32 %v4415, %v4472
    %v4490 = vadd.f32 %v4416, %v4474
    %v4491 = vxor.u32 %v4483, 2147483648
    %v4492 = vxor.u32 %v4484, 2147483648
    %v4493 = vxor.u32 %v4485, 2147483648
    %v4494 = vxor.u32 %v4486, 2147483648
    %v4495 = vxor.u32 %v4487, 2147483648
    %v4496 = vxor.u32 %v4488, 2147483648
    %v4497 = vxor.u32 %v4489, 2147483648
    %v4498 = vxor.u32 %v4490, 2147483648
    %v4499 = vmul.f32 %v4491, 1.442695
    %v4500 = vpow.pop %v4499
    %v4501 = vmul.f32 %v4492, 1.442695
    %v4502 = vpow.pop %v4501
    %v4503 = vmul.f32 %v4493, 1.442695
    %v4504 = vpow.pop %v4503
    %v4505 = vmul.f32 %v4494, 1.442695
    %v4506 = vpow.pop %v4505
    %v4507 = vmul.f32 %v4495, 1.442695
    %v4508 = vpow.pop %v4507
    %v4509 = vmul.f32 %v4496, 1.442695
    %v4510 = vpow.pop %v4509
    %v4511 = vmul.f32 %v4497, 1.442695
    %v4512 = vpow.pop %v4511
    %v4513 = vmul.f32 %v4498, 1.442695
    %v4514 = vpow.pop %v4513
    %v4515 = vadd.f32 %v4500, 1.0
    %v4516 = vadd.f32 %v4502, 1.0
    %v4517 = vadd.f32 %v4504, 1.0
    %v4518 = vadd.f32 %v4506, 1.0
    %v4519 = vadd.f32 %v4508, 1.0
    %v4520 = vadd.f32 %v4510, 1.0
    %v4521 = vadd.f32 %v4512, 1.0
    %v4522 = vadd.f32 %v4514, 1.0
    %v4523 = vrcp.pop %v4515
    %v4524 = vmul.f32 1.0, %v4523
    %v4525 = vrcp.pop %v4516
    %v4526 = vmul.f32 1.0, %v4525
    %v4527 = vrcp.pop %v4517
    %v4528 = vmul.f32 1.0, %v4527
    %v4529 = vrcp.pop %v4518
    %v4530 = vmul.f32 1.0, %v4529
    %v4531 = vrcp.pop %v4519
    %v4532 = vmul.f32 1.0, %v4531
    %v4533 = vrcp.pop %v4520
    %v4534 = vmul.f32 1.0, %v4533
    %v4535 = vrcp.pop %v4521
    %v4536 = vmul.f32 1.0, %v4535
    %v4537 = vrcp.pop %v4522
    %v4538 = vmul.f32 1.0, %v4537
    %v4540 = vcombine.high %v4284, %v4284
    %v4542 = vunpack.c.l.s4 1966171168
    %v4543 = vunpack.c.0.s8 %v4542
    %v4544 = vlaneseq
    %v4545 = vshrl.u32 %v4544, 7
    %v4546 = vsub.s32 %v4543, %v4545
    %v4547 = vrot.slane %v4284, %v4546
    %v4549 = vunpack.c.l.s4 1966171168
    %v4550 = vunpack.c.0.s8 %v4549
    %v4551 = vlaneseq
    %v4552 = vshrl.u32 %v4551, 7
    %v4553 = vsub.s32 %v4550, %v4552
    %v4554 = vrot.slane %v4540, %v4553
    %v4555 = vcombine.high %v4547, %v4547
    %v4556 = vcombine.high %v4554, %v4554
    %v4558 = vunpack.c.l.s4 1966171168
    %v4559 = vunpack.c.0.s8 %v4558
    %v4560 = vlaneseq
    %v4561 = vshrl.u32 %v4560, 7
    %v4562 = vsub.s32 %v4559, %v4561
    %v4563 = vrot.slane %v4547, %v4562
    %v4565 = vunpack.c.l.s4 1966171168
    %v4566 = vunpack.c.0.s8 %v4565
    %v4567 = vlaneseq
    %v4568 = vshrl.u32 %v4567, 7
    %v4569 = vsub.s32 %v4566, %v4568
    %v4570 = vrot.slane %v4554, %v4569
    %v4572 = vunpack.c.l.s4 1966171168
    %v4573 = vunpack.c.0.s8 %v4572
    %v4574 = vlaneseq
    %v4575 = vshrl.u32 %v4574, 7
    %v4576 = vsub.s32 %v4573, %v4575
    %v4577 = vrot.slane %v4555, %v4576
    %v4579 = vunpack.c.l.s4 1966171168
    %v4580 = vunpack.c.0.s8 %v4579
    %v4581 = vlaneseq
    %v4582 = vshrl.u32 %v4581, 7
    %v4583 = vsub.s32 %v4580, %v4582
    %v4584 = vrot.slane %v4556, %v4583
    %v4585 = vcombine.high %v4563, %v4563
    %v4586 = vcombine.high %v4570, %v4570
    %v4587 = vcombine.high %v4577, %v4577
    %v4588 = vcombine.high %v4584, %v4584
    %v4597 = vmul.f32 %v4386, %v4563
    %v4598 = vmul.f32 %v4388, %v4577
    %v4599 = vmul.f32 %v4390, %v4585
    %v4600 = vmul.f32 %v4392, %v4587
    %v4601 = vmul.f32 %v4394, %v4570
    %v4602 = vmul.f32 %v4396, %v4584
    %v4603 = vmul.f32 %v4398, %v4586
    %v4604 = vmul.f32 %v4400, %v4588
    %v4605 = vrot.slane %v4073, 2
    %v4606 = vrot.slane %v4075, 2
    %v4607 = vrot.slane %v4077, 2
    %v4608 = vrot.slane %v4079, 2
    %v4609 = vrot.slane %v4081, 2
    %v4610 = vrot.slane %v4083, 2
    %v4611 = vrot.slane %v4085, 2
    %v4612 = vrot.slane %v4087, 2
    %v4621 = vadd.f32 %v4605, %v4597
    %v4622 = vadd.f32 %v4606, %v4598
    %v4623 = vadd.f32 %v4607, %v4599
    %v4624 = vadd.f32 %v4608, %v4600
    %v4625 = vadd.f32 %v4609, %v4601
    %v4626 = vadd.f32 %v4610, %v4602
    %v4627 = vadd.f32 %v4611, %v4603
    %v4628 = vadd.f32 %v4612, %v4604
    %v4629 = vtanh.pop %v4621
    %v4630 = vtanh.pop %v4622
    %v4631 = vtanh.pop %v4623
    %v4632 = vtanh.pop %v4624
    %v4633 = vtanh.pop %v4625
    %v4634 = vtanh.pop %v4626
    %v4635 = vtanh.pop %v4627
    %v4636 = vtanh.pop %v4628
    %v4637 = vsub.f32 1.0, %v4524
    %v4638 = vsub.f32 1.0, %v4526
    %v4639 = vsub.f32 1.0, %v4528
    %v4640 = vsub.f32 1.0, %v4530
    %v4641 = vsub.f32 1.0, %v4532
    %v4642 = vsub.f32 1.0, %v4534
    %v4643 = vsub.f32 1.0, %v4536
    %v4644 = vsub.f32 1.0, %v4538
    %v4645 = vmul.f32 %v4637, %v4629
    %v4646 = vmul.f32 %v4638, %v4630
    %v4647 = vmul.f32 %v4639, %v4631
    %v4648 = vmul.f32 %v4640, %v4632
    %v4649 = vmul.f32 %v4641, %v4633
    %v4650 = vmul.f32 %v4642, %v4634
    %v4651 = vmul.f32 %v4643, %v4635
    %v4652 = vmul.f32 %v4644, %v4636
    %v4653 = vmul.f32 %v4524, %v3870
    %v4654 = vmul.f32 %v4526, %v3871
    %v4655 = vmul.f32 %v4528, %v3872
    %v4656 = vmul.f32 %v4530, %v3873
    %v4657 = vmul.f32 %v4532, %v3874
    %v4658 = vmul.f32 %v4534, %v3875
    %v4659 = vmul.f32 %v4536, %v3876
    %v4660 = vmul.f32 %v4538, %v3877
    %v4661 = vadd.f32 %v4645, %v4653
    %v4662 = vadd.f32 %v4646, %v4654
    %v4663 = vadd.f32 %v4647, %v4655
    %v4664 = vadd.f32 %v4648, %v4656
    %v4665 = vadd.f32 %v4649, %v4657
    %v4666 = vadd.f32 %v4650, %v4658
    %v4667 = vadd.f32 %v4651, %v4659
    %v4668 = vadd.f32 %v4652, %v4660
    %s4669 = sadd.s32 %s102, 5
    %v4670 = vstv %s4669
    %vm4671 = vcmp.gt.s32.totalorder %v51, %v4670
    %v4672 = vsel %vm4671, 1, 0
    %v4673 = vcvt.s32.f32 %v4672
    %4675 = vset.pattern.permute.xlu0 0
    %4676 = vperm.xlu0 %4675, %v4673
    %v4677 = vpop.permute.xlu0 %4676
    %v4678 = vlaneseq
    %v4679 = vshrl.u32 %v4678, 7
    %v4680 = vsub.s32 0, %v4679
    %v4681 = vrot.slane %v4677, %v4680
    %v4682 = vlaneseq
    %v4683 = vshrl.u32 %v4682, 7
    %v4684 = vsub.s32 1, %v4683
    %v4685 = vrot.slane %v4677, %v4684
    %v4686 = vlaneseq
    %v4687 = vshrl.u32 %v4686, 7
    %v4688 = vsub.s32 2, %v4687
    %v4689 = vrot.slane %v4677, %v4688
    %v4690 = vlaneseq
    %v4691 = vshrl.u32 %v4690, 7
    %v4692 = vsub.s32 3, %v4691
    %v4693 = vrot.slane %v4677, %v4692
    %v4694 = vlaneseq
    %v4695 = vshrl.u32 %v4694, 7
    %v4696 = vsub.s32 4, %v4695
    %v4697 = vrot.slane %v4677, %v4696
    %v4698 = vlaneseq
    %v4699 = vshrl.u32 %v4698, 7
    %v4700 = vsub.s32 5, %v4699
    %v4701 = vrot.slane %v4677, %v4700
    %v4702 = vlaneseq
    %v4703 = vshrl.u32 %v4702, 7
    %v4704 = vsub.s32 6, %v4703
    %v4705 = vrot.slane %v4677, %v4704
    %v4706 = vlaneseq
    %v4707 = vshrl.u32 %v4706, 7
    %v4708 = vsub.s32 7, %v4707
    %v4709 = vrot.slane %v4677, %v4708
    %v4718 = vmul.f32 %v4661, %v4681
    %v4719 = vmul.f32 %v4662, %v4685
    %v4720 = vmul.f32 %v4663, %v4689
    %v4721 = vmul.f32 %v4664, %v4693
    %v4722 = vmul.f32 %v4665, %v4697
    %v4723 = vmul.f32 %v4666, %v4701
    %v4724 = vmul.f32 %v4667, %v4705
    %v4725 = vmul.f32 %v4668, %v4709
    %v4726 = vmul.f32 %v4718, %v4718
    %v4727 = vmul.f32 %v4719, %v4719
    %v4728 = vmul.f32 %v4720, %v4720
    %v4729 = vmul.f32 %v4721, %v4721
    %v4730 = vmul.f32 %v4722, %v4722
    %v4731 = vmul.f32 %v4723, %v4723
    %v4732 = vmul.f32 %v4724, %v4724
    %v4733 = vmul.f32 %v4725, %v4725
    %v4742 = vcombine.low %v4726, %v4727
    %v4743 = vcombine.low %v4728, %v4729
    %v4744 = vcombine.low %v4730, %v4731
    %v4745 = vcombine.low %v4732, %v4733
    %v4747 = vunpack.c.l.s4 1966171168
    %v4748 = vunpack.c.0.s8 %v4747
    %v4749 = vlaneseq
    %v4750 = vshrl.u32 %v4749, 7
    %v4751 = vsub.s32 %v4748, %v4750
    %v4752 = vrot.slane %v4742, %v4751
    %v4754 = vunpack.c.l.s4 1966171168
    %v4755 = vunpack.c.0.s8 %v4754
    %v4756 = vlaneseq
    %v4757 = vshrl.u32 %v4756, 7
    %v4758 = vsub.s32 %v4755, %v4757
    %v4759 = vrot.slane %v4743, %v4758
    %v4761 = vunpack.c.l.s4 1966171168
    %v4762 = vunpack.c.0.s8 %v4761
    %v4763 = vlaneseq
    %v4764 = vshrl.u32 %v4763, 7
    %v4765 = vsub.s32 %v4762, %v4764
    %v4766 = vrot.slane %v4744, %v4765
    %v4768 = vunpack.c.l.s4 1966171168
    %v4769 = vunpack.c.0.s8 %v4768
    %v4770 = vlaneseq
    %v4771 = vshrl.u32 %v4770, 7
    %v4772 = vsub.s32 %v4769, %v4771
    %v4773 = vrot.slane %v4745, %v4772
    %v4774 = vcombine.low %v4752, %v4759
    %v4775 = vcombine.low %v4766, %v4773
    %v4777 = vunpack.c.l.s4 1966171168
    %v4778 = vunpack.c.0.s8 %v4777
    %v4779 = vlaneseq
    %v4780 = vshrl.u32 %v4779, 7
    %v4781 = vsub.s32 %v4778, %v4780
    %v4782 = vrot.slane %v4774, %v4781
    %v4784 = vunpack.c.l.s4 1966171168
    %v4785 = vunpack.c.0.s8 %v4784
    %v4786 = vlaneseq
    %v4787 = vshrl.u32 %v4786, 7
    %v4788 = vsub.s32 %v4785, %v4787
    %v4789 = vrot.slane %v4775, %v4788
    %v4790 = vcombine.low %v4782, %v4789
    %4792 = vadd.xlane.f32.xlu0 %v4790
    %v4793 = vpop.xlane.xlu0 %4792
    %v4794 = vrsqrt.pop %v4793
    %v4795 = vmul.f32 %v4793, %v4794
    %vm4796 = vcmp.eq.f32.partialorder %v4793, inf
    %v4797 = vsel %vm4796, %v4793, %v4795
    %vm4798 = vcmp.eq.f32.partialorder %v4793, 0.0
    %v4799 = vand.u32 %v4793, 2147483648
    %v4800 = vsel %vm4798, %v4799, %v4797
    %v4801 = vadd.f32 %v4800, 1e-08
    %v4802 = vrcp.pop %v4801
    %v4803 = vmul.f32 %v4801, %v4802
    %v4804 = vsub.f32 2.0, %v4803
    %v4805 = vmul.f32 %v4802, %v4804
    %v4807 = vlaneseq
    %v4808 = vshrl.u32 %v4807, 7
    %v4809 = vsub.s32 0, %v4808
    %v4810 = vrot.slane %v4805, %v4809
    %v4811 = vlaneseq
    %v4812 = vshrl.u32 %v4811, 7
    %v4813 = vsub.s32 1, %v4812
    %v4814 = vrot.slane %v4805, %v4813
    %v4815 = vlaneseq
    %v4816 = vshrl.u32 %v4815, 7
    %v4817 = vsub.s32 2, %v4816
    %v4818 = vrot.slane %v4805, %v4817
    %v4819 = vlaneseq
    %v4820 = vshrl.u32 %v4819, 7
    %v4821 = vsub.s32 3, %v4820
    %v4822 = vrot.slane %v4805, %v4821
    %v4823 = vlaneseq
    %v4824 = vshrl.u32 %v4823, 7
    %v4825 = vsub.s32 4, %v4824
    %v4826 = vrot.slane %v4805, %v4825
    %v4827 = vlaneseq
    %v4828 = vshrl.u32 %v4827, 7
    %v4829 = vsub.s32 5, %v4828
    %v4830 = vrot.slane %v4805, %v4829
    %v4831 = vlaneseq
    %v4832 = vshrl.u32 %v4831, 7
    %v4833 = vsub.s32 6, %v4832
    %v4834 = vrot.slane %v4805, %v4833
    %v4835 = vlaneseq
    %v4836 = vshrl.u32 %v4835, 7
    %v4837 = vsub.s32 7, %v4836
    %v4838 = vrot.slane %v4805, %v4837
    %v4847 = vmul.f32 %v4718, %v4810
    %v4848 = vmul.f32 %v4719, %v4814
    %v4849 = vmul.f32 %v4720, %v4818
    %v4850 = vmul.f32 %v4721, %v4822
    %v4851 = vmul.f32 %v4722, %v4826
    %v4852 = vmul.f32 %v4723, %v4830
    %v4853 = vmul.f32 %v4724, %v4834
    %v4854 = vmul.f32 %v4725, %v4838
    %4855 = vst [vmem:[#allocation8 + $0x5] sm:$0x1] %v4847
    %4856 = vst [vmem:[#allocation8 + $0xd] sm:$0x1] %v4848
    %4857 = vst [vmem:[#allocation8 + $0x15] sm:$0x1] %v4849
    %4858 = vst [vmem:[#allocation8 + $0x1d] sm:$0x1] %v4850
    %4859 = vst [vmem:[#allocation8 + $0x25] sm:$0x1] %v4851
    %4860 = vst [vmem:[#allocation8 + $0x2d] sm:$0x1] %v4852
    %4861 = vst [vmem:[#allocation8 + $0x35] sm:$0x1] %v4853
    %4862 = vst [vmem:[#allocation8 + $0x3d] sm:$0x1] %v4854
    %s4863 = scalar_lea.vmem [#allocation3], 6
    %v4864 = vld [vmem:[%s4863] ss:$8 sm:$0x7]
    %s4865 = scalar_lea.vmem [#allocation3], 30
    %v4866 = vld [vmem:[%s4865] ss:$8 sm:$0x7]
    %s4867 = scalar_lea.vmem [#allocation3], 54
    %v4868 = vld [vmem:[%s4867] ss:$8 sm:$0x7]
    %s4869 = scalar_lea.vmem [#allocation3], 78
    %v4870 = vld [vmem:[%s4869] ss:$8 sm:$0x7]
    %s4871 = scalar_lea.vmem [#allocation3], 102
    %v4872 = vld [vmem:[%s4871] ss:$8 sm:$0x7]
    %s4873 = scalar_lea.vmem [#allocation3], 126
    %v4874 = vld [vmem:[%s4873] ss:$8 sm:$0x7]
    %s4875 = scalar_lea.vmem [#allocation3], 150
    %v4876 = vld [vmem:[%s4875] ss:$8 sm:$0x7]
    %s4877 = scalar_lea.vmem [#allocation3], 174
    %v4878 = vld [vmem:[%s4877] ss:$8 sm:$0x7]
    %v4887 = vcombine.low %v4661, %v4662
    %v4888 = vcombine.low %v4663, %v4664
    %v4889 = vcombine.low %v4665, %v4666
    %v4890 = vcombine.low %v4667, %v4668
    %v4892 = vunpack.c.l.s4 1966171168
    %v4893 = vunpack.c.0.s8 %v4892
    %v4894 = vlaneseq
    %v4895 = vshrl.u32 %v4894, 7
    %v4896 = vsub.s32 %v4893, %v4895
    %v4897 = vrot.slane %v4887, %v4896
    %v4899 = vunpack.c.l.s4 1966171168
    %v4900 = vunpack.c.0.s8 %v4899
    %v4901 = vlaneseq
    %v4902 = vshrl.u32 %v4901, 7
    %v4903 = vsub.s32 %v4900, %v4902
    %v4904 = vrot.slane %v4888, %v4903
    %v4906 = vunpack.c.l.s4 1966171168
    %v4907 = vunpack.c.0.s8 %v4906
    %v4908 = vlaneseq
    %v4909 = vshrl.u32 %v4908, 7
    %v4910 = vsub.s32 %v4907, %v4909
    %v4911 = vrot.slane %v4889, %v4910
    %v4913 = vunpack.c.l.s4 1966171168
    %v4914 = vunpack.c.0.s8 %v4913
    %v4915 = vlaneseq
    %v4916 = vshrl.u32 %v4915, 7
    %v4917 = vsub.s32 %v4914, %v4916
    %v4918 = vrot.slane %v4890, %v4917
    %v4919 = vcombine.low %v4897, %v4904
    %v4920 = vcombine.low %v4911, %v4918
    %v4922 = vunpack.c.l.s4 1966171168
    %v4923 = vunpack.c.0.s8 %v4922
    %v4924 = vlaneseq
    %v4925 = vshrl.u32 %v4924, 7
    %v4926 = vsub.s32 %v4923, %v4925
    %v4927 = vrot.slane %v4919, %v4926
    %v4929 = vunpack.c.l.s4 1966171168
    %v4930 = vunpack.c.0.s8 %v4929
    %v4931 = vlaneseq
    %v4932 = vshrl.u32 %v4931, 7
    %v4933 = vsub.s32 %v4930, %v4932
    %v4934 = vrot.slane %v4920, %v4933
    %v4935 = vcombine.low %v4927, %v4934
    %4937 = vmatprep.subr.mxu0 %v53
    %4938 = vmatpush1.msra.mxu0 %v52
    %4939 = vmatprep.subr.mxu0 %v56
    %4940 = vmatpush1.msra.mxu0 %v55
    %4941 = vmatprep.subr.mxu0 %v59
    %4942 = vmatpush1.msra.mxu0 %v58
    %4943 = vmatprep.subr.mxu0 %v62
    %4944 = vmatpush1.msra.mxu0 %v61
    %4945 = vmatprep.subr.mxu0 %v65
    %4946 = vmatpush1.msra.mxu0 %v64
    %4947 = vmatprep.subr.mxu0 %v68
    %4948 = vmatpush1.msra.mxu0 %v67
    %4949 = vmatprep.subr.mxu0 %v71
    %4950 = vmatpush1.msra.mxu0 %v70
    %4951 = vmatprep.subr.mxu0 %v74
    %4952 = vmatpush1.msra.mxu0 %v73
    %4953 = vmatprep.subr.mxu0 %v77
    %4954 = vmatpush1.msra.mxu0 %v76
    %4955 = vmatprep.subr.mxu0 %v80
    %4956 = vmatpush1.msra.mxu0 %v79
    %4957 = vmatprep.subr.mxu0 %v83
    %4958 = vmatpush1.msra.mxu0 %v82
    %4959 = vmatprep.subr.mxu0 %v86
    %4960 = vmatpush1.msra.mxu0 %v85
    %4961 = vmatprep.subr.mxu0 %v89
    %4962 = vmatpush1.msra.mxu0 %v88
    %4963 = vmatprep.subr.mxu0 %v92
    %4964 = vmatpush1.msra.mxu0 %v91
    %4965 = vmatprep.subr.mxu0 %v95
    %4966 = vmatpush1.msra.mxu0 %v94
    %4967 = vmatprep.subr.mxu0 %v98
    %4968 = vmatpush1.msra.mxu0 %v97
    %4969 = vmatprep.subr.mxu0 0.0
    %4970 = vmatpush1.msra.mxu0 0.0
    %4971 = vmatprep.subr.mxu0 0.0
    %4972 = vmatpush1.msra.mxu0 0.0
    %4973 = vmatprep.subr.mxu0 0.0
    %4974 = vmatpush1.msra.mxu0 0.0
    %4975 = vmatprep.subr.mxu0 0.0
    %4976 = vmatpush1.msra.mxu0 0.0
    %4977 = vmatprep.subr.mxu0 0.0
    %4978 = vmatpush1.msra.mxu0 0.0
    %4979 = vmatprep.subr.mxu0 0.0
    %4980 = vmatpush1.msra.mxu0 0.0
    %4981 = vmatprep.subr.mxu0 0.0
    %4982 = vmatpush1.msra.mxu0 0.0
    %4983 = vmatprep.subr.mxu0 0.0
    %4984 = vmatpush1.msra.mxu0 0.0
    %4985 = vmatprep.subr.mxu0 0.0
    %4986 = vmatpush1.msra.mxu0 0.0
    %4987 = vmatprep.subr.mxu0 0.0
    %4988 = vmatpush1.msra.mxu0 0.0
    %4989 = vmatprep.subr.mxu0 0.0
    %4990 = vmatpush1.msra.mxu0 0.0
    %4991 = vmatprep.subr.mxu0 0.0
    %4992 = vmatpush1.msra.mxu0 0.0
    %4993 = vmatprep.subr.mxu0 0.0
    %4994 = vmatpush1.msra.mxu0 0.0
    %4995 = vmatprep.subr.mxu0 0.0
    %4996 = vmatpush1.msra.mxu0 0.0
    %4997 = vmatprep.subr.mxu0 0.0
    %4998 = vmatpush1.msra.mxu0 0.0
    %4999 = vmatprep.subr.mxu0 0.0
    %5000 = vmatpush1.msra.mxu0 0.0
    %5001 = vmatprep.mubr.f32.mxu0 0.0
    %5002 = vmatmul.mubr.f32.gmra.mrb[0].mxu0 %v4935
    %v5003 = vpop.f32.mrb[0].mxu0
    %v5004 = vadd.f32 %v122, %v5003
    %v5005 = vpop.f32.mrb[0].mxu0
    %v5006 = vadd.f32 %v126, %v5005
    %5007 = vdwg.mxu0
    %5008 = vmatprep.subr.mxu0 0.0
    %5009 = vmatpush1.msra.mxu0 %v54
    %5010 = vmatprep.subr.mxu0 0.0
    %5011 = vmatpush1.msra.mxu0 %v57
    %5012 = vmatprep.subr.mxu0 0.0
    %5013 = vmatpush1.msra.mxu0 %v60
    %5014 = vmatprep.subr.mxu0 0.0
    %5015 = vmatpush1.msra.mxu0 %v63
    %5016 = vmatprep.subr.mxu0 0.0
    %5017 = vmatpush1.msra.mxu0 %v66
    %5018 = vmatprep.subr.mxu0 0.0
    %5019 = vmatpush1.msra.mxu0 %v69
    %5020 = vmatprep.subr.mxu0 0.0
    %5021 = vmatpush1.msra.mxu0 %v72
    %5022 = vmatprep.subr.mxu0 0.0
    %5023 = vmatpush1.msra.mxu0 %v75
    %5024 = vmatprep.subr.mxu0 0.0
    %5025 = vmatpush1.msra.mxu0 %v78
    %5026 = vmatprep.subr.mxu0 0.0
    %5027 = vmatpush1.msra.mxu0 %v81
    %5028 = vmatprep.subr.mxu0 0.0
    %5029 = vmatpush1.msra.mxu0 %v84
    %5030 = vmatprep.subr.mxu0 0.0
    %5031 = vmatpush1.msra.mxu0 %v87
    %5032 = vmatprep.subr.mxu0 0.0
    %5033 = vmatpush1.msra.mxu0 %v90
    %5034 = vmatprep.subr.mxu0 0.0
    %5035 = vmatpush1.msra.mxu0 %v93
    %5036 = vmatprep.subr.mxu0 0.0
    %5037 = vmatpush1.msra.mxu0 %v96
    %5038 = vmatprep.subr.mxu0 0.0
    %5039 = vmatpush1.msra.mxu0 %v99
    %5040 = vmatprep.subr.mxu0 0.0
    %5041 = vmatpush1.msra.mxu0 0.0
    %5042 = vmatprep.subr.mxu0 0.0
    %5043 = vmatpush1.msra.mxu0 0.0
    %5044 = vmatprep.subr.mxu0 0.0
    %5045 = vmatpush1.msra.mxu0 0.0
    %5046 = vmatprep.subr.mxu0 0.0
    %5047 = vmatpush1.msra.mxu0 0.0
    %5048 = vmatprep.subr.mxu0 0.0
    %5049 = vmatpush1.msra.mxu0 0.0
    %5050 = vmatprep.subr.mxu0 0.0
    %5051 = vmatpush1.msra.mxu0 0.0
    %5052 = vmatprep.subr.mxu0 0.0
    %5053 = vmatpush1.msra.mxu0 0.0
    %5054 = vmatprep.subr.mxu0 0.0
    %5055 = vmatpush1.msra.mxu0 0.0
    %5056 = vmatprep.subr.mxu0 0.0
    %5057 = vmatpush1.msra.mxu0 0.0
    %5058 = vmatprep.subr.mxu0 0.0
    %5059 = vmatpush1.msra.mxu0 0.0
    %5060 = vmatprep.subr.mxu0 0.0
    %5061 = vmatpush1.msra.mxu0 0.0
    %5062 = vmatprep.subr.mxu0 0.0
    %5063 = vmatpush1.msra.mxu0 0.0
    %5064 = vmatprep.subr.mxu0 0.0
    %5065 = vmatpush1.msra.mxu0 0.0
    %5066 = vmatprep.subr.mxu0 0.0
    %5067 = vmatpush1.msra.mxu0 0.0
    %5068 = vmatprep.subr.mxu0 0.0
    %5069 = vmatpush1.msra.mxu0 0.0
    %5070 = vmatprep.subr.mxu0 0.0
    %5071 = vmatpush1.msra.mxu0 0.0
    %5072 = vmatprep.mubr.f32.mxu0 0.0
    %5073 = vmatmul.mubr.f32.gmra.mrb[0].mxu0 %v4935
    %v5074 = vpop.f32.mrb[0].mxu0
    %v5075 = vadd.f32 %v130, %v5074
    %v5076 = vpop.f32.mrb[0].mxu0
    %5077 = vdwg.mxu0
    %v5079 = vcombine.high %v5004, %v5004
    %v5081 = vunpack.c.l.s4 1966171168
    %v5082 = vunpack.c.0.s8 %v5081
    %v5083 = vlaneseq
    %v5084 = vshrl.u32 %v5083, 7
    %v5085 = vsub.s32 %v5082, %v5084
    %v5086 = vrot.slane %v5004, %v5085
    %v5088 = vunpack.c.l.s4 1966171168
    %v5089 = vunpack.c.0.s8 %v5088
    %v5090 = vlaneseq
    %v5091 = vshrl.u32 %v5090, 7
    %v5092 = vsub.s32 %v5089, %v5091
    %v5093 = vrot.slane %v5079, %v5092
    %v5094 = vcombine.high %v5086, %v5086
    %v5095 = vcombine.high %v5093, %v5093
    %v5097 = vunpack.c.l.s4 1966171168
    %v5098 = vunpack.c.0.s8 %v5097
    %v5099 = vlaneseq
    %v5100 = vshrl.u32 %v5099, 7
    %v5101 = vsub.s32 %v5098, %v5100
    %v5102 = vrot.slane %v5086, %v5101
    %v5104 = vunpack.c.l.s4 1966171168
    %v5105 = vunpack.c.0.s8 %v5104
    %v5106 = vlaneseq
    %v5107 = vshrl.u32 %v5106, 7
    %v5108 = vsub.s32 %v5105, %v5107
    %v5109 = vrot.slane %v5093, %v5108
    %v5111 = vunpack.c.l.s4 1966171168
    %v5112 = vunpack.c.0.s8 %v5111
    %v5113 = vlaneseq
    %v5114 = vshrl.u32 %v5113, 7
    %v5115 = vsub.s32 %v5112, %v5114
    %v5116 = vrot.slane %v5094, %v5115
    %v5118 = vunpack.c.l.s4 1966171168
    %v5119 = vunpack.c.0.s8 %v5118
    %v5120 = vlaneseq
    %v5121 = vshrl.u32 %v5120, 7
    %v5122 = vsub.s32 %v5119, %v5121
    %v5123 = vrot.slane %v5095, %v5122
    %v5124 = vcombine.high %v5102, %v5102
    %v5125 = vcombine.high %v5109, %v5109
    %v5126 = vcombine.high %v5116, %v5116
    %v5127 = vcombine.high %v5123, %v5123
    %v5136 = vadd.f32 %v4864, %v5102
    %v5137 = vadd.f32 %v4866, %v5116
    %v5138 = vadd.f32 %v4868, %v5124
    %v5139 = vadd.f32 %v4870, %v5126
    %v5140 = vadd.f32 %v4872, %v5109
    %v5141 = vadd.f32 %v4874, %v5123
    %v5142 = vadd.f32 %v4876, %v5125
    %v5143 = vadd.f32 %v4878, %v5127
    %v5144 = vxor.u32 %v5136, 2147483648
    %v5145 = vxor.u32 %v5137, 2147483648
    %v5146 = vxor.u32 %v5138, 2147483648
    %v5147 = vxor.u32 %v5139, 2147483648
    %v5148 = vxor.u32 %v5140, 2147483648
    %v5149 = vxor.u32 %v5141, 2147483648
    %v5150 = vxor.u32 %v5142, 2147483648
    %v5151 = vxor.u32 %v5143, 2147483648
    %v5152 = vmul.f32 %v5144, 1.442695
    %v5153 = vpow.pop %v5152
    %v5154 = vmul.f32 %v5145, 1.442695
    %v5155 = vpow.pop %v5154
    %v5156 = vmul.f32 %v5146, 1.442695
    %v5157 = vpow.pop %v5156
    %v5158 = vmul.f32 %v5147, 1.442695
    %v5159 = vpow.pop %v5158
    %v5160 = vmul.f32 %v5148, 1.442695
    %v5161 = vpow.pop %v5160
    %v5162 = vmul.f32 %v5149, 1.442695
    %v5163 = vpow.pop %v5162
    %v5164 = vmul.f32 %v5150, 1.442695
    %v5165 = vpow.pop %v5164
    %v5166 = vmul.f32 %v5151, 1.442695
    %v5167 = vpow.pop %v5166
    %v5168 = vadd.f32 %v5153, 1.0
    %v5169 = vadd.f32 %v5155, 1.0
    %v5170 = vadd.f32 %v5157, 1.0
    %v5171 = vadd.f32 %v5159, 1.0
    %v5172 = vadd.f32 %v5161, 1.0
    %v5173 = vadd.f32 %v5163, 1.0
    %v5174 = vadd.f32 %v5165, 1.0
    %v5175 = vadd.f32 %v5167, 1.0
    %v5176 = vrcp.pop %v5168
    %v5177 = vmul.f32 1.0, %v5176
    %v5178 = vrcp.pop %v5169
    %v5179 = vmul.f32 1.0, %v5178
    %v5180 = vrcp.pop %v5170
    %v5181 = vmul.f32 1.0, %v5180
    %v5182 = vrcp.pop %v5171
    %v5183 = vmul.f32 1.0, %v5182
    %v5184 = vrcp.pop %v5172
    %v5185 = vmul.f32 1.0, %v5184
    %v5186 = vrcp.pop %v5173
    %v5187 = vmul.f32 1.0, %v5186
    %v5188 = vrcp.pop %v5174
    %v5189 = vmul.f32 1.0, %v5188
    %v5190 = vrcp.pop %v5175
    %v5191 = vmul.f32 1.0, %v5190
    %v5200 = vrot.slane %v4864, 1
    %v5201 = vrot.slane %v4866, 1
    %v5202 = vrot.slane %v4868, 1
    %v5203 = vrot.slane %v4870, 1
    %v5204 = vrot.slane %v4872, 1
    %v5205 = vrot.slane %v4874, 1
    %v5206 = vrot.slane %v4876, 1
    %v5207 = vrot.slane %v4878, 1
    %v5217 = vcombine.high %v5006, %v5006
    %v5219 = vunpack.c.l.s4 1966171168
    %v5220 = vunpack.c.0.s8 %v5219
    %v5221 = vlaneseq
    %v5222 = vshrl.u32 %v5221, 7
    %v5223 = vsub.s32 %v5220, %v5222
    %v5224 = vrot.slane %v5006, %v5223
    %v5226 = vunpack.c.l.s4 1966171168
    %v5227 = vunpack.c.0.s8 %v5226
    %v5228 = vlaneseq
    %v5229 = vshrl.u32 %v5228, 7
    %v5230 = vsub.s32 %v5227, %v5229
    %v5231 = vrot.slane %v5217, %v5230
    %v5232 = vcombine.high %v5224, %v5224
    %v5233 = vcombine.high %v5231, %v5231
    %v5235 = vunpack.c.l.s4 1966171168
    %v5236 = vunpack.c.0.s8 %v5235
    %v5237 = vlaneseq
    %v5238 = vshrl.u32 %v5237, 7
    %v5239 = vsub.s32 %v5236, %v5238
    %v5240 = vrot.slane %v5224, %v5239
    %v5242 = vunpack.c.l.s4 1966171168
    %v5243 = vunpack.c.0.s8 %v5242
    %v5244 = vlaneseq
    %v5245 = vshrl.u32 %v5244, 7
    %v5246 = vsub.s32 %v5243, %v5245
    %v5247 = vrot.slane %v5231, %v5246
    %v5249 = vunpack.c.l.s4 1966171168
    %v5250 = vunpack.c.0.s8 %v5249
    %v5251 = vlaneseq
    %v5252 = vshrl.u32 %v5251, 7
    %v5253 = vsub.s32 %v5250, %v5252
    %v5254 = vrot.slane %v5232, %v5253
    %v5256 = vunpack.c.l.s4 1966171168
    %v5257 = vunpack.c.0.s8 %v5256
    %v5258 = vlaneseq
    %v5259 = vshrl.u32 %v5258, 7
    %v5260 = vsub.s32 %v5257, %v5259
    %v5261 = vrot.slane %v5233, %v5260
    %v5262 = vcombine.high %v5240, %v5240
    %v5263 = vcombine.high %v5247, %v5247
    %v5264 = vcombine.high %v5254, %v5254
    %v5265 = vcombine.high %v5261, %v5261
    %v5274 = vadd.f32 %v5200, %v5240
    %v5275 = vadd.f32 %v5201, %v5254
    %v5276 = vadd.f32 %v5202, %v5262
    %v5277 = vadd.f32 %v5203, %v5264
    %v5278 = vadd.f32 %v5204, %v5247
    %v5279 = vadd.f32 %v5205, %v5261
    %v5280 = vadd.f32 %v5206, %v5263
    %v5281 = vadd.f32 %v5207, %v5265
    %v5282 = vxor.u32 %v5274, 2147483648
    %v5283 = vxor.u32 %v5275, 2147483648
    %v5284 = vxor.u32 %v5276, 2147483648
    %v5285 = vxor.u32 %v5277, 2147483648
    %v5286 = vxor.u32 %v5278, 2147483648
    %v5287 = vxor.u32 %v5279, 2147483648
    %v5288 = vxor.u32 %v5280, 2147483648
    %v5289 = vxor.u32 %v5281, 2147483648
    %v5290 = vmul.f32 %v5282, 1.442695
    %v5291 = vpow.pop %v5290
    %v5292 = vmul.f32 %v5283, 1.442695
    %v5293 = vpow.pop %v5292
    %v5294 = vmul.f32 %v5284, 1.442695
    %v5295 = vpow.pop %v5294
    %v5296 = vmul.f32 %v5285, 1.442695
    %v5297 = vpow.pop %v5296
    %v5298 = vmul.f32 %v5286, 1.442695
    %v5299 = vpow.pop %v5298
    %v5300 = vmul.f32 %v5287, 1.442695
    %v5301 = vpow.pop %v5300
    %v5302 = vmul.f32 %v5288, 1.442695
    %v5303 = vpow.pop %v5302
    %v5304 = vmul.f32 %v5289, 1.442695
    %v5305 = vpow.pop %v5304
    %v5306 = vadd.f32 %v5291, 1.0
    %v5307 = vadd.f32 %v5293, 1.0
    %v5308 = vadd.f32 %v5295, 1.0
    %v5309 = vadd.f32 %v5297, 1.0
    %v5310 = vadd.f32 %v5299, 1.0
    %v5311 = vadd.f32 %v5301, 1.0
    %v5312 = vadd.f32 %v5303, 1.0
    %v5313 = vadd.f32 %v5305, 1.0
    %v5314 = vrcp.pop %v5306
    %v5315 = vmul.f32 1.0, %v5314
    %v5316 = vrcp.pop %v5307
    %v5317 = vmul.f32 1.0, %v5316
    %v5318 = vrcp.pop %v5308
    %v5319 = vmul.f32 1.0, %v5318
    %v5320 = vrcp.pop %v5309
    %v5321 = vmul.f32 1.0, %v5320
    %v5322 = vrcp.pop %v5310
    %v5323 = vmul.f32 1.0, %v5322
    %v5324 = vrcp.pop %v5311
    %v5325 = vmul.f32 1.0, %v5324
    %v5326 = vrcp.pop %v5312
    %v5327 = vmul.f32 1.0, %v5326
    %v5328 = vrcp.pop %v5313
    %v5329 = vmul.f32 1.0, %v5328
    %v5331 = vcombine.high %v5075, %v5075
    %v5333 = vunpack.c.l.s4 1966171168
    %v5334 = vunpack.c.0.s8 %v5333
    %v5335 = vlaneseq
    %v5336 = vshrl.u32 %v5335, 7
    %v5337 = vsub.s32 %v5334, %v5336
    %v5338 = vrot.slane %v5075, %v5337
    %v5340 = vunpack.c.l.s4 1966171168
    %v5341 = vunpack.c.0.s8 %v5340
    %v5342 = vlaneseq
    %v5343 = vshrl.u32 %v5342, 7
    %v5344 = vsub.s32 %v5341, %v5343
    %v5345 = vrot.slane %v5331, %v5344
    %v5346 = vcombine.high %v5338, %v5338
    %v5347 = vcombine.high %v5345, %v5345
    %v5349 = vunpack.c.l.s4 1966171168
    %v5350 = vunpack.c.0.s8 %v5349
    %v5351 = vlaneseq
    %v5352 = vshrl.u32 %v5351, 7
    %v5353 = vsub.s32 %v5350, %v5352
    %v5354 = vrot.slane %v5338, %v5353
    %v5356 = vunpack.c.l.s4 1966171168
    %v5357 = vunpack.c.0.s8 %v5356
    %v5358 = vlaneseq
    %v5359 = vshrl.u32 %v5358, 7
    %v5360 = vsub.s32 %v5357, %v5359
    %v5361 = vrot.slane %v5345, %v5360
    %v5363 = vunpack.c.l.s4 1966171168
    %v5364 = vunpack.c.0.s8 %v5363
    %v5365 = vlaneseq
    %v5366 = vshrl.u32 %v5365, 7
    %v5367 = vsub.s32 %v5364, %v5366
    %v5368 = vrot.slane %v5346, %v5367
    %v5370 = vunpack.c.l.s4 1966171168
    %v5371 = vunpack.c.0.s8 %v5370
    %v5372 = vlaneseq
    %v5373 = vshrl.u32 %v5372, 7
    %v5374 = vsub.s32 %v5371, %v5373
    %v5375 = vrot.slane %v5347, %v5374
    %v5376 = vcombine.high %v5354, %v5354
    %v5377 = vcombine.high %v5361, %v5361
    %v5378 = vcombine.high %v5368, %v5368
    %v5379 = vcombine.high %v5375, %v5375
    %v5388 = vmul.f32 %v5177, %v5354
    %v5389 = vmul.f32 %v5179, %v5368
    %v5390 = vmul.f32 %v5181, %v5376
    %v5391 = vmul.f32 %v5183, %v5378
    %v5392 = vmul.f32 %v5185, %v5361
    %v5393 = vmul.f32 %v5187, %v5375
    %v5394 = vmul.f32 %v5189, %v5377
    %v5395 = vmul.f32 %v5191, %v5379
    %v5396 = vrot.slane %v4864, 2
    %v5397 = vrot.slane %v4866, 2
    %v5398 = vrot.slane %v4868, 2
    %v5399 = vrot.slane %v4870, 2
    %v5400 = vrot.slane %v4872, 2
    %v5401 = vrot.slane %v4874, 2
    %v5402 = vrot.slane %v4876, 2
    %v5403 = vrot.slane %v4878, 2
    %v5412 = vadd.f32 %v5396, %v5388
    %v5413 = vadd.f32 %v5397, %v5389
    %v5414 = vadd.f32 %v5398, %v5390
    %v5415 = vadd.f32 %v5399, %v5391
    %v5416 = vadd.f32 %v5400, %v5392
    %v5417 = vadd.f32 %v5401, %v5393
    %v5418 = vadd.f32 %v5402, %v5394
    %v5419 = vadd.f32 %v5403, %v5395
    %v5420 = vtanh.pop %v5412
    %v5421 = vtanh.pop %v5413
    %v5422 = vtanh.pop %v5414
    %v5423 = vtanh.pop %v5415
    %v5424 = vtanh.pop %v5416
    %v5425 = vtanh.pop %v5417
    %v5426 = vtanh.pop %v5418
    %v5427 = vtanh.pop %v5419
    %v5428 = vsub.f32 1.0, %v5315
    %v5429 = vsub.f32 1.0, %v5317
    %v5430 = vsub.f32 1.0, %v5319
    %v5431 = vsub.f32 1.0, %v5321
    %v5432 = vsub.f32 1.0, %v5323
    %v5433 = vsub.f32 1.0, %v5325
    %v5434 = vsub.f32 1.0, %v5327
    %v5435 = vsub.f32 1.0, %v5329
    %v5436 = vmul.f32 %v5428, %v5420
    %v5437 = vmul.f32 %v5429, %v5421
    %v5438 = vmul.f32 %v5430, %v5422
    %v5439 = vmul.f32 %v5431, %v5423
    %v5440 = vmul.f32 %v5432, %v5424
    %v5441 = vmul.f32 %v5433, %v5425
    %v5442 = vmul.f32 %v5434, %v5426
    %v5443 = vmul.f32 %v5435, %v5427
    %v5444 = vmul.f32 %v5315, %v4661
    %v5445 = vmul.f32 %v5317, %v4662
    %v5446 = vmul.f32 %v5319, %v4663
    %v5447 = vmul.f32 %v5321, %v4664
    %v5448 = vmul.f32 %v5323, %v4665
    %v5449 = vmul.f32 %v5325, %v4666
    %v5450 = vmul.f32 %v5327, %v4667
    %v5451 = vmul.f32 %v5329, %v4668
    %v5452 = vadd.f32 %v5436, %v5444
    %v5453 = vadd.f32 %v5437, %v5445
    %v5454 = vadd.f32 %v5438, %v5446
    %v5455 = vadd.f32 %v5439, %v5447
    %v5456 = vadd.f32 %v5440, %v5448
    %v5457 = vadd.f32 %v5441, %v5449
    %v5458 = vadd.f32 %v5442, %v5450
    %v5459 = vadd.f32 %v5443, %v5451
    %s5460 = sadd.s32 %s102, 6
    %v5461 = vstv %s5460
    %vm5462 = vcmp.gt.s32.totalorder %v51, %v5461
    %v5463 = vsel %vm5462, 1, 0
    %v5464 = vcvt.s32.f32 %v5463
    %5466 = vset.pattern.permute.xlu0 0
    %5467 = vperm.xlu0 %5466, %v5464
    %v5468 = vpop.permute.xlu0 %5467
    %v5469 = vlaneseq
    %v5470 = vshrl.u32 %v5469, 7
    %v5471 = vsub.s32 0, %v5470
    %v5472 = vrot.slane %v5468, %v5471
    %v5473 = vlaneseq
    %v5474 = vshrl.u32 %v5473, 7
    %v5475 = vsub.s32 1, %v5474
    %v5476 = vrot.slane %v5468, %v5475
    %v5477 = vlaneseq
    %v5478 = vshrl.u32 %v5477, 7
    %v5479 = vsub.s32 2, %v5478
    %v5480 = vrot.slane %v5468, %v5479
    %v5481 = vlaneseq
    %v5482 = vshrl.u32 %v5481, 7
    %v5483 = vsub.s32 3, %v5482
    %v5484 = vrot.slane %v5468, %v5483
    %v5485 = vlaneseq
    %v5486 = vshrl.u32 %v5485, 7
    %v5487 = vsub.s32 4, %v5486
    %v5488 = vrot.slane %v5468, %v5487
    %v5489 = vlaneseq
    %v5490 = vshrl.u32 %v5489, 7
    %v5491 = vsub.s32 5, %v5490
    %v5492 = vrot.slane %v5468, %v5491
    %v5493 = vlaneseq
    %v5494 = vshrl.u32 %v5493, 7
    %v5495 = vsub.s32 6, %v5494
    %v5496 = vrot.slane %v5468, %v5495
    %v5497 = vlaneseq
    %v5498 = vshrl.u32 %v5497, 7
    %v5499 = vsub.s32 7, %v5498
    %v5500 = vrot.slane %v5468, %v5499
    %v5509 = vmul.f32 %v5452, %v5472
    %v5510 = vmul.f32 %v5453, %v5476
    %v5511 = vmul.f32 %v5454, %v5480
    %v5512 = vmul.f32 %v5455, %v5484
    %v5513 = vmul.f32 %v5456, %v5488
    %v5514 = vmul.f32 %v5457, %v5492
    %v5515 = vmul.f32 %v5458, %v5496
    %v5516 = vmul.f32 %v5459, %v5500
    %v5517 = vmul.f32 %v5509, %v5509
    %v5518 = vmul.f32 %v5510, %v5510
    %v5519 = vmul.f32 %v5511, %v5511
    %v5520 = vmul.f32 %v5512, %v5512
    %v5521 = vmul.f32 %v5513, %v5513
    %v5522 = vmul.f32 %v5514, %v5514
    %v5523 = vmul.f32 %v5515, %v5515
    %v5524 = vmul.f32 %v5516, %v5516
    %v5533 = vcombine.low %v5517, %v5518
    %v5534 = vcombine.low %v5519, %v5520
    %v5535 = vcombine.low %v5521, %v5522
    %v5536 = vcombine.low %v5523, %v5524
    %v5538 = vunpack.c.l.s4 1966171168
    %v5539 = vunpack.c.0.s8 %v5538
    %v5540 = vlaneseq
    %v5541 = vshrl.u32 %v5540, 7
    %v5542 = vsub.s32 %v5539, %v5541
    %v5543 = vrot.slane %v5533, %v5542
    %v5545 = vunpack.c.l.s4 1966171168
    %v5546 = vunpack.c.0.s8 %v5545
    %v5547 = vlaneseq
    %v5548 = vshrl.u32 %v5547, 7
    %v5549 = vsub.s32 %v5546, %v5548
    %v5550 = vrot.slane %v5534, %v5549
    %v5552 = vunpack.c.l.s4 1966171168
    %v5553 = vunpack.c.0.s8 %v5552
    %v5554 = vlaneseq
    %v5555 = vshrl.u32 %v5554, 7
    %v5556 = vsub.s32 %v5553, %v5555
    %v5557 = vrot.slane %v5535, %v5556
    %v5559 = vunpack.c.l.s4 1966171168
    %v5560 = vunpack.c.0.s8 %v5559
    %v5561 = vlaneseq
    %v5562 = vshrl.u32 %v5561, 7
    %v5563 = vsub.s32 %v5560, %v5562
    %v5564 = vrot.slane %v5536, %v5563
    %v5565 = vcombine.low %v5543, %v5550
    %v5566 = vcombine.low %v5557, %v5564
    %v5568 = vunpack.c.l.s4 1966171168
    %v5569 = vunpack.c.0.s8 %v5568
    %v5570 = vlaneseq
    %v5571 = vshrl.u32 %v5570, 7
    %v5572 = vsub.s32 %v5569, %v5571
    %v5573 = vrot.slane %v5565, %v5572
    %v5575 = vunpack.c.l.s4 1966171168
    %v5576 = vunpack.c.0.s8 %v5575
    %v5577 = vlaneseq
    %v5578 = vshrl.u32 %v5577, 7
    %v5579 = vsub.s32 %v5576, %v5578
    %v5580 = vrot.slane %v5566, %v5579
    %v5581 = vcombine.low %v5573, %v5580
    %5583 = vadd.xlane.f32.xlu0 %v5581
    %v5584 = vpop.xlane.xlu0 %5583
    %v5585 = vrsqrt.pop %v5584
    %v5586 = vmul.f32 %v5584, %v5585
    %vm5587 = vcmp.eq.f32.partialorder %v5584, inf
    %v5588 = vsel %vm5587, %v5584, %v5586
    %vm5589 = vcmp.eq.f32.partialorder %v5584, 0.0
    %v5590 = vand.u32 %v5584, 2147483648
    %v5591 = vsel %vm5589, %v5590, %v5588
    %v5592 = vadd.f32 %v5591, 1e-08
    %v5593 = vrcp.pop %v5592
    %v5594 = vmul.f32 %v5592, %v5593
    %v5595 = vsub.f32 2.0, %v5594
    %v5596 = vmul.f32 %v5593, %v5595
    %v5598 = vlaneseq
    %v5599 = vshrl.u32 %v5598, 7
    %v5600 = vsub.s32 0, %v5599
    %v5601 = vrot.slane %v5596, %v5600
    %v5602 = vlaneseq
    %v5603 = vshrl.u32 %v5602, 7
    %v5604 = vsub.s32 1, %v5603
    %v5605 = vrot.slane %v5596, %v5604
    %v5606 = vlaneseq
    %v5607 = vshrl.u32 %v5606, 7
    %v5608 = vsub.s32 2, %v5607
    %v5609 = vrot.slane %v5596, %v5608
    %v5610 = vlaneseq
    %v5611 = vshrl.u32 %v5610, 7
    %v5612 = vsub.s32 3, %v5611
    %v5613 = vrot.slane %v5596, %v5612
    %v5614 = vlaneseq
    %v5615 = vshrl.u32 %v5614, 7
    %v5616 = vsub.s32 4, %v5615
    %v5617 = vrot.slane %v5596, %v5616
    %v5618 = vlaneseq
    %v5619 = vshrl.u32 %v5618, 7
    %v5620 = vsub.s32 5, %v5619
    %v5621 = vrot.slane %v5596, %v5620
    %v5622 = vlaneseq
    %v5623 = vshrl.u32 %v5622, 7
    %v5624 = vsub.s32 6, %v5623
    %v5625 = vrot.slane %v5596, %v5624
    %v5626 = vlaneseq
    %v5627 = vshrl.u32 %v5626, 7
    %v5628 = vsub.s32 7, %v5627
    %v5629 = vrot.slane %v5596, %v5628
    %v5638 = vmul.f32 %v5509, %v5601
    %v5639 = vmul.f32 %v5510, %v5605
    %v5640 = vmul.f32 %v5511, %v5609
    %v5641 = vmul.f32 %v5512, %v5613
    %v5642 = vmul.f32 %v5513, %v5617
    %v5643 = vmul.f32 %v5514, %v5621
    %v5644 = vmul.f32 %v5515, %v5625
    %v5645 = vmul.f32 %v5516, %v5629
    %5646 = vst [vmem:[#allocation8 + $0x6] sm:$0x1] %v5638
    %5647 = vst [vmem:[#allocation8 + $0xe] sm:$0x1] %v5639
    %5648 = vst [vmem:[#allocation8 + $0x16] sm:$0x1] %v5640
    %5649 = vst [vmem:[#allocation8 + $0x1e] sm:$0x1] %v5641
    %5650 = vst [vmem:[#allocation8 + $0x26] sm:$0x1] %v5642
    %5651 = vst [vmem:[#allocation8 + $0x2e] sm:$0x1] %v5643
    %5652 = vst [vmem:[#allocation8 + $0x36] sm:$0x1] %v5644
    %5653 = vst [vmem:[#allocation8 + $0x3e] sm:$0x1] %v5645
    %s5654 = scalar_lea.vmem [#allocation3], 7
    %v5655 = vld [vmem:[%s5654] ss:$8 sm:$0x7]
    %s5656 = scalar_lea.vmem [#allocation3], 31
    %v5657 = vld [vmem:[%s5656] ss:$8 sm:$0x7]
    %s5658 = scalar_lea.vmem [#allocation3], 55
    %v5659 = vld [vmem:[%s5658] ss:$8 sm:$0x7]
    %s5660 = scalar_lea.vmem [#allocation3], 79
    %v5661 = vld [vmem:[%s5660] ss:$8 sm:$0x7]
    %s5662 = scalar_lea.vmem [#allocation3], 103
    %v5663 = vld [vmem:[%s5662] ss:$8 sm:$0x7]
    %s5664 = scalar_lea.vmem [#allocation3], 127
    %v5665 = vld [vmem:[%s5664] ss:$8 sm:$0x7]
    %s5666 = scalar_lea.vmem [#allocation3], 151
    %v5667 = vld [vmem:[%s5666] ss:$8 sm:$0x7]
    %s5668 = scalar_lea.vmem [#allocation3], 175
    %v5669 = vld [vmem:[%s5668] ss:$8 sm:$0x7]
    %v5678 = vcombine.low %v5452, %v5453
    %v5679 = vcombine.low %v5454, %v5455
    %v5680 = vcombine.low %v5456, %v5457
    %v5681 = vcombine.low %v5458, %v5459
    %v5683 = vunpack.c.l.s4 1966171168
    %v5684 = vunpack.c.0.s8 %v5683
    %v5685 = vlaneseq
    %v5686 = vshrl.u32 %v5685, 7
    %v5687 = vsub.s32 %v5684, %v5686
    %v5688 = vrot.slane %v5678, %v5687
    %v5690 = vunpack.c.l.s4 1966171168
    %v5691 = vunpack.c.0.s8 %v5690
    %v5692 = vlaneseq
    %v5693 = vshrl.u32 %v5692, 7
    %v5694 = vsub.s32 %v5691, %v5693
    %v5695 = vrot.slane %v5679, %v5694
    %v5697 = vunpack.c.l.s4 1966171168
    %v5698 = vunpack.c.0.s8 %v5697
    %v5699 = vlaneseq
    %v5700 = vshrl.u32 %v5699, 7
    %v5701 = vsub.s32 %v5698, %v5700
    %v5702 = vrot.slane %v5680, %v5701
    %v5704 = vunpack.c.l.s4 1966171168
    %v5705 = vunpack.c.0.s8 %v5704
    %v5706 = vlaneseq
    %v5707 = vshrl.u32 %v5706, 7
    %v5708 = vsub.s32 %v5705, %v5707
    %v5709 = vrot.slane %v5681, %v5708
    %v5710 = vcombine.low %v5688, %v5695
    %v5711 = vcombine.low %v5702, %v5709
    %v5713 = vunpack.c.l.s4 1966171168
    %v5714 = vunpack.c.0.s8 %v5713
    %v5715 = vlaneseq
    %v5716 = vshrl.u32 %v5715, 7
    %v5717 = vsub.s32 %v5714, %v5716
    %v5718 = vrot.slane %v5710, %v5717
    %v5720 = vunpack.c.l.s4 1966171168
    %v5721 = vunpack.c.0.s8 %v5720
    %v5722 = vlaneseq
    %v5723 = vshrl.u32 %v5722, 7
    %v5724 = vsub.s32 %v5721, %v5723
    %v5725 = vrot.slane %v5711, %v5724
    %v5726 = vcombine.low %v5718, %v5725
    %5728 = vmatprep.subr.mxu0 %v53
    %5729 = vmatpush1.msra.mxu0 %v52
    %5730 = vmatprep.subr.mxu0 %v56
    %5731 = vmatpush1.msra.mxu0 %v55
    %5732 = vmatprep.subr.mxu0 %v59
    %5733 = vmatpush1.msra.mxu0 %v58
    %5734 = vmatprep.subr.mxu0 %v62
    %5735 = vmatpush1.msra.mxu0 %v61
    %5736 = vmatprep.subr.mxu0 %v65
    %5737 = vmatpush1.msra.mxu0 %v64
    %5738 = vmatprep.subr.mxu0 %v68
    %5739 = vmatpush1.msra.mxu0 %v67
    %5740 = vmatprep.subr.mxu0 %v71
    %5741 = vmatpush1.msra.mxu0 %v70
    %5742 = vmatprep.subr.mxu0 %v74
    %5743 = vmatpush1.msra.mxu0 %v73
    %5744 = vmatprep.subr.mxu0 %v77
    %5745 = vmatpush1.msra.mxu0 %v76
    %5746 = vmatprep.subr.mxu0 %v80
    %5747 = vmatpush1.msra.mxu0 %v79
    %5748 = vmatprep.subr.mxu0 %v83
    %5749 = vmatpush1.msra.mxu0 %v82
    %5750 = vmatprep.subr.mxu0 %v86
    %5751 = vmatpush1.msra.mxu0 %v85
    %5752 = vmatprep.subr.mxu0 %v89
    %5753 = vmatpush1.msra.mxu0 %v88
    %5754 = vmatprep.subr.mxu0 %v92
    %5755 = vmatpush1.msra.mxu0 %v91
    %5756 = vmatprep.subr.mxu0 %v95
    %5757 = vmatpush1.msra.mxu0 %v94
    %5758 = vmatprep.subr.mxu0 %v98
    %5759 = vmatpush1.msra.mxu0 %v97
    %5760 = vmatprep.subr.mxu0 0.0
    %5761 = vmatpush1.msra.mxu0 0.0
    %5762 = vmatprep.subr.mxu0 0.0
    %5763 = vmatpush1.msra.mxu0 0.0
    %5764 = vmatprep.subr.mxu0 0.0
    %5765 = vmatpush1.msra.mxu0 0.0
    %5766 = vmatprep.subr.mxu0 0.0
    %5767 = vmatpush1.msra.mxu0 0.0
    %5768 = vmatprep.subr.mxu0 0.0
    %5769 = vmatpush1.msra.mxu0 0.0
    %5770 = vmatprep.subr.mxu0 0.0
    %5771 = vmatpush1.msra.mxu0 0.0
    %5772 = vmatprep.subr.mxu0 0.0
    %5773 = vmatpush1.msra.mxu0 0.0
    %5774 = vmatprep.subr.mxu0 0.0
    %5775 = vmatpush1.msra.mxu0 0.0
    %5776 = vmatprep.subr.mxu0 0.0
    %5777 = vmatpush1.msra.mxu0 0.0
    %5778 = vmatprep.subr.mxu0 0.0
    %5779 = vmatpush1.msra.mxu0 0.0
    %5780 = vmatprep.subr.mxu0 0.0
    %5781 = vmatpush1.msra.mxu0 0.0
    %5782 = vmatprep.subr.mxu0 0.0
    %5783 = vmatpush1.msra.mxu0 0.0
    %5784 = vmatprep.subr.mxu0 0.0
    %5785 = vmatpush1.msra.mxu0 0.0
    %5786 = vmatprep.subr.mxu0 0.0
    %5787 = vmatpush1.msra.mxu0 0.0
    %5788 = vmatprep.subr.mxu0 0.0
    %5789 = vmatpush1.msra.mxu0 0.0
    %5790 = vmatprep.subr.mxu0 0.0
    %5791 = vmatpush1.msra.mxu0 0.0
    %5792 = vmatprep.mubr.f32.mxu0 0.0
    %5793 = vmatmul.mubr.f32.gmra.mrb[0].mxu0 %v5726
    %v5794 = vpop.f32.mrb[0].mxu0
    %v5795 = vadd.f32 %v122, %v5794
    %v5796 = vpop.f32.mrb[0].mxu0
    %v5797 = vadd.f32 %v126, %v5796
    %5798 = vdwg.mxu0
    %5799 = vmatprep.subr.mxu0 0.0
    %5800 = vmatpush1.msra.mxu0 %v54
    %5801 = vmatprep.subr.mxu0 0.0
    %5802 = vmatpush1.msra.mxu0 %v57
    %5803 = vmatprep.subr.mxu0 0.0
    %5804 = vmatpush1.msra.mxu0 %v60
    %5805 = vmatprep.subr.mxu0 0.0
    %5806 = vmatpush1.msra.mxu0 %v63
    %5807 = vmatprep.subr.mxu0 0.0
    %5808 = vmatpush1.msra.mxu0 %v66
    %5809 = vmatprep.subr.mxu0 0.0
    %5810 = vmatpush1.msra.mxu0 %v69
    %5811 = vmatprep.subr.mxu0 0.0
    %5812 = vmatpush1.msra.mxu0 %v72
    %5813 = vmatprep.subr.mxu0 0.0
    %5814 = vmatpush1.msra.mxu0 %v75
    %5815 = vmatprep.subr.mxu0 0.0
    %5816 = vmatpush1.msra.mxu0 %v78
    %5817 = vmatprep.subr.mxu0 0.0
    %5818 = vmatpush1.msra.mxu0 %v81
    %5819 = vmatprep.subr.mxu0 0.0
    %5820 = vmatpush1.msra.mxu0 %v84
    %5821 = vmatprep.subr.mxu0 0.0
    %5822 = vmatpush1.msra.mxu0 %v87
    %5823 = vmatprep.subr.mxu0 0.0
    %5824 = vmatpush1.msra.mxu0 %v90
    %5825 = vmatprep.subr.mxu0 0.0
    %5826 = vmatpush1.msra.mxu0 %v93
    %5827 = vmatprep.subr.mxu0 0.0
    %5828 = vmatpush1.msra.mxu0 %v96
    %5829 = vmatprep.subr.mxu0 0.0
    %5830 = vmatpush1.msra.mxu0 %v99
    %5831 = vmatprep.subr.mxu0 0.0
    %5832 = vmatpush1.msra.mxu0 0.0
    %5833 = vmatprep.subr.mxu0 0.0
    %5834 = vmatpush1.msra.mxu0 0.0
    %5835 = vmatprep.subr.mxu0 0.0
    %5836 = vmatpush1.msra.mxu0 0.0
    %5837 = vmatprep.subr.mxu0 0.0
    %5838 = vmatpush1.msra.mxu0 0.0
    %5839 = vmatprep.subr.mxu0 0.0
    %5840 = vmatpush1.msra.mxu0 0.0
    %5841 = vmatprep.subr.mxu0 0.0
    %5842 = vmatpush1.msra.mxu0 0.0
    %5843 = vmatprep.subr.mxu0 0.0
    %5844 = vmatpush1.msra.mxu0 0.0
    %5845 = vmatprep.subr.mxu0 0.0
    %5846 = vmatpush1.msra.mxu0 0.0
    %5847 = vmatprep.subr.mxu0 0.0
    %5848 = vmatpush1.msra.mxu0 0.0
    %5849 = vmatprep.subr.mxu0 0.0
    %5850 = vmatpush1.msra.mxu0 0.0
    %5851 = vmatprep.subr.mxu0 0.0
    %5852 = vmatpush1.msra.mxu0 0.0
    %5853 = vmatprep.subr.mxu0 0.0
    %5854 = vmatpush1.msra.mxu0 0.0
    %5855 = vmatprep.subr.mxu0 0.0
    %5856 = vmatpush1.msra.mxu0 0.0
    %5857 = vmatprep.subr.mxu0 0.0
    %5858 = vmatpush1.msra.mxu0 0.0
    %5859 = vmatprep.subr.mxu0 0.0
    %5860 = vmatpush1.msra.mxu0 0.0
    %5861 = vmatprep.subr.mxu0 0.0
    %5862 = vmatpush1.msra.mxu0 0.0
    %5863 = vmatprep.mubr.f32.mxu0 0.0
    %5864 = vmatmul.mubr.f32.gmra.mrb[0].mxu0 %v5726
    %v5865 = vpop.f32.mrb[0].mxu0
    %v5866 = vadd.f32 %v130, %v5865
    %v5867 = vpop.f32.mrb[0].mxu0
    %5868 = vdwg.mxu0
    %v5870 = vcombine.high %v5795, %v5795
    %v5872 = vunpack.c.l.s4 1966171168
    %v5873 = vunpack.c.0.s8 %v5872
    %v5874 = vlaneseq
    %v5875 = vshrl.u32 %v5874, 7
    %v5876 = vsub.s32 %v5873, %v5875
    %v5877 = vrot.slane %v5795, %v5876
    %v5879 = vunpack.c.l.s4 1966171168
    %v5880 = vunpack.c.0.s8 %v5879
    %v5881 = vlaneseq
    %v5882 = vshrl.u32 %v5881, 7
    %v5883 = vsub.s32 %v5880, %v5882
    %v5884 = vrot.slane %v5870, %v5883
    %v5885 = vcombine.high %v5877, %v5877
    %v5886 = vcombine.high %v5884, %v5884
    %v5888 = vunpack.c.l.s4 1966171168
    %v5889 = vunpack.c.0.s8 %v5888
    %v5890 = vlaneseq
    %v5891 = vshrl.u32 %v5890, 7
    %v5892 = vsub.s32 %v5889, %v5891
    %v5893 = vrot.slane %v5877, %v5892
    %v5895 = vunpack.c.l.s4 1966171168
    %v5896 = vunpack.c.0.s8 %v5895
    %v5897 = vlaneseq
    %v5898 = vshrl.u32 %v5897, 7
    %v5899 = vsub.s32 %v5896, %v5898
    %v5900 = vrot.slane %v5884, %v5899
    %v5902 = vunpack.c.l.s4 1966171168
    %v5903 = vunpack.c.0.s8 %v5902
    %v5904 = vlaneseq
    %v5905 = vshrl.u32 %v5904, 7
    %v5906 = vsub.s32 %v5903, %v5905
    %v5907 = vrot.slane %v5885, %v5906
    %v5909 = vunpack.c.l.s4 1966171168
    %v5910 = vunpack.c.0.s8 %v5909
    %v5911 = vlaneseq
    %v5912 = vshrl.u32 %v5911, 7
    %v5913 = vsub.s32 %v5910, %v5912
    %v5914 = vrot.slane %v5886, %v5913
    %v5915 = vcombine.high %v5893, %v5893
    %v5916 = vcombine.high %v5900, %v5900
    %v5917 = vcombine.high %v5907, %v5907
    %v5918 = vcombine.high %v5914, %v5914
    %v5927 = vadd.f32 %v5655, %v5893
    %v5928 = vadd.f32 %v5657, %v5907
    %v5929 = vadd.f32 %v5659, %v5915
    %v5930 = vadd.f32 %v5661, %v5917
    %v5931 = vadd.f32 %v5663, %v5900
    %v5932 = vadd.f32 %v5665, %v5914
    %v5933 = vadd.f32 %v5667, %v5916
    %v5934 = vadd.f32 %v5669, %v5918
    %v5935 = vxor.u32 %v5927, 2147483648
    %v5936 = vxor.u32 %v5928, 2147483648
    %v5937 = vxor.u32 %v5929, 2147483648
    %v5938 = vxor.u32 %v5930, 2147483648
    %v5939 = vxor.u32 %v5931, 2147483648
    %v5940 = vxor.u32 %v5932, 2147483648
    %v5941 = vxor.u32 %v5933, 2147483648
    %v5942 = vxor.u32 %v5934, 2147483648
    %v5943 = vmul.f32 %v5935, 1.442695
    %v5944 = vpow.pop %v5943
    %v5945 = vmul.f32 %v5936, 1.442695
    %v5946 = vpow.pop %v5945
    %v5947 = vmul.f32 %v5937, 1.442695
    %v5948 = vpow.pop %v5947
    %v5949 = vmul.f32 %v5938, 1.442695
    %v5950 = vpow.pop %v5949
    %v5951 = vmul.f32 %v5939, 1.442695
    %v5952 = vpow.pop %v5951
    %v5953 = vmul.f32 %v5940, 1.442695
    %v5954 = vpow.pop %v5953
    %v5955 = vmul.f32 %v5941, 1.442695
    %v5956 = vpow.pop %v5955
    %v5957 = vmul.f32 %v5942, 1.442695
    %v5958 = vpow.pop %v5957
    %v5959 = vadd.f32 %v5944, 1.0
    %v5960 = vadd.f32 %v5946, 1.0
    %v5961 = vadd.f32 %v5948, 1.0
    %v5962 = vadd.f32 %v5950, 1.0
    %v5963 = vadd.f32 %v5952, 1.0
    %v5964 = vadd.f32 %v5954, 1.0
    %v5965 = vadd.f32 %v5956, 1.0
    %v5966 = vadd.f32 %v5958, 1.0
    %v5967 = vrcp.pop %v5959
    %v5968 = vmul.f32 1.0, %v5967
    %v5969 = vrcp.pop %v5960
    %v5970 = vmul.f32 1.0, %v5969
    %v5971 = vrcp.pop %v5961
    %v5972 = vmul.f32 1.0, %v5971
    %v5973 = vrcp.pop %v5962
    %v5974 = vmul.f32 1.0, %v5973
    %v5975 = vrcp.pop %v5963
    %v5976 = vmul.f32 1.0, %v5975
    %v5977 = vrcp.pop %v5964
    %v5978 = vmul.f32 1.0, %v5977
    %v5979 = vrcp.pop %v5965
    %v5980 = vmul.f32 1.0, %v5979
    %v5981 = vrcp.pop %v5966
    %v5982 = vmul.f32 1.0, %v5981
    %v5991 = vrot.slane %v5655, 1
    %v5992 = vrot.slane %v5657, 1
    %v5993 = vrot.slane %v5659, 1
    %v5994 = vrot.slane %v5661, 1
    %v5995 = vrot.slane %v5663, 1
    %v5996 = vrot.slane %v5665, 1
    %v5997 = vrot.slane %v5667, 1
    %v5998 = vrot.slane %v5669, 1
    %v6008 = vcombine.high %v5797, %v5797
    %v6010 = vunpack.c.l.s4 1966171168
    %v6011 = vunpack.c.0.s8 %v6010
    %v6012 = vlaneseq
    %v6013 = vshrl.u32 %v6012, 7
    %v6014 = vsub.s32 %v6011, %v6013
    %v6015 = vrot.slane %v5797, %v6014
    %v6017 = vunpack.c.l.s4 1966171168
    %v6018 = vunpack.c.0.s8 %v6017
    %v6019 = vlaneseq
    %v6020 = vshrl.u32 %v6019, 7
    %v6021 = vsub.s32 %v6018, %v6020
    %v6022 = vrot.slane %v6008, %v6021
    %v6023 = vcombine.high %v6015, %v6015
    %v6024 = vcombine.high %v6022, %v6022
    %v6026 = vunpack.c.l.s4 1966171168
    %v6027 = vunpack.c.0.s8 %v6026
    %v6028 = vlaneseq
    %v6029 = vshrl.u32 %v6028, 7
    %v6030 = vsub.s32 %v6027, %v6029
    %v6031 = vrot.slane %v6015, %v6030
    %v6033 = vunpack.c.l.s4 1966171168
    %v6034 = vunpack.c.0.s8 %v6033
    %v6035 = vlaneseq
    %v6036 = vshrl.u32 %v6035, 7
    %v6037 = vsub.s32 %v6034, %v6036
    %v6038 = vrot.slane %v6022, %v6037
    %v6040 = vunpack.c.l.s4 1966171168
    %v6041 = vunpack.c.0.s8 %v6040
    %v6042 = vlaneseq
    %v6043 = vshrl.u32 %v6042, 7
    %v6044 = vsub.s32 %v6041, %v6043
    %v6045 = vrot.slane %v6023, %v6044
    %v6047 = vunpack.c.l.s4 1966171168
    %v6048 = vunpack.c.0.s8 %v6047
    %v6049 = vlaneseq
    %v6050 = vshrl.u32 %v6049, 7
    %v6051 = vsub.s32 %v6048, %v6050
    %v6052 = vrot.slane %v6024, %v6051
    %v6053 = vcombine.high %v6031, %v6031
    %v6054 = vcombine.high %v6038, %v6038
    %v6055 = vcombine.high %v6045, %v6045
    %v6056 = vcombine.high %v6052, %v6052
    %v6065 = vadd.f32 %v5991, %v6031
    %v6066 = vadd.f32 %v5992, %v6045
    %v6067 = vadd.f32 %v5993, %v6053
    %v6068 = vadd.f32 %v5994, %v6055
    %v6069 = vadd.f32 %v5995, %v6038
    %v6070 = vadd.f32 %v5996, %v6052
    %v6071 = vadd.f32 %v5997, %v6054
    %v6072 = vadd.f32 %v5998, %v6056
    %v6073 = vxor.u32 %v6065, 2147483648
    %v6074 = vxor.u32 %v6066, 2147483648
    %v6075 = vxor.u32 %v6067, 2147483648
    %v6076 = vxor.u32 %v6068, 2147483648
    %v6077 = vxor.u32 %v6069, 2147483648
    %v6078 = vxor.u32 %v6070, 2147483648
    %v6079 = vxor.u32 %v6071, 2147483648
    %v6080 = vxor.u32 %v6072, 2147483648
    %v6081 = vmul.f32 %v6073, 1.442695
    %v6082 = vpow.pop %v6081
    %v6083 = vmul.f32 %v6074, 1.442695
    %v6084 = vpow.pop %v6083
    %v6085 = vmul.f32 %v6075, 1.442695
    %v6086 = vpow.pop %v6085
    %v6087 = vmul.f32 %v6076, 1.442695
    %v6088 = vpow.pop %v6087
    %v6089 = vmul.f32 %v6077, 1.442695
    %v6090 = vpow.pop %v6089
    %v6091 = vmul.f32 %v6078, 1.442695
    %v6092 = vpow.pop %v6091
    %v6093 = vmul.f32 %v6079, 1.442695
    %v6094 = vpow.pop %v6093
    %v6095 = vmul.f32 %v6080, 1.442695
    %v6096 = vpow.pop %v6095
    %v6097 = vadd.f32 %v6082, 1.0
    %v6098 = vadd.f32 %v6084, 1.0
    %v6099 = vadd.f32 %v6086, 1.0
    %v6100 = vadd.f32 %v6088, 1.0
    %v6101 = vadd.f32 %v6090, 1.0
    %v6102 = vadd.f32 %v6092, 1.0
    %v6103 = vadd.f32 %v6094, 1.0
    %v6104 = vadd.f32 %v6096, 1.0
    %v6105 = vrcp.pop %v6097
    %v6106 = vmul.f32 1.0, %v6105
    %v6107 = vrcp.pop %v6098
    %v6108 = vmul.f32 1.0, %v6107
    %v6109 = vrcp.pop %v6099
    %v6110 = vmul.f32 1.0, %v6109
    %v6111 = vrcp.pop %v6100
    %v6112 = vmul.f32 1.0, %v6111
    %v6113 = vrcp.pop %v6101
    %v6114 = vmul.f32 1.0, %v6113
    %v6115 = vrcp.pop %v6102
    %v6116 = vmul.f32 1.0, %v6115
    %v6117 = vrcp.pop %v6103
    %v6118 = vmul.f32 1.0, %v6117
    %v6119 = vrcp.pop %v6104
    %v6120 = vmul.f32 1.0, %v6119
    %v6122 = vcombine.high %v5866, %v5866
    %v6124 = vunpack.c.l.s4 1966171168
    %v6125 = vunpack.c.0.s8 %v6124
    %v6126 = vlaneseq
    %v6127 = vshrl.u32 %v6126, 7
    %v6128 = vsub.s32 %v6125, %v6127
    %v6129 = vrot.slane %v5866, %v6128
    %v6131 = vunpack.c.l.s4 1966171168
    %v6132 = vunpack.c.0.s8 %v6131
    %v6133 = vlaneseq
    %v6134 = vshrl.u32 %v6133, 7
    %v6135 = vsub.s32 %v6132, %v6134
    %v6136 = vrot.slane %v6122, %v6135
    %v6137 = vcombine.high %v6129, %v6129
    %v6138 = vcombine.high %v6136, %v6136
    %v6140 = vunpack.c.l.s4 1966171168
    %v6141 = vunpack.c.0.s8 %v6140
    %v6142 = vlaneseq
    %v6143 = vshrl.u32 %v6142, 7
    %v6144 = vsub.s32 %v6141, %v6143
    %v6145 = vrot.slane %v6129, %v6144
    %v6147 = vunpack.c.l.s4 1966171168
    %v6148 = vunpack.c.0.s8 %v6147
    %v6149 = vlaneseq
    %v6150 = vshrl.u32 %v6149, 7
    %v6151 = vsub.s32 %v6148, %v6150
    %v6152 = vrot.slane %v6136, %v6151
    %v6154 = vunpack.c.l.s4 1966171168
    %v6155 = vunpack.c.0.s8 %v6154
    %v6156 = vlaneseq
    %v6157 = vshrl.u32 %v6156, 7
    %v6158 = vsub.s32 %v6155, %v6157
    %v6159 = vrot.slane %v6137, %v6158
    %v6161 = vunpack.c.l.s4 1966171168
    %v6162 = vunpack.c.0.s8 %v6161
    %v6163 = vlaneseq
    %v6164 = vshrl.u32 %v6163, 7
    %v6165 = vsub.s32 %v6162, %v6164
    %v6166 = vrot.slane %v6138, %v6165
    %v6167 = vcombine.high %v6145, %v6145
    %v6168 = vcombine.high %v6152, %v6152
    %v6169 = vcombine.high %v6159, %v6159
    %v6170 = vcombine.high %v6166, %v6166
    %v6179 = vmul.f32 %v5968, %v6145
    %v6180 = vmul.f32 %v5970, %v6159
    %v6181 = vmul.f32 %v5972, %v6167
    %v6182 = vmul.f32 %v5974, %v6169
    %v6183 = vmul.f32 %v5976, %v6152
    %v6184 = vmul.f32 %v5978, %v6166
    %v6185 = vmul.f32 %v5980, %v6168
    %v6186 = vmul.f32 %v5982, %v6170
    %v6187 = vrot.slane %v5655, 2
    %v6188 = vrot.slane %v5657, 2
    %v6189 = vrot.slane %v5659, 2
    %v6190 = vrot.slane %v5661, 2
    %v6191 = vrot.slane %v5663, 2
    %v6192 = vrot.slane %v5665, 2
    %v6193 = vrot.slane %v5667, 2
    %v6194 = vrot.slane %v5669, 2
    %v6203 = vadd.f32 %v6187, %v6179
    %v6204 = vadd.f32 %v6188, %v6180
    %v6205 = vadd.f32 %v6189, %v6181
    %v6206 = vadd.f32 %v6190, %v6182
    %v6207 = vadd.f32 %v6191, %v6183
    %v6208 = vadd.f32 %v6192, %v6184
    %v6209 = vadd.f32 %v6193, %v6185
    %v6210 = vadd.f32 %v6194, %v6186
    %v6211 = vtanh.pop %v6203
    %v6212 = vtanh.pop %v6204
    %v6213 = vtanh.pop %v6205
    %v6214 = vtanh.pop %v6206
    %v6215 = vtanh.pop %v6207
    %v6216 = vtanh.pop %v6208
    %v6217 = vtanh.pop %v6209
    %v6218 = vtanh.pop %v6210
    %v6219 = vsub.f32 1.0, %v6106
    %v6220 = vsub.f32 1.0, %v6108
    %v6221 = vsub.f32 1.0, %v6110
    %v6222 = vsub.f32 1.0, %v6112
    %v6223 = vsub.f32 1.0, %v6114
    %v6224 = vsub.f32 1.0, %v6116
    %v6225 = vsub.f32 1.0, %v6118
    %v6226 = vsub.f32 1.0, %v6120
    %v6227 = vmul.f32 %v6219, %v6211
    %v6228 = vmul.f32 %v6220, %v6212
    %v6229 = vmul.f32 %v6221, %v6213
    %v6230 = vmul.f32 %v6222, %v6214
    %v6231 = vmul.f32 %v6223, %v6215
    %v6232 = vmul.f32 %v6224, %v6216
    %v6233 = vmul.f32 %v6225, %v6217
    %v6234 = vmul.f32 %v6226, %v6218
    %v6235 = vmul.f32 %v6106, %v5452
    %v6236 = vmul.f32 %v6108, %v5453
    %v6237 = vmul.f32 %v6110, %v5454
    %v6238 = vmul.f32 %v6112, %v5455
    %v6239 = vmul.f32 %v6114, %v5456
    %v6240 = vmul.f32 %v6116, %v5457
    %v6241 = vmul.f32 %v6118, %v5458
    %v6242 = vmul.f32 %v6120, %v5459
    %v6243 = vadd.f32 %v6227, %v6235
    %v6244 = vadd.f32 %v6228, %v6236
    %v6245 = vadd.f32 %v6229, %v6237
    %v6246 = vadd.f32 %v6230, %v6238
    %v6247 = vadd.f32 %v6231, %v6239
    %v6248 = vadd.f32 %v6232, %v6240
    %v6249 = vadd.f32 %v6233, %v6241
    %v6250 = vadd.f32 %v6234, %v6242
    %s6251 = sadd.s32 %s102, 7
    %v6252 = vstv %s6251
    %vm6253 = vcmp.gt.s32.totalorder %v51, %v6252
    %v6254 = vsel %vm6253, 1, 0
    %v6255 = vcvt.s32.f32 %v6254
    %6257 = vset.pattern.permute.xlu0 0
    %6258 = vperm.xlu0 %6257, %v6255
    %v6259 = vpop.permute.xlu0 %6258
    %v6260 = vlaneseq
    %v6261 = vshrl.u32 %v6260, 7
    %v6262 = vsub.s32 0, %v6261
    %v6263 = vrot.slane %v6259, %v6262
    %v6264 = vlaneseq
    %v6265 = vshrl.u32 %v6264, 7
    %v6266 = vsub.s32 1, %v6265
    %v6267 = vrot.slane %v6259, %v6266
    %v6268 = vlaneseq
    %v6269 = vshrl.u32 %v6268, 7
    %v6270 = vsub.s32 2, %v6269
    %v6271 = vrot.slane %v6259, %v6270
    %v6272 = vlaneseq
    %v6273 = vshrl.u32 %v6272, 7
    %v6274 = vsub.s32 3, %v6273
    %v6275 = vrot.slane %v6259, %v6274
    %v6276 = vlaneseq
    %v6277 = vshrl.u32 %v6276, 7
    %v6278 = vsub.s32 4, %v6277
    %v6279 = vrot.slane %v6259, %v6278
    %v6280 = vlaneseq
    %v6281 = vshrl.u32 %v6280, 7
    %v6282 = vsub.s32 5, %v6281
    %v6283 = vrot.slane %v6259, %v6282
    %v6284 = vlaneseq
    %v6285 = vshrl.u32 %v6284, 7
    %v6286 = vsub.s32 6, %v6285
    %v6287 = vrot.slane %v6259, %v6286
    %v6288 = vlaneseq
    %v6289 = vshrl.u32 %v6288, 7
    %v6290 = vsub.s32 7, %v6289
    %v6291 = vrot.slane %v6259, %v6290
    %v6300 = vmul.f32 %v6243, %v6263
    %v6301 = vmul.f32 %v6244, %v6267
    %v6302 = vmul.f32 %v6245, %v6271
    %v6303 = vmul.f32 %v6246, %v6275
    %v6304 = vmul.f32 %v6247, %v6279
    %v6305 = vmul.f32 %v6248, %v6283
    %v6306 = vmul.f32 %v6249, %v6287
    %v6307 = vmul.f32 %v6250, %v6291
    %v6308 = vmul.f32 %v6300, %v6300
    %v6309 = vmul.f32 %v6301, %v6301
    %v6310 = vmul.f32 %v6302, %v6302
    %v6311 = vmul.f32 %v6303, %v6303
    %v6312 = vmul.f32 %v6304, %v6304
    %v6313 = vmul.f32 %v6305, %v6305
    %v6314 = vmul.f32 %v6306, %v6306
    %v6315 = vmul.f32 %v6307, %v6307
    %v6324 = vcombine.low %v6308, %v6309
    %v6325 = vcombine.low %v6310, %v6311
    %v6326 = vcombine.low %v6312, %v6313
    %v6327 = vcombine.low %v6314, %v6315
    %v6329 = vunpack.c.l.s4 1966171168
    %v6330 = vunpack.c.0.s8 %v6329
    %v6331 = vlaneseq
    %v6332 = vshrl.u32 %v6331, 7
    %v6333 = vsub.s32 %v6330, %v6332
    %v6334 = vrot.slane %v6324, %v6333
    %v6336 = vunpack.c.l.s4 1966171168
    %v6337 = vunpack.c.0.s8 %v6336
    %v6338 = vlaneseq
    %v6339 = vshrl.u32 %v6338, 7
    %v6340 = vsub.s32 %v6337, %v6339
    %v6341 = vrot.slane %v6325, %v6340
    %v6343 = vunpack.c.l.s4 1966171168
    %v6344 = vunpack.c.0.s8 %v6343
    %v6345 = vlaneseq
    %v6346 = vshrl.u32 %v6345, 7
    %v6347 = vsub.s32 %v6344, %v6346
    %v6348 = vrot.slane %v6326, %v6347
    %v6350 = vunpack.c.l.s4 1966171168
    %v6351 = vunpack.c.0.s8 %v6350
    %v6352 = vlaneseq
    %v6353 = vshrl.u32 %v6352, 7
    %v6354 = vsub.s32 %v6351, %v6353
    %v6355 = vrot.slane %v6327, %v6354
    %v6356 = vcombine.low %v6334, %v6341
    %v6357 = vcombine.low %v6348, %v6355
    %v6359 = vunpack.c.l.s4 1966171168
    %v6360 = vunpack.c.0.s8 %v6359
    %v6361 = vlaneseq
    %v6362 = vshrl.u32 %v6361, 7
    %v6363 = vsub.s32 %v6360, %v6362
    %v6364 = vrot.slane %v6356, %v6363
    %v6366 = vunpack.c.l.s4 1966171168
    %v6367 = vunpack.c.0.s8 %v6366
    %v6368 = vlaneseq
    %v6369 = vshrl.u32 %v6368, 7
    %v6370 = vsub.s32 %v6367, %v6369
    %v6371 = vrot.slane %v6357, %v6370
    %v6372 = vcombine.low %v6364, %v6371
    %6374 = vadd.xlane.f32.xlu0 %v6372
    %v6375 = vpop.xlane.xlu0 %6374
    %v6376 = vrsqrt.pop %v6375
    %v6377 = vmul.f32 %v6375, %v6376
    %vm6378 = vcmp.eq.f32.partialorder %v6375, inf
    %v6379 = vsel %vm6378, %v6375, %v6377
    %vm6380 = vcmp.eq.f32.partialorder %v6375, 0.0
    %v6381 = vand.u32 %v6375, 2147483648
    %v6382 = vsel %vm6380, %v6381, %v6379
    %v6383 = vadd.f32 %v6382, 1e-08
    %v6384 = vrcp.pop %v6383
    %v6385 = vmul.f32 %v6383, %v6384
    %v6386 = vsub.f32 2.0, %v6385
    %v6387 = vmul.f32 %v6384, %v6386
    %v6389 = vlaneseq
    %v6390 = vshrl.u32 %v6389, 7
    %v6391 = vsub.s32 0, %v6390
    %v6392 = vrot.slane %v6387, %v6391
    %v6393 = vlaneseq
    %v6394 = vshrl.u32 %v6393, 7
    %v6395 = vsub.s32 1, %v6394
    %v6396 = vrot.slane %v6387, %v6395
    %v6397 = vlaneseq
    %v6398 = vshrl.u32 %v6397, 7
    %v6399 = vsub.s32 2, %v6398
    %v6400 = vrot.slane %v6387, %v6399
    %v6401 = vlaneseq
    %v6402 = vshrl.u32 %v6401, 7
    %v6403 = vsub.s32 3, %v6402
    %v6404 = vrot.slane %v6387, %v6403
    %v6405 = vlaneseq
    %v6406 = vshrl.u32 %v6405, 7
    %v6407 = vsub.s32 4, %v6406
    %v6408 = vrot.slane %v6387, %v6407
    %v6409 = vlaneseq
    %v6410 = vshrl.u32 %v6409, 7
    %v6411 = vsub.s32 5, %v6410
    %v6412 = vrot.slane %v6387, %v6411
    %v6413 = vlaneseq
    %v6414 = vshrl.u32 %v6413, 7
    %v6415 = vsub.s32 6, %v6414
    %v6416 = vrot.slane %v6387, %v6415
    %v6417 = vlaneseq
    %v6418 = vshrl.u32 %v6417, 7
    %v6419 = vsub.s32 7, %v6418
    %v6420 = vrot.slane %v6387, %v6419
    %v6429 = vmul.f32 %v6300, %v6392
    %v6430 = vmul.f32 %v6301, %v6396
    %v6431 = vmul.f32 %v6302, %v6400
    %v6432 = vmul.f32 %v6303, %v6404
    %v6433 = vmul.f32 %v6304, %v6408
    %v6434 = vmul.f32 %v6305, %v6412
    %v6435 = vmul.f32 %v6306, %v6416
    %v6436 = vmul.f32 %v6307, %v6420
    %6437 = vst [vmem:[#allocation8 + $0x7] sm:$0x1] %v6429
    %6438 = vst [vmem:[#allocation8 + $0xf] sm:$0x1] %v6430
    %6439 = vst [vmem:[#allocation8 + $0x17] sm:$0x1] %v6431
    %6440 = vst [vmem:[#allocation8 + $0x1f] sm:$0x1] %v6432
    %6441 = vst [vmem:[#allocation8 + $0x27] sm:$0x1] %v6433
    %6442 = vst [vmem:[#allocation8 + $0x2f] sm:$0x1] %v6434
    %6443 = vst [vmem:[#allocation8 + $0x37] sm:$0x1] %v6435
    %6444 = vst [vmem:[#allocation8 + $0x3f] sm:$0x1] %v6436
    %v6453 = vcombine.low %v6243, %v6244
    %v6454 = vcombine.low %v6245, %v6246
    %v6455 = vcombine.low %v6247, %v6248
    %v6456 = vcombine.low %v6249, %v6250
    %v6458 = vunpack.c.l.s4 1966171168
    %v6459 = vunpack.c.0.s8 %v6458
    %v6460 = vlaneseq
    %v6461 = vshrl.u32 %v6460, 7
    %v6462 = vsub.s32 %v6459, %v6461
    %v6463 = vrot.slane %v6453, %v6462
    %v6465 = vunpack.c.l.s4 1966171168
    %v6466 = vunpack.c.0.s8 %v6465
    %v6467 = vlaneseq
    %v6468 = vshrl.u32 %v6467, 7
    %v6469 = vsub.s32 %v6466, %v6468
    %v6470 = vrot.slane %v6454, %v6469
    %v6472 = vunpack.c.l.s4 1966171168
    %v6473 = vunpack.c.0.s8 %v6472
    %v6474 = vlaneseq
    %v6475 = vshrl.u32 %v6474, 7
    %v6476 = vsub.s32 %v6473, %v6475
    %v6477 = vrot.slane %v6455, %v6476
    %v6479 = vunpack.c.l.s4 1966171168
    %v6480 = vunpack.c.0.s8 %v6479
    %v6481 = vlaneseq
    %v6482 = vshrl.u32 %v6481, 7
    %v6483 = vsub.s32 %v6480, %v6482
    %v6484 = vrot.slane %v6456, %v6483
    %v6485 = vcombine.low %v6463, %v6470
    %v6486 = vcombine.low %v6477, %v6484
    %v6488 = vunpack.c.l.s4 1966171168
    %v6489 = vunpack.c.0.s8 %v6488
    %v6490 = vlaneseq
    %v6491 = vshrl.u32 %v6490, 7
    %v6492 = vsub.s32 %v6489, %v6491
    %v6493 = vrot.slane %v6485, %v6492
    %v6495 = vunpack.c.l.s4 1966171168
    %v6496 = vunpack.c.0.s8 %v6495
    %v6497 = vlaneseq
    %v6498 = vshrl.u32 %v6497, 7
    %v6499 = vsub.s32 %v6496, %v6498
    %v6500 = vrot.slane %v6486, %v6499
    %v6501 = vcombine.low %v6493, %v6500
    %6503 = vst [vmem:[#allocation2] sm:$0xff] %v6501
    // Predicated region
    $region30: #{tpu_custom_call.1} parent=1 // pred_check
      _
    $region31: #{tpu_custom_call.1} parent=1 // pred_check_branch
      %6505 = sbr.rel (0) target = $region33
    $region32: #{tpu_custom_call.1} parent=1 // pred_region
      %s6507 = ssub.s32 1024, 1024
      %6508 = vsyncadd [#allocation5], %s6507
      %s6509 = sshll.u32 [#allocation8], 4
      %s6510 = int_to_ptr.vmem [resolvable:$true] %s6509
      %6515 = dma.vmem_to_hbm [thread:$0]  %s6510, 1024, %s4, [#allocation5], 128, 128, 8
    $region33: #{tpu_custom_call.1} parent=1 // pred_fallthru
      _
    // Predicated region
    $region34: #{tpu_custom_call.1} parent=1 // pred_check
      _
    $region35: #{tpu_custom_call.1} parent=1 // pred_check_branch
      %6517 = sbr.rel (0) target = $region37
    $region36: #{tpu_custom_call.1} parent=1 // pred_region
      %6518 = dma.done [#allocation5], 1024
    $region37: #{tpu_custom_call.1} parent=1 // pred_fallthru
      _
    %6519 = vsyncpa [#allocation4], 1
    %6520 = vsyncpa [#allocation7], 1
    %6521 = vsyncpa [#allocation5], 1

</llo_original>
